<compile_context>
chip_gen: v5e
topology: v5e:2x2
jax: 0.10.0
libtpu: 0.0.40
codegen_flags: <defaults>
</compile_context>

<pallas_src>
import jax
import jax.numpy as jnp
from jax import lax
from jax.experimental import pallas as pl
from jax.experimental.pallas import tpu as pltpu

_LANES = 128
_CONTRACT_LAST = (((1,), (1,)), ((), ()))      # (M,K) x (N,K) -> (M,N)
_PREC = lax.Precision.HIGHEST


def _pad_axis0(a, mult=_LANES):
    pad = (-a.shape[0]) % mult
    if pad == 0:
        return a
    return jnp.pad(a, ((0, pad),) + ((0, 0),) * (a.ndim - 1))


# ---------------------------------------------------------------------------
# Kernel 1: conv-as-matmul (+ bias) fused with the following 2x2/2 max-pool.
# p00..p11 hold the im2col patches of the four conv outputs inside each pool
# window: shape (M, K) with M = B*Hp*Wp, K = Cin*k*k.
# w is (Npad, K) (out_channels zero-padded to a multiple of 128); b is (1, Npad).
# ---------------------------------------------------------------------------
def _conv_pool_kernel(p00_ref, p01_ref, p10_ref, p11_ref, w_ref, b_ref, o_ref):
    w = w_ref[...]

    def conv(p_ref):
        return lax.dot_general(p_ref[...], w, dimension_numbers=_CONTRACT_LAST,
                               preferred_element_type=jnp.float32,
                               precision=_PREC)

    y = jnp.maximum(jnp.maximum(conv(p00_ref), conv(p01_ref)),
                    jnp.maximum(conv(p10_ref), conv(p11_ref)))
    # bias is constant across the pool window -> add once, after the max
    o_ref[...] = (y + b_ref[...]).astype(o_ref.dtype)


# ---------------------------------------------------------------------------
# Kernel 2: fused classifier head Linear(800,500)+bias+ReLU+Linear(500,10)+bias.
# (The SapUnit between them is identity in training mode.)
# ---------------------------------------------------------------------------
def _mlp_head_kernel(x_ref, w1_ref, b1_ref, w2_ref, b2_ref, o_ref):
    h = lax.dot_general(x_ref[...], w1_ref[...], dimension_numbers=_CONTRACT_LAST,
                        preferred_element_type=jnp.float32, precision=_PREC)
    h = jnp.maximum(h + b1_ref[...], 0.0)
    y = lax.dot_general(h, w2_ref[...], dimension_numbers=_CONTRACT_LAST,
                        preferred_element_type=jnp.float32, precision=_PREC)
    o_ref[...] = (y + b2_ref[...]).astype(o_ref.dtype)


# ---------------------------------------------------------------------------
# Host-side layout plumbing (XLA): im2col + pool-window split + NCHW transposes.
# ---------------------------------------------------------------------------
def _im2col(x_nchw, k):
    """(B,C,H,W) -> (B,Ho,Wo,C*k*k); last dim ordered (C, kh, kw) to match
    torch's conv weight.reshape(Cout, -1)."""
    B, C, H, W = x_nchw.shape
    Ho, Wo = H - k + 1, W - k + 1
    cols = [x_nchw[:, :, dy:dy + Ho, dx:dx + Wo]
            for dy in range(k) for dx in range(k)]
    p = jnp.stack(cols, axis=0).reshape(k, k, B, C, Ho, Wo)
    p = p.transpose(2, 4, 5, 3, 0, 1)            # (B, Ho, Wo, C, kh, kw)
    return p.reshape(B, Ho, Wo, C * k * k)


def conv5x5_maxpool2(x_nchw, w, b):
    """Valid 5x5 conv (stride 1) + bias + 2x2/2 max-pool in ONE pallas_call.
    x: (B,Cin,H,W), w: (Cout,Cin,5,5), b: (Cout,) -> (B,Cout,Hp,Wp)."""
    B, C, H, W = x_nchw.shape
    Cout, Cin, kH, kW = w.shape
    assert C == Cin and kH == kW
    Ho, Wo = H - kH + 1, W - kW + 1
    Hp, Wp = Ho // 2, Wo // 2
    K = Cin * kH * kW
    M = B * Hp * Wp

    patches = _im2col(x_nchw, kH)                              # (B, Ho, Wo, K)
    p00 = patches[:, 0::2, 0::2, :].reshape(M, K)
    p01 = patches[:, 0::2, 1::2, :].reshape(M, K)
    p10 = patches[:, 1::2, 0::2, :].reshape(M, K)
    p11 = patches[:, 1::2, 1::2, :].reshape(M, K)

    w_pad = _pad_axis0(w.reshape(Cout, K))                     # (Npad, K)
    b_pad = _pad_axis0(b)[None, :]                             # (1, Npad)
    Npad = w_pad.shape[0]

    out = pl.pallas_call(
        _conv_pool_kernel,
        out_shape=jax.ShapeDtypeStruct((M, Npad), x_nchw.dtype),
        in_specs=[pl.BlockSpec(memory_space=pltpu.MemorySpace.VMEM)] * 6,
        out_specs=pl.BlockSpec(memory_space=pltpu.MemorySpace.VMEM),
    )(p00, p01, p10, p11, w_pad, b_pad)

    out = out[:, :Cout]                                        # drop lane padding
    # back to NCHW so the later flatten matches torch's x.view(B, C*H*W)
    return out.reshape(B, Hp, Wp, Cout).transpose(0, 3, 1, 2)


def classifier_head(x, w1, b1, w2, b2):
    """Fused Linear(800,500) + ReLU + Linear(500,10).  x: (B, 800) -> (B, 10)."""
    B = x.shape[0]
    N2 = w2.shape[0]
    w2_pad = _pad_axis0(w2)                                    # (128, 500)
    b2_pad = _pad_axis0(b2)[None, :]                           # (1, 128)
    out = pl.pallas_call(
        _mlp_head_kernel,
        out_shape=jax.ShapeDtypeStruct((B, w2_pad.shape[0]), x.dtype),
        in_specs=[pl.BlockSpec(memory_space=pltpu.MemorySpace.VMEM)] * 5,
        out_specs=pl.BlockSpec(memory_space=pltpu.MemorySpace.VMEM),
    )(x, w1, b1[None, :], w2_pad, b2_pad)
    return out[:, :N2]


def my_sap_caffe_lenet_forward(x, params):
    """Forward of MySapCaffeLeNet with training-mode semantics (SapUnit == identity)."""
    # TODO(synk): eval-mode SapUnit (stochastic torch.multinomial activation
    # resampling) is nondeterministic and has no clean Pallas equivalent;
    # the module-default training-mode identity path is implemented.
    assert x.shape[2] == 28 and x.shape[3] == 28, "FixHWConv2d expects 28x28 input"
    h = conv5x5_maxpool2(x, params["conv1_w"], params["conv1_b"])   # (B, 20, 12, 12)
    h = conv5x5_maxpool2(h, params["conv2_w"], params["conv2_b"])   # (B, 50, 4, 4)
    h = h.reshape(h.shape[0], 50 * 4 * 4)                           # torch .view order
    return classifier_head(h, params["fc1_w"], params["fc1_b"],
                           params["fc2_w"], params["fc2_b"])        # (B, 10)


# ---------------------------------------------------------------------------
# Pure-JAX reference mirroring the PyTorch module (training mode).
# ---------------------------------------------------------------------------
def _reference(x, params):
    def conv(x, w, b):
        y = lax.conv_general_dilated(x, w, (1, 1), "VALID",
                                     dimension_numbers=("NCHW", "OIHW", "NCHW"),
                                     precision=_PREC)
        return y + b[None, :, None, None]

    def pool(x):
        return lax.reduce_window(x, -jnp.inf, lax.max,
                                 (1, 1, 2, 2), (1, 1, 2, 2), "VALID")

    h = pool(conv(x, params["conv1_w"], params["conv1_b"]))
    h = pool(conv(h, params["conv2_w"], params["conv2_b"]))
    h = h.reshape(h.shape[0], -1)
    h = jnp.maximum(jnp.dot(h, params["fc1_w"].T, precision=_PREC) + params["fc1_b"], 0.0)
    return jnp.dot(h, params["fc2_w"].T, precision=_PREC) + params["fc2_b"]


if __name__ == "__main__":
    batch = 2
    key = jax.random.PRNGKey(0)
    ks = jax.random.split(key, 9)

    x = jax.random.normal(ks[0], (batch, 1, 28, 28), dtype=jnp.float32)
    params = {
        "conv1_w": 0.2 * jax.random.normal(ks[1], (20, 1, 5, 5), jnp.float32),
        "conv1_b": 0.1 * jax.random.normal(ks[2], (20,), jnp.float32),
        "conv2_w": 0.05 * jax.random.normal(ks[3], (50, 20, 5, 5), jnp.float32),
        "conv2_b": 0.1 * jax.random.normal(ks[4], (50,), jnp.float32),
        "fc1_w": 0.03 * jax.random.normal(ks[5], (500, 800), jnp.float32),
        "fc1_b": 0.1 * jax.random.normal(ks[6], (500,), jnp.float32),
        "fc2_w": 0.05 * jax.random.normal(ks[7], (10, 500), jnp.float32),
        "fc2_b": 0.1 * jax.random.normal(ks[8], (10,), jnp.float32),
    }

    y = my_sap_caffe_lenet_forward(x, params)
    jax.block_until_ready(y)

    y_ref = _reference(x, params)
    assert y.shape == (batch, 10)
    max_err = float(jnp.max(jnp.abs(y - y_ref)))
    assert jnp.allclose(y, y_ref, atol=1e-4, rtol=1e-4), f"max_err={max_err}"

    print("KERNEL_OK")
</pallas_src>

<mosaic_0001>
module attributes {stable_mosaic.version = 11 : i64} {
  func.func @_conv_pool_kernel(%arg0: memref<288x25xf32, #tpu.memory_space<vmem>>, %arg1: memref<288x25xf32, #tpu.memory_space<vmem>>, %arg2: memref<288x25xf32, #tpu.memory_space<vmem>>, %arg3: memref<288x25xf32, #tpu.memory_space<vmem>>, %arg4: memref<128x25xf32, #tpu.memory_space<vmem>>, %arg5: memref<1x128xf32, #tpu.memory_space<vmem>>, %arg6: memref<288x128xf32, #tpu.memory_space<vmem>>) attributes {dimension_semantics = [], scalar_prefetch = 0 : i64, scratch_operands = 0 : i64, tpu.core_type = #tpu.core_type<tc>} {
    %c0 = arith.constant 0 : index
    %c0_0 = arith.constant 0 : index
    %0 = vector.load %arg4[%c0, %c0_0] : memref<128x25xf32, #tpu.memory_space<vmem>>, vector<128x25xf32>
    %c0_1 = arith.constant 0 : index
    %c0_2 = arith.constant 0 : index
    %1 = vector.load %arg0[%c0_1, %c0_2] : memref<288x25xf32, #tpu.memory_space<vmem>>, vector<288x25xf32>
    %cst = arith.constant dense<0.000000e+00> : vector<288x128xf32>
    %2 = tpu.matmul %1, %0, %cst {dimension_numbers = #tpu.dot_dimension_numbers<[1], [1], [0], [0], [0, 0, 1, 0], [], []>, precision = #tpu.contract_precision<fp32>} : vector<288x25xf32>, vector<128x25xf32>, vector<288x128xf32> -> vector<288x128xf32>
    %c0_3 = arith.constant 0 : index
    %c0_4 = arith.constant 0 : index
    %3 = vector.load %arg1[%c0_3, %c0_4] : memref<288x25xf32, #tpu.memory_space<vmem>>, vector<288x25xf32>
    %cst_5 = arith.constant dense<0.000000e+00> : vector<288x128xf32>
    %4 = tpu.matmul %3, %0, %cst_5 {dimension_numbers = #tpu.dot_dimension_numbers<[1], [1], [0], [0], [0, 0, 1, 0], [], []>, precision = #tpu.contract_precision<fp32>} : vector<288x25xf32>, vector<128x25xf32>, vector<288x128xf32> -> vector<288x128xf32>
    %5 = arith.maximumf %2, %4 : vector<288x128xf32>
    %c0_6 = arith.constant 0 : index
    %c0_7 = arith.constant 0 : index
    %6 = vector.load %arg2[%c0_6, %c0_7] : memref<288x25xf32, #tpu.memory_space<vmem>>, vector<288x25xf32>
    %cst_8 = arith.constant dense<0.000000e+00> : vector<288x128xf32>
    %7 = tpu.matmul %6, %0, %cst_8 {dimension_numbers = #tpu.dot_dimension_numbers<[1], [1], [0], [0], [0, 0, 1, 0], [], []>, precision = #tpu.contract_precision<fp32>} : vector<288x25xf32>, vector<128x25xf32>, vector<288x128xf32> -> vector<288x128xf32>
    %c0_9 = arith.constant 0 : index
    %c0_10 = arith.constant 0 : index
    %8 = vector.load %arg3[%c0_9, %c0_10] : memref<288x25xf32, #tpu.memory_space<vmem>>, vector<288x25xf32>
    %cst_11 = arith.constant dense<0.000000e+00> : vector<288x128xf32>
    %9 = tpu.matmul %8, %0, %cst_11 {dimension_numbers = #tpu.dot_dimension_numbers<[1], [1], [0], [0], [0, 0, 1, 0], [], []>, precision = #tpu.contract_precision<fp32>} : vector<288x25xf32>, vector<128x25xf32>, vector<288x128xf32> -> vector<288x128xf32>
    %10 = arith.maximumf %7, %9 : vector<288x128xf32>
    %11 = arith.maximumf %5, %10 : vector<288x128xf32>
    %c0_12 = arith.constant 0 : index
    %c0_13 = arith.constant 0 : index
    %12 = vector.load %arg5[%c0_12, %c0_13] : memref<1x128xf32, #tpu.memory_space<vmem>>, vector<1x128xf32>
    %13 = vector.broadcast %12 : vector<1x128xf32> to vector<288x128xf32>
    %14 = arith.addf %11, %13 : vector<288x128xf32>
    %c0_14 = arith.constant 0 : index
    %c0_15 = arith.constant 0 : index
    %15 = vector.load %arg6[%c0_14, %c0_15] : memref<288x128xf32, #tpu.memory_space<vmem>>, vector<288x128xf32>
    tpu.vector_store %arg6[%c0_14, %c0_15], %14 {strides = array<i32>} : memref<288x128xf32, #tpu.memory_space<vmem>>, vector<288x128xf32>,
    return
  }
}

</mosaic_0001>

<llo_original>
// kernel: tpu_custom_call.1
$region0: #{tpu_custom_call.1}
  #allocation0 [shape = 'u32[]', space=smem, size = 0x4, offset = 0x4, fixed_abs, tag = 'smem constant byte address 0x4 - core index']
  #allocation1 [shape = 'u32[72,128]{1,0:T(1,128)}', space=vmem, size = 0x9000, scoped, tag = 'internal scratch']
  %s0 = inlined_call_operand.vmem [shape: f32[288,25], index: 0, kind: input, shape index: {}]
  %s1 = inlined_call_operand.vmem [shape: f32[288,25], index: 1, kind: input, shape index: {}]
  %s2 = inlined_call_operand.vmem [shape: f32[288,25], index: 2, kind: input, shape index: {}]
  %s3 = inlined_call_operand.vmem [shape: f32[288,25], index: 3, kind: input, shape index: {}]
  %s4 = inlined_call_operand.vmem [shape: f32[128,25], index: 4, kind: input, shape index: {}]
  %s5 = inlined_call_operand.vmem [shape: f32[1,128], index: 5, kind: input, shape index: {}]
  %s6 = inlined_call_operand.hbm [shape: f32[288,128], index: 6, kind: output, shape index: {}]
  %s7 = sld [smem:[#allocation0]]
  $region34: #{tpu_custom_call.1} parent=0
    _
  %s9 = ssub.s32 1, %s7
  %s10 = scalar_select 0, %s9, %s7
  $region1: #{tpu_custom_call.1} parent=0
    #allocation2 [shape = 'u8[147456]{0}', space=vmem, size = 0x24000, scoped, tag = 'output window, operand 0, single buffered']
    #allocation3 [shape = 's32[1]{0}', space=sflag, size = 0x4, scoped, tag = 'scoped memory for tpu_custom_call.1']
    %11 = vsyncpa [#allocation3], 0
    // Predicated region
    $region2: #{tpu_custom_call.1} parent=1 // pred_check
      _
    $region3: #{tpu_custom_call.1} parent=1 // pred_check_branch
      %13 = sbr.rel (0) target = $region5
    $region4: #{tpu_custom_call.1} parent=1 // pred_region
      _
    $region5: #{tpu_custom_call.1} parent=1 // pred_fallthru
      _
    // Predicated region
    $region6: #{tpu_custom_call.1} parent=1 // pred_check
      _
    $region7: #{tpu_custom_call.1} parent=1 // pred_check_branch
      %15 = sbr.rel (0) target = $region9
    $region8: #{tpu_custom_call.1} parent=1 // pred_region
      _
    $region9: #{tpu_custom_call.1} parent=1 // pred_fallthru
      _
    // Predicated region
    $region10: #{tpu_custom_call.1} parent=1 // pred_check
      _
    $region11: #{tpu_custom_call.1} parent=1 // pred_check_branch
      %17 = sbr.rel (0) target = $region13
    $region12: #{tpu_custom_call.1} parent=1 // pred_region
      _
    $region13: #{tpu_custom_call.1} parent=1 // pred_fallthru
      _
    // Predicated region
    $region14: #{tpu_custom_call.1} parent=1 // pred_check
      _
    $region15: #{tpu_custom_call.1} parent=1 // pred_check_branch
      %19 = sbr.rel (0) target = $region17
    $region16: #{tpu_custom_call.1} parent=1 // pred_region
      _
    $region17: #{tpu_custom_call.1} parent=1 // pred_fallthru
      _
    // Predicated region
    $region18: #{tpu_custom_call.1} parent=1 // pred_check
      _
    $region19: #{tpu_custom_call.1} parent=1 // pred_check_branch
      %21 = sbr.rel (0) target = $region21
    $region20: #{tpu_custom_call.1} parent=1 // pred_region
      _
    $region21: #{tpu_custom_call.1} parent=1 // pred_fallthru
      _
    // Predicated region
    $region22: #{tpu_custom_call.1} parent=1 // pred_check
      _
    $region23: #{tpu_custom_call.1} parent=1 // pred_check_branch
      %23 = sbr.rel (0) target = $region25
    $region24: #{tpu_custom_call.1} parent=1 // pred_region
      _
    $region25: #{tpu_custom_call.1} parent=1 // pred_fallthru
      _
    %v24 = vld [vmem:[%s4] sm:$0xff]
    %v25 = vld [vmem:[%s4 + $0x8] sm:$0xff]
    %v26 = vld [vmem:[%s4 + $0x10] sm:$0xff]
    %v27 = vld [vmem:[%s4 + $0x18] sm:$0xff]
    %v28 = vld [vmem:[%s4 + $0x20] sm:$0xff]
    %v29 = vld [vmem:[%s4 + $0x28] sm:$0xff]
    %v30 = vld [vmem:[%s4 + $0x30] sm:$0xff]
    %v31 = vld [vmem:[%s4 + $0x38] sm:$0xff]
    %v32 = vld [vmem:[%s4 + $0x40] sm:$0xff]
    %v33 = vld [vmem:[%s4 + $0x48] sm:$0xff]
    %v34 = vld [vmem:[%s4 + $0x50] sm:$0xff]
    %v35 = vld [vmem:[%s4 + $0x58] sm:$0xff]
    %v36 = vld [vmem:[%s4 + $0x60] sm:$0xff]
    %v37 = vld [vmem:[%s4 + $0x68] sm:$0xff]
    %v38 = vld [vmem:[%s4 + $0x70] sm:$0xff]
    %v39 = vld [vmem:[%s4 + $0x78] sm:$0xff]
    %v40 = vld [vmem:[%s0] sm:$0xff]
    %v41 = vld [vmem:[%s0 + $0x8] sm:$0xff]
    %v42 = vld [vmem:[%s0 + $0x10] sm:$0xff]
    %v43 = vld [vmem:[%s0 + $0x18] sm:$0xff]
    %v44 = vld [vmem:[%s0 + $0x20] sm:$0xff]
    %v45 = vld [vmem:[%s0 + $0x28] sm:$0xff]
    %v46 = vld [vmem:[%s0 + $0x30] sm:$0xff]
    %v47 = vld [vmem:[%s0 + $0x38] sm:$0xff]
    %v48 = vld [vmem:[%s0 + $0x40] sm:$0xff]
    %v49 = vld [vmem:[%s0 + $0x48] sm:$0xff]
    %v50 = vld [vmem:[%s0 + $0x50] sm:$0xff]
    %v51 = vld [vmem:[%s0 + $0x58] sm:$0xff]
    %v52 = vld [vmem:[%s0 + $0x60] sm:$0xff]
    %v53 = vld [vmem:[%s0 + $0x68] sm:$0xff]
    %v54 = vld [vmem:[%s0 + $0x70] sm:$0xff]
    %v55 = vld [vmem:[%s0 + $0x78] sm:$0xff]
    %v56 = vld [vmem:[%s0 + $0x80] sm:$0xff]
    %v57 = vld [vmem:[%s0 + $0x88] sm:$0xff]
    %v58 = vld [vmem:[%s0 + $0x90] sm:$0xff]
    %v59 = vld [vmem:[%s0 + $0x98] sm:$0xff]
    %v60 = vld [vmem:[%s0 + $0xa0] sm:$0xff]
    %v61 = vld [vmem:[%s0 + $0xa8] sm:$0xff]
    %v62 = vld [vmem:[%s0 + $0xb0] sm:$0xff]
    %v63 = vld [vmem:[%s0 + $0xb8] sm:$0xff]
    %v64 = vld [vmem:[%s0 + $0xc0] sm:$0xff]
    %v65 = vld [vmem:[%s0 + $0xc8] sm:$0xff]
    %v66 = vld [vmem:[%s0 + $0xd0] sm:$0xff]
    %v67 = vld [vmem:[%s0 + $0xd8] sm:$0xff]
    %v68 = vld [vmem:[%s0 + $0xe0] sm:$0xff]
    %v69 = vld [vmem:[%s0 + $0xe8] sm:$0xff]
    %v70 = vld [vmem:[%s0 + $0xf0] sm:$0xff]
    %v71 = vld [vmem:[%s0 + $0xf8] sm:$0xff]
    %v72 = vld [vmem:[%s0 + $0x100] sm:$0xff]
    %v73 = vld [vmem:[%s0 + $0x108] sm:$0xff]
    %v74 = vld [vmem:[%s0 + $0x110] sm:$0xff]
    %v75 = vld [vmem:[%s0 + $0x118] sm:$0xff]
    %vm76 = vcmask 203776
    %v78 = vsel %vm76, %v40, 0
    %v81 = vsel %vm76, %v41, 0
    %v84 = vsel %vm76, %v42, 0
    %v87 = vsel %vm76, %v43, 0
    %v90 = vsel %vm76, %v44, 0
    %v93 = vsel %vm76, %v45, 0
    %v96 = vsel %vm76, %v46, 0
    %v99 = vsel %vm76, %v47, 0
    %v102 = vsel %vm76, %v48, 0
    %v105 = vsel %vm76, %v49, 0
    %v108 = vsel %vm76, %v50, 0
    %v111 = vsel %vm76, %v51, 0
    %v114 = vsel %vm76, %v52, 0
    %v117 = vsel %vm76, %v53, 0
    %v120 = vsel %vm76, %v54, 0
    %v123 = vsel %vm76, %v55, 0
    %v126 = vsel %vm76, %v56, 0
    %v129 = vsel %vm76, %v57, 0
    %v132 = vsel %vm76, %v58, 0
    %v135 = vsel %vm76, %v59, 0
    %v138 = vsel %vm76, %v60, 0
    %v141 = vsel %vm76, %v61, 0
    %v144 = vsel %vm76, %v62, 0
    %v147 = vsel %vm76, %v63, 0
    %v150 = vsel %vm76, %v64, 0
    %v153 = vsel %vm76, %v65, 0
    %v156 = vsel %vm76, %v66, 0
    %v159 = vsel %vm76, %v67, 0
    %v162 = vsel %vm76, %v68, 0
    %v165 = vsel %vm76, %v69, 0
    %v168 = vsel %vm76, %v70, 0
    %v171 = vsel %vm76, %v71, 0
    %v174 = vsel %vm76, %v72, 0
    %v177 = vsel %vm76, %v73, 0
    %v180 = vsel %vm76, %v74, 0
    %v183 = vsel %vm76, %v75, 0
    %v186 = vsel %vm76, %v24, 0
    %v189 = vsel %vm76, %v25, 0
    %v192 = vsel %vm76, %v26, 0
    %v195 = vsel %vm76, %v27, 0
    %v198 = vsel %vm76, %v28, 0
    %v201 = vsel %vm76, %v29, 0
    %v204 = vsel %vm76, %v30, 0
    %v207 = vsel %vm76, %v31, 0
    %v210 = vsel %vm76, %v32, 0
    %v213 = vsel %vm76, %v33, 0
    %v216 = vsel %vm76, %v34, 0
    %v219 = vsel %vm76, %v35, 0
    %v222 = vsel %vm76, %v36, 0
    %v225 = vsel %vm76, %v37, 0
    %v228 = vsel %vm76, %v38, 0
    %v231 = vsel %vm76, %v39, 0
    %v233 = vand.u32 %v231, 4294901760
    %234 = vmatpush.xpose.msra.mxu0 %v233
    %v235 = vand.u32 %v228, 4294901760
    %236 = vmatpush.xpose.msra.mxu0 %v235
    %v237 = vand.u32 %v225, 4294901760
    %238 = vmatpush.xpose.msra.mxu0 %v237
    %v239 = vand.u32 %v222, 4294901760
    %240 = vmatpush.xpose.msra.mxu0 %v239
    %v241 = vand.u32 %v219, 4294901760
    %242 = vmatpush.xpose.msra.mxu0 %v241
    %v243 = vand.u32 %v216, 4294901760
    %244 = vmatpush.xpose.msra.mxu0 %v243
    %v245 = vand.u32 %v213, 4294901760
    %246 = vmatpush.xpose.msra.mxu0 %v245
    %v247 = vand.u32 %v210, 4294901760
    %248 = vmatpush.xpose.msra.mxu0 %v247
    %v249 = vand.u32 %v207, 4294901760
    %250 = vmatpush.xpose.msra.mxu0 %v249
    %v251 = vand.u32 %v204, 4294901760
    %252 = vmatpush.xpose.msra.mxu0 %v251
    %v253 = vand.u32 %v201, 4294901760
    %254 = vmatpush.xpose.msra.mxu0 %v253
    %v255 = vand.u32 %v198, 4294901760
    %256 = vmatpush.xpose.msra.mxu0 %v255
    %v257 = vand.u32 %v195, 4294901760
    %258 = vmatpush.xpose.msra.mxu0 %v257
    %v259 = vand.u32 %v192, 4294901760
    %260 = vmatpush.xpose.msra.mxu0 %v259
    %v261 = vand.u32 %v189, 4294901760
    %262 = vmatpush.xpose.msra.mxu0 %v261
    %v263 = vand.u32 %v186, 4294901760
    %264 = vmatpush.xpose.msra.mxu0 %v263
    %v265 = vand.u32 %v78, 4294901760
    %v266 = vsub.f32 %v78, %v265
    %v267 = vand.u32 %v266, 4294901760
    %v268 = vsub.f32 %v266, %v267
    %v269 = vand.u32 %v268, 4294901760
    %270 = vmatmul.f32.gmra.mxu0 %v269
    %v271 = vpop.f32.mrf.mxu0
    %v272 = vadd.f32 0.0, %v271
    %v273 = vand.u32 %v81, 4294901760
    %v274 = vsub.f32 %v81, %v273
    %v275 = vand.u32 %v274, 4294901760
    %v276 = vsub.f32 %v274, %v275
    %v277 = vand.u32 %v276, 4294901760
    %278 = vmatmul.f32.gmra.mxu0 %v277
    %v279 = vpop.f32.mrf.mxu0
    %v280 = vadd.f32 0.0, %v279
    %v281 = vand.u32 %v84, 4294901760
    %v282 = vsub.f32 %v84, %v281
    %v283 = vand.u32 %v282, 4294901760
    %v284 = vsub.f32 %v282, %v283
    %v285 = vand.u32 %v284, 4294901760
    %286 = vmatmul.f32.gmra.mxu0 %v285
    %v287 = vpop.f32.mrf.mxu0
    %v288 = vadd.f32 0.0, %v287
    %v289 = vand.u32 %v87, 4294901760
    %v290 = vsub.f32 %v87, %v289
    %v291 = vand.u32 %v290, 4294901760
    %v292 = vsub.f32 %v290, %v291
    %v293 = vand.u32 %v292, 4294901760
    %294 = vmatmul.f32.gmra.mxu0 %v293
    %v295 = vpop.f32.mrf.mxu0
    %v296 = vadd.f32 0.0, %v295
    %v297 = vand.u32 %v90, 4294901760
    %v298 = vsub.f32 %v90, %v297
    %v299 = vand.u32 %v298, 4294901760
    %v300 = vsub.f32 %v298, %v299
    %v301 = vand.u32 %v300, 4294901760
    %302 = vmatmul.f32.gmra.mxu0 %v301
    %v303 = vpop.f32.mrf.mxu0
    %v304 = vadd.f32 0.0, %v303
    %v305 = vand.u32 %v93, 4294901760
    %v306 = vsub.f32 %v93, %v305
    %v307 = vand.u32 %v306, 4294901760
    %v308 = vsub.f32 %v306, %v307
    %v309 = vand.u32 %v308, 4294901760
    %310 = vmatmul.f32.gmra.mxu0 %v309
    %v311 = vpop.f32.mrf.mxu0
    %v312 = vadd.f32 0.0, %v311
    %v313 = vand.u32 %v96, 4294901760
    %v314 = vsub.f32 %v96, %v313
    %v315 = vand.u32 %v314, 4294901760
    %v316 = vsub.f32 %v314, %v315
    %v317 = vand.u32 %v316, 4294901760
    %318 = vmatmul.f32.gmra.mxu0 %v317
    %v319 = vpop.f32.mrf.mxu0
    %v320 = vadd.f32 0.0, %v319
    %v321 = vand.u32 %v99, 4294901760
    %v322 = vsub.f32 %v99, %v321
    %v323 = vand.u32 %v322, 4294901760
    %v324 = vsub.f32 %v322, %v323
    %v325 = vand.u32 %v324, 4294901760
    %326 = vmatmul.f32.gmra.mxu0 %v325
    %v327 = vpop.f32.mrf.mxu0
    %v328 = vadd.f32 0.0, %v327
    %v329 = vand.u32 %v102, 4294901760
    %v330 = vsub.f32 %v102, %v329
    %v331 = vand.u32 %v330, 4294901760
    %v332 = vsub.f32 %v330, %v331
    %v333 = vand.u32 %v332, 4294901760
    %334 = vmatmul.f32.gmra.mxu0 %v333
    %v335 = vpop.f32.mrf.mxu0
    %v336 = vadd.f32 0.0, %v335
    %v337 = vand.u32 %v105, 4294901760
    %v338 = vsub.f32 %v105, %v337
    %v339 = vand.u32 %v338, 4294901760
    %v340 = vsub.f32 %v338, %v339
    %v341 = vand.u32 %v340, 4294901760
    %342 = vmatmul.f32.gmra.mxu0 %v341
    %v343 = vpop.f32.mrf.mxu0
    %v344 = vadd.f32 0.0, %v343
    %v345 = vand.u32 %v108, 4294901760
    %v346 = vsub.f32 %v108, %v345
    %v347 = vand.u32 %v346, 4294901760
    %v348 = vsub.f32 %v346, %v347
    %v349 = vand.u32 %v348, 4294901760
    %350 = vmatmul.f32.gmra.mxu0 %v349
    %v351 = vpop.f32.mrf.mxu0
    %v352 = vadd.f32 0.0, %v351
    %v353 = vand.u32 %v111, 4294901760
    %v354 = vsub.f32 %v111, %v353
    %v355 = vand.u32 %v354, 4294901760
    %v356 = vsub.f32 %v354, %v355
    %v357 = vand.u32 %v356, 4294901760
    %358 = vmatmul.f32.gmra.mxu0 %v357
    %v359 = vpop.f32.mrf.mxu0
    %v360 = vadd.f32 0.0, %v359
    %v361 = vand.u32 %v114, 4294901760
    %v362 = vsub.f32 %v114, %v361
    %v363 = vand.u32 %v362, 4294901760
    %v364 = vsub.f32 %v362, %v363
    %v365 = vand.u32 %v364, 4294901760
    %366 = vmatmul.f32.gmra.mxu0 %v365
    %v367 = vpop.f32.mrf.mxu0
    %v368 = vadd.f32 0.0, %v367
    %v369 = vand.u32 %v117, 4294901760
    %v370 = vsub.f32 %v117, %v369
    %v371 = vand.u32 %v370, 4294901760
    %v372 = vsub.f32 %v370, %v371
    %v373 = vand.u32 %v372, 4294901760
    %374 = vmatmul.f32.gmra.mxu0 %v373
    %v375 = vpop.f32.mrf.mxu0
    %v376 = vadd.f32 0.0, %v375
    %v377 = vand.u32 %v120, 4294901760
    %v378 = vsub.f32 %v120, %v377
    %v379 = vand.u32 %v378, 4294901760
    %v380 = vsub.f32 %v378, %v379
    %v381 = vand.u32 %v380, 4294901760
    %382 = vmatmul.f32.gmra.mxu0 %v381
    %v383 = vpop.f32.mrf.mxu0
    %v384 = vadd.f32 0.0, %v383
    %v385 = vand.u32 %v123, 4294901760
    %v386 = vsub.f32 %v123, %v385
    %v387 = vand.u32 %v386, 4294901760
    %v388 = vsub.f32 %v386, %v387
    %v389 = vand.u32 %v388, 4294901760
    %390 = vmatmul.f32.gmra.mxu0 %v389
    %v391 = vpop.f32.mrf.mxu0
    %v392 = vadd.f32 0.0, %v391
    %v393 = vand.u32 %v126, 4294901760
    %v394 = vsub.f32 %v126, %v393
    %v395 = vand.u32 %v394, 4294901760
    %v396 = vsub.f32 %v394, %v395
    %v397 = vand.u32 %v396, 4294901760
    %398 = vmatmul.f32.gmra.mxu0 %v397
    %v399 = vpop.f32.mrf.mxu0
    %v400 = vadd.f32 0.0, %v399
    %v401 = vand.u32 %v129, 4294901760
    %v402 = vsub.f32 %v129, %v401
    %v403 = vand.u32 %v402, 4294901760
    %v404 = vsub.f32 %v402, %v403
    %v405 = vand.u32 %v404, 4294901760
    %406 = vmatmul.f32.gmra.mxu0 %v405
    %v407 = vpop.f32.mrf.mxu0
    %v408 = vadd.f32 0.0, %v407
    %v409 = vand.u32 %v132, 4294901760
    %v410 = vsub.f32 %v132, %v409
    %v411 = vand.u32 %v410, 4294901760
    %v412 = vsub.f32 %v410, %v411
    %v413 = vand.u32 %v412, 4294901760
    %414 = vmatmul.f32.gmra.mxu0 %v413
    %v415 = vpop.f32.mrf.mxu0
    %v416 = vadd.f32 0.0, %v415
    %v417 = vand.u32 %v135, 4294901760
    %v418 = vsub.f32 %v135, %v417
    %v419 = vand.u32 %v418, 4294901760
    %v420 = vsub.f32 %v418, %v419
    %v421 = vand.u32 %v420, 4294901760
    %422 = vmatmul.f32.gmra.mxu0 %v421
    %v423 = vpop.f32.mrf.mxu0
    %v424 = vadd.f32 0.0, %v423
    %v425 = vand.u32 %v138, 4294901760
    %v426 = vsub.f32 %v138, %v425
    %v427 = vand.u32 %v426, 4294901760
    %v428 = vsub.f32 %v426, %v427
    %v429 = vand.u32 %v428, 4294901760
    %430 = vmatmul.f32.gmra.mxu0 %v429
    %v431 = vpop.f32.mrf.mxu0
    %v432 = vadd.f32 0.0, %v431
    %v433 = vand.u32 %v141, 4294901760
    %v434 = vsub.f32 %v141, %v433
    %v435 = vand.u32 %v434, 4294901760
    %v436 = vsub.f32 %v434, %v435
    %v437 = vand.u32 %v436, 4294901760
    %438 = vmatmul.f32.gmra.mxu0 %v437
    %v439 = vpop.f32.mrf.mxu0
    %v440 = vadd.f32 0.0, %v439
    %v441 = vand.u32 %v144, 4294901760
    %v442 = vsub.f32 %v144, %v441
    %v443 = vand.u32 %v442, 4294901760
    %v444 = vsub.f32 %v442, %v443
    %v445 = vand.u32 %v444, 4294901760
    %446 = vmatmul.f32.gmra.mxu0 %v445
    %v447 = vpop.f32.mrf.mxu0
    %v448 = vadd.f32 0.0, %v447
    %v449 = vand.u32 %v147, 4294901760
    %v450 = vsub.f32 %v147, %v449
    %v451 = vand.u32 %v450, 4294901760
    %v452 = vsub.f32 %v450, %v451
    %v453 = vand.u32 %v452, 4294901760
    %454 = vmatmul.f32.gmra.mxu0 %v453
    %v455 = vpop.f32.mrf.mxu0
    %v456 = vadd.f32 0.0, %v455
    %v457 = vand.u32 %v150, 4294901760
    %v458 = vsub.f32 %v150, %v457
    %v459 = vand.u32 %v458, 4294901760
    %v460 = vsub.f32 %v458, %v459
    %v461 = vand.u32 %v460, 4294901760
    %462 = vmatmul.f32.gmra.mxu0 %v461
    %v463 = vpop.f32.mrf.mxu0
    %v464 = vadd.f32 0.0, %v463
    %v465 = vand.u32 %v153, 4294901760
    %v466 = vsub.f32 %v153, %v465
    %v467 = vand.u32 %v466, 4294901760
    %v468 = vsub.f32 %v466, %v467
    %v469 = vand.u32 %v468, 4294901760
    %470 = vmatmul.f32.gmra.mxu0 %v469
    %v471 = vpop.f32.mrf.mxu0
    %v472 = vadd.f32 0.0, %v471
    %v473 = vand.u32 %v156, 4294901760
    %v474 = vsub.f32 %v156, %v473
    %v475 = vand.u32 %v474, 4294901760
    %v476 = vsub.f32 %v474, %v475
    %v477 = vand.u32 %v476, 4294901760
    %478 = vmatmul.f32.gmra.mxu0 %v477
    %v479 = vpop.f32.mrf.mxu0
    %v480 = vadd.f32 0.0, %v479
    %v481 = vand.u32 %v159, 4294901760
    %v482 = vsub.f32 %v159, %v481
    %v483 = vand.u32 %v482, 4294901760
    %v484 = vsub.f32 %v482, %v483
    %v485 = vand.u32 %v484, 4294901760
    %486 = vmatmul.f32.gmra.mxu0 %v485
    %v487 = vpop.f32.mrf.mxu0
    %v488 = vadd.f32 0.0, %v487
    %v489 = vand.u32 %v162, 4294901760
    %v490 = vsub.f32 %v162, %v489
    %v491 = vand.u32 %v490, 4294901760
    %v492 = vsub.f32 %v490, %v491
    %v493 = vand.u32 %v492, 4294901760
    %494 = vmatmul.f32.gmra.mxu0 %v493
    %v495 = vpop.f32.mrf.mxu0
    %v496 = vadd.f32 0.0, %v495
    %v497 = vand.u32 %v165, 4294901760
    %v498 = vsub.f32 %v165, %v497
    %v499 = vand.u32 %v498, 4294901760
    %v500 = vsub.f32 %v498, %v499
    %v501 = vand.u32 %v500, 4294901760
    %502 = vmatmul.f32.gmra.mxu0 %v501
    %v503 = vpop.f32.mrf.mxu0
    %v504 = vadd.f32 0.0, %v503
    %v505 = vand.u32 %v168, 4294901760
    %v506 = vsub.f32 %v168, %v505
    %v507 = vand.u32 %v506, 4294901760
    %v508 = vsub.f32 %v506, %v507
    %v509 = vand.u32 %v508, 4294901760
    %510 = vmatmul.f32.gmra.mxu0 %v509
    %v511 = vpop.f32.mrf.mxu0
    %v512 = vadd.f32 0.0, %v511
    %v513 = vand.u32 %v171, 4294901760
    %v514 = vsub.f32 %v171, %v513
    %v515 = vand.u32 %v514, 4294901760
    %v516 = vsub.f32 %v514, %v515
    %v517 = vand.u32 %v516, 4294901760
    %518 = vmatmul.f32.gmra.mxu0 %v517
    %v519 = vpop.f32.mrf.mxu0
    %v520 = vadd.f32 0.0, %v519
    %v521 = vand.u32 %v174, 4294901760
    %v522 = vsub.f32 %v174, %v521
    %v523 = vand.u32 %v522, 4294901760
    %v524 = vsub.f32 %v522, %v523
    %v525 = vand.u32 %v524, 4294901760
    %526 = vmatmul.f32.gmra.mxu0 %v525
    %v527 = vpop.f32.mrf.mxu0
    %v528 = vadd.f32 0.0, %v527
    %v529 = vand.u32 %v177, 4294901760
    %v530 = vsub.f32 %v177, %v529
    %v531 = vand.u32 %v530, 4294901760
    %v532 = vsub.f32 %v530, %v531
    %v533 = vand.u32 %v532, 4294901760
    %534 = vmatmul.f32.gmra.mxu0 %v533
    %v535 = vpop.f32.mrf.mxu0
    %v536 = vadd.f32 0.0, %v535
    %v537 = vand.u32 %v180, 4294901760
    %v538 = vsub.f32 %v180, %v537
    %v539 = vand.u32 %v538, 4294901760
    %v540 = vsub.f32 %v538, %v539
    %v541 = vand.u32 %v540, 4294901760
    %542 = vmatmul.f32.gmra.mxu0 %v541
    %v543 = vpop.f32.mrf.mxu0
    %v544 = vadd.f32 0.0, %v543
    %v545 = vand.u32 %v183, 4294901760
    %v546 = vsub.f32 %v183, %v545
    %v547 = vand.u32 %v546, 4294901760
    %v548 = vsub.f32 %v546, %v547
    %v549 = vand.u32 %v548, 4294901760
    %550 = vmatmul.f32.gmra.mxu0 %v549
    %v551 = vpop.f32.mrf.mxu0
    %v552 = vadd.f32 0.0, %v551
    %553 = vdwg.mxu0
    %v554 = vand.u32 %v231, 4294901760
    %v555 = vsub.f32 %v231, %v554
    %v556 = vand.u32 %v555, 4294901760
    %v557 = vsub.f32 %v555, %v556
    %v558 = vand.u32 %v557, 4294901760
    %559 = vmatpush.xpose.msra.mxu0 %v558
    %v560 = vand.u32 %v228, 4294901760
    %v561 = vsub.f32 %v228, %v560
    %v562 = vand.u32 %v561, 4294901760
    %v563 = vsub.f32 %v561, %v562
    %v564 = vand.u32 %v563, 4294901760
    %565 = vmatpush.xpose.msra.mxu0 %v564
    %v566 = vand.u32 %v225, 4294901760
    %v567 = vsub.f32 %v225, %v566
    %v568 = vand.u32 %v567, 4294901760
    %v569 = vsub.f32 %v567, %v568
    %v570 = vand.u32 %v569, 4294901760
    %571 = vmatpush.xpose.msra.mxu0 %v570
    %v572 = vand.u32 %v222, 4294901760
    %v573 = vsub.f32 %v222, %v572
    %v574 = vand.u32 %v573, 4294901760
    %v575 = vsub.f32 %v573, %v574
    %v576 = vand.u32 %v575, 4294901760
    %577 = vmatpush.xpose.msra.mxu0 %v576
    %v578 = vand.u32 %v219, 4294901760
    %v579 = vsub.f32 %v219, %v578
    %v580 = vand.u32 %v579, 4294901760
    %v581 = vsub.f32 %v579, %v580
    %v582 = vand.u32 %v581, 4294901760
    %583 = vmatpush.xpose.msra.mxu0 %v582
    %v584 = vand.u32 %v216, 4294901760
    %v585 = vsub.f32 %v216, %v584
    %v586 = vand.u32 %v585, 4294901760
    %v587 = vsub.f32 %v585, %v586
    %v588 = vand.u32 %v587, 4294901760
    %589 = vmatpush.xpose.msra.mxu0 %v588
    %v590 = vand.u32 %v213, 4294901760
    %v591 = vsub.f32 %v213, %v590
    %v592 = vand.u32 %v591, 4294901760
    %v593 = vsub.f32 %v591, %v592
    %v594 = vand.u32 %v593, 4294901760
    %595 = vmatpush.xpose.msra.mxu0 %v594
    %v596 = vand.u32 %v210, 4294901760
    %v597 = vsub.f32 %v210, %v596
    %v598 = vand.u32 %v597, 4294901760
    %v599 = vsub.f32 %v597, %v598
    %v600 = vand.u32 %v599, 4294901760
    %601 = vmatpush.xpose.msra.mxu0 %v600
    %v602 = vand.u32 %v207, 4294901760
    %v603 = vsub.f32 %v207, %v602
    %v604 = vand.u32 %v603, 4294901760
    %v605 = vsub.f32 %v603, %v604
    %v606 = vand.u32 %v605, 4294901760
    %607 = vmatpush.xpose.msra.mxu0 %v606
    %v608 = vand.u32 %v204, 4294901760
    %v609 = vsub.f32 %v204, %v608
    %v610 = vand.u32 %v609, 4294901760
    %v611 = vsub.f32 %v609, %v610
    %v612 = vand.u32 %v611, 4294901760
    %613 = vmatpush.xpose.msra.mxu0 %v612
    %v614 = vand.u32 %v201, 4294901760
    %v615 = vsub.f32 %v201, %v614
    %v616 = vand.u32 %v615, 4294901760
    %v617 = vsub.f32 %v615, %v616
    %v618 = vand.u32 %v617, 4294901760
    %619 = vmatpush.xpose.msra.mxu0 %v618
    %v620 = vand.u32 %v198, 4294901760
    %v621 = vsub.f32 %v198, %v620
    %v622 = vand.u32 %v621, 4294901760
    %v623 = vsub.f32 %v621, %v622
    %v624 = vand.u32 %v623, 4294901760
    %625 = vmatpush.xpose.msra.mxu0 %v624
    %v626 = vand.u32 %v195, 4294901760
    %v627 = vsub.f32 %v195, %v626
    %v628 = vand.u32 %v627, 4294901760
    %v629 = vsub.f32 %v627, %v628
    %v630 = vand.u32 %v629, 4294901760
    %631 = vmatpush.xpose.msra.mxu0 %v630
    %v632 = vand.u32 %v192, 4294901760
    %v633 = vsub.f32 %v192, %v632
    %v634 = vand.u32 %v633, 4294901760
    %v635 = vsub.f32 %v633, %v634
    %v636 = vand.u32 %v635, 4294901760
    %637 = vmatpush.xpose.msra.mxu0 %v636
    %v638 = vand.u32 %v189, 4294901760
    %v639 = vsub.f32 %v189, %v638
    %v640 = vand.u32 %v639, 4294901760
    %v641 = vsub.f32 %v639, %v640
    %v642 = vand.u32 %v641, 4294901760
    %643 = vmatpush.xpose.msra.mxu0 %v642
    %v644 = vand.u32 %v186, 4294901760
    %v645 = vsub.f32 %v186, %v644
    %v646 = vand.u32 %v645, 4294901760
    %v647 = vsub.f32 %v645, %v646
    %v648 = vand.u32 %v647, 4294901760
    %649 = vmatpush.xpose.msra.mxu0 %v648
    %v650 = vand.u32 %v78, 4294901760
    %651 = vmatmul.f32.gmra.mxu0 %v650
    %v652 = vpop.f32.mrf.mxu0
    %v653 = vadd.f32 %v272, %v652
    %v654 = vand.u32 %v81, 4294901760
    %655 = vmatmul.f32.gmra.mxu0 %v654
    %v656 = vpop.f32.mrf.mxu0
    %v657 = vadd.f32 %v280, %v656
    %v658 = vand.u32 %v84, 4294901760
    %659 = vmatmul.f32.gmra.mxu0 %v658
    %v660 = vpop.f32.mrf.mxu0
    %v661 = vadd.f32 %v288, %v660
    %v662 = vand.u32 %v87, 4294901760
    %663 = vmatmul.f32.gmra.mxu0 %v662
    %v664 = vpop.f32.mrf.mxu0
    %v665 = vadd.f32 %v296, %v664
    %v666 = vand.u32 %v90, 4294901760
    %667 = vmatmul.f32.gmra.mxu0 %v666
    %v668 = vpop.f32.mrf.mxu0
    %v669 = vadd.f32 %v304, %v668
    %v670 = vand.u32 %v93, 4294901760
    %671 = vmatmul.f32.gmra.mxu0 %v670
    %v672 = vpop.f32.mrf.mxu0
    %v673 = vadd.f32 %v312, %v672
    %v674 = vand.u32 %v96, 4294901760
    %675 = vmatmul.f32.gmra.mxu0 %v674
    %v676 = vpop.f32.mrf.mxu0
    %v677 = vadd.f32 %v320, %v676
    %v678 = vand.u32 %v99, 4294901760
    %679 = vmatmul.f32.gmra.mxu0 %v678
    %v680 = vpop.f32.mrf.mxu0
    %v681 = vadd.f32 %v328, %v680
    %v682 = vand.u32 %v102, 4294901760
    %683 = vmatmul.f32.gmra.mxu0 %v682
    %v684 = vpop.f32.mrf.mxu0
    %v685 = vadd.f32 %v336, %v684
    %v686 = vand.u32 %v105, 4294901760
    %687 = vmatmul.f32.gmra.mxu0 %v686
    %v688 = vpop.f32.mrf.mxu0
    %v689 = vadd.f32 %v344, %v688
    %v690 = vand.u32 %v108, 4294901760
    %691 = vmatmul.f32.gmra.mxu0 %v690
    %v692 = vpop.f32.mrf.mxu0
    %v693 = vadd.f32 %v352, %v692
    %v694 = vand.u32 %v111, 4294901760
    %695 = vmatmul.f32.gmra.mxu0 %v694
    %v696 = vpop.f32.mrf.mxu0
    %v697 = vadd.f32 %v360, %v696
    %v698 = vand.u32 %v114, 4294901760
    %699 = vmatmul.f32.gmra.mxu0 %v698
    %v700 = vpop.f32.mrf.mxu0
    %v701 = vadd.f32 %v368, %v700
    %v702 = vand.u32 %v117, 4294901760
    %703 = vmatmul.f32.gmra.mxu0 %v702
    %v704 = vpop.f32.mrf.mxu0
    %v705 = vadd.f32 %v376, %v704
    %v706 = vand.u32 %v120, 4294901760
    %707 = vmatmul.f32.gmra.mxu0 %v706
    %v708 = vpop.f32.mrf.mxu0
    %v709 = vadd.f32 %v384, %v708
    %v710 = vand.u32 %v123, 4294901760
    %711 = vmatmul.f32.gmra.mxu0 %v710
    %v712 = vpop.f32.mrf.mxu0
    %v713 = vadd.f32 %v392, %v712
    %v714 = vand.u32 %v126, 4294901760
    %715 = vmatmul.f32.gmra.mxu0 %v714
    %v716 = vpop.f32.mrf.mxu0
    %v717 = vadd.f32 %v400, %v716
    %v718 = vand.u32 %v129, 4294901760
    %719 = vmatmul.f32.gmra.mxu0 %v718
    %v720 = vpop.f32.mrf.mxu0
    %v721 = vadd.f32 %v408, %v720
    %v722 = vand.u32 %v132, 4294901760
    %723 = vmatmul.f32.gmra.mxu0 %v722
    %v724 = vpop.f32.mrf.mxu0
    %v725 = vadd.f32 %v416, %v724
    %v726 = vand.u32 %v135, 4294901760
    %727 = vmatmul.f32.gmra.mxu0 %v726
    %v728 = vpop.f32.mrf.mxu0
    %v729 = vadd.f32 %v424, %v728
    %v730 = vand.u32 %v138, 4294901760
    %731 = vmatmul.f32.gmra.mxu0 %v730
    %v732 = vpop.f32.mrf.mxu0
    %v733 = vadd.f32 %v432, %v732
    %v734 = vand.u32 %v141, 4294901760
    %735 = vmatmul.f32.gmra.mxu0 %v734
    %v736 = vpop.f32.mrf.mxu0
    %v737 = vadd.f32 %v440, %v736
    %v738 = vand.u32 %v144, 4294901760
    %739 = vmatmul.f32.gmra.mxu0 %v738
    %v740 = vpop.f32.mrf.mxu0
    %v741 = vadd.f32 %v448, %v740
    %v742 = vand.u32 %v147, 4294901760
    %743 = vmatmul.f32.gmra.mxu0 %v742
    %v744 = vpop.f32.mrf.mxu0
    %v745 = vadd.f32 %v456, %v744
    %v746 = vand.u32 %v150, 4294901760
    %747 = vmatmul.f32.gmra.mxu0 %v746
    %v748 = vpop.f32.mrf.mxu0
    %v749 = vadd.f32 %v464, %v748
    %v750 = vand.u32 %v153, 4294901760
    %751 = vmatmul.f32.gmra.mxu0 %v750
    %v752 = vpop.f32.mrf.mxu0
    %v753 = vadd.f32 %v472, %v752
    %v754 = vand.u32 %v156, 4294901760
    %755 = vmatmul.f32.gmra.mxu0 %v754
    %v756 = vpop.f32.mrf.mxu0
    %v757 = vadd.f32 %v480, %v756
    %v758 = vand.u32 %v159, 4294901760
    %759 = vmatmul.f32.gmra.mxu0 %v758
    %v760 = vpop.f32.mrf.mxu0
    %v761 = vadd.f32 %v488, %v760
    %v762 = vand.u32 %v162, 4294901760
    %763 = vmatmul.f32.gmra.mxu0 %v762
    %v764 = vpop.f32.mrf.mxu0
    %v765 = vadd.f32 %v496, %v764
    %v766 = vand.u32 %v165, 4294901760
    %767 = vmatmul.f32.gmra.mxu0 %v766
    %v768 = vpop.f32.mrf.mxu0
    %v769 = vadd.f32 %v504, %v768
    %v770 = vand.u32 %v168, 4294901760
    %771 = vmatmul.f32.gmra.mxu0 %v770
    %v772 = vpop.f32.mrf.mxu0
    %v773 = vadd.f32 %v512, %v772
    %v774 = vand.u32 %v171, 4294901760
    %775 = vmatmul.f32.gmra.mxu0 %v774
    %v776 = vpop.f32.mrf.mxu0
    %v777 = vadd.f32 %v520, %v776
    %v778 = vand.u32 %v174, 4294901760
    %779 = vmatmul.f32.gmra.mxu0 %v778
    %v780 = vpop.f32.mrf.mxu0
    %v781 = vadd.f32 %v528, %v780
    %v782 = vand.u32 %v177, 4294901760
    %783 = vmatmul.f32.gmra.mxu0 %v782
    %v784 = vpop.f32.mrf.mxu0
    %v785 = vadd.f32 %v536, %v784
    %v786 = vand.u32 %v180, 4294901760
    %787 = vmatmul.f32.gmra.mxu0 %v786
    %v788 = vpop.f32.mrf.mxu0
    %v789 = vadd.f32 %v544, %v788
    %v790 = vand.u32 %v183, 4294901760
    %791 = vmatmul.f32.gmra.mxu0 %v790
    %v792 = vpop.f32.mrf.mxu0
    %v793 = vadd.f32 %v552, %v792
    %794 = vdwg.mxu0
    %v795 = vand.u32 %v231, 4294901760
    %v796 = vsub.f32 %v231, %v795
    %797 = vmatpush.xpose.msra.mxu0 %v796
    %v798 = vand.u32 %v228, 4294901760
    %v799 = vsub.f32 %v228, %v798
    %800 = vmatpush.xpose.msra.mxu0 %v799
    %v801 = vand.u32 %v225, 4294901760
    %v802 = vsub.f32 %v225, %v801
    %803 = vmatpush.xpose.msra.mxu0 %v802
    %v804 = vand.u32 %v222, 4294901760
    %v805 = vsub.f32 %v222, %v804
    %806 = vmatpush.xpose.msra.mxu0 %v805
    %v807 = vand.u32 %v219, 4294901760
    %v808 = vsub.f32 %v219, %v807
    %809 = vmatpush.xpose.msra.mxu0 %v808
    %v810 = vand.u32 %v216, 4294901760
    %v811 = vsub.f32 %v216, %v810
    %812 = vmatpush.xpose.msra.mxu0 %v811
    %v813 = vand.u32 %v213, 4294901760
    %v814 = vsub.f32 %v213, %v813
    %815 = vmatpush.xpose.msra.mxu0 %v814
    %v816 = vand.u32 %v210, 4294901760
    %v817 = vsub.f32 %v210, %v816
    %818 = vmatpush.xpose.msra.mxu0 %v817
    %v819 = vand.u32 %v207, 4294901760
    %v820 = vsub.f32 %v207, %v819
    %821 = vmatpush.xpose.msra.mxu0 %v820
    %v822 = vand.u32 %v204, 4294901760
    %v823 = vsub.f32 %v204, %v822
    %824 = vmatpush.xpose.msra.mxu0 %v823
    %v825 = vand.u32 %v201, 4294901760
    %v826 = vsub.f32 %v201, %v825
    %827 = vmatpush.xpose.msra.mxu0 %v826
    %v828 = vand.u32 %v198, 4294901760
    %v829 = vsub.f32 %v198, %v828
    %830 = vmatpush.xpose.msra.mxu0 %v829
    %v831 = vand.u32 %v195, 4294901760
    %v832 = vsub.f32 %v195, %v831
    %833 = vmatpush.xpose.msra.mxu0 %v832
    %v834 = vand.u32 %v192, 4294901760
    %v835 = vsub.f32 %v192, %v834
    %836 = vmatpush.xpose.msra.mxu0 %v835
    %v837 = vand.u32 %v189, 4294901760
    %v838 = vsub.f32 %v189, %v837
    %839 = vmatpush.xpose.msra.mxu0 %v838
    %v840 = vand.u32 %v186, 4294901760
    %v841 = vsub.f32 %v186, %v840
    %842 = vmatpush.xpose.msra.mxu0 %v841
    %v843 = vand.u32 %v78, 4294901760
    %v844 = vsub.f32 %v78, %v843
    %845 = vmatmul.f32.gmra.mxu0 %v844
    %v846 = vpop.f32.mrf.mxu0
    %v847 = vadd.f32 %v653, %v846
    %v848 = vand.u32 %v81, 4294901760
    %v849 = vsub.f32 %v81, %v848
    %850 = vmatmul.f32.gmra.mxu0 %v849
    %v851 = vpop.f32.mrf.mxu0
    %v852 = vadd.f32 %v657, %v851
    %v853 = vand.u32 %v84, 4294901760
    %v854 = vsub.f32 %v84, %v853
    %855 = vmatmul.f32.gmra.mxu0 %v854
    %v856 = vpop.f32.mrf.mxu0
    %v857 = vadd.f32 %v661, %v856
    %v858 = vand.u32 %v87, 4294901760
    %v859 = vsub.f32 %v87, %v858
    %860 = vmatmul.f32.gmra.mxu0 %v859
    %v861 = vpop.f32.mrf.mxu0
    %v862 = vadd.f32 %v665, %v861
    %v863 = vand.u32 %v90, 4294901760
    %v864 = vsub.f32 %v90, %v863
    %865 = vmatmul.f32.gmra.mxu0 %v864
    %v866 = vpop.f32.mrf.mxu0
    %v867 = vadd.f32 %v669, %v866
    %v868 = vand.u32 %v93, 4294901760
    %v869 = vsub.f32 %v93, %v868
    %870 = vmatmul.f32.gmra.mxu0 %v869
    %v871 = vpop.f32.mrf.mxu0
    %v872 = vadd.f32 %v673, %v871
    %v873 = vand.u32 %v96, 4294901760
    %v874 = vsub.f32 %v96, %v873
    %875 = vmatmul.f32.gmra.mxu0 %v874
    %v876 = vpop.f32.mrf.mxu0
    %v877 = vadd.f32 %v677, %v876
    %v878 = vand.u32 %v99, 4294901760
    %v879 = vsub.f32 %v99, %v878
    %880 = vmatmul.f32.gmra.mxu0 %v879
    %v881 = vpop.f32.mrf.mxu0
    %v882 = vadd.f32 %v681, %v881
    %v883 = vand.u32 %v102, 4294901760
    %v884 = vsub.f32 %v102, %v883
    %885 = vmatmul.f32.gmra.mxu0 %v884
    %v886 = vpop.f32.mrf.mxu0
    %v887 = vadd.f32 %v685, %v886
    %v888 = vand.u32 %v105, 4294901760
    %v889 = vsub.f32 %v105, %v888
    %890 = vmatmul.f32.gmra.mxu0 %v889
    %v891 = vpop.f32.mrf.mxu0
    %v892 = vadd.f32 %v689, %v891
    %v893 = vand.u32 %v108, 4294901760
    %v894 = vsub.f32 %v108, %v893
    %895 = vmatmul.f32.gmra.mxu0 %v894
    %v896 = vpop.f32.mrf.mxu0
    %v897 = vadd.f32 %v693, %v896
    %v898 = vand.u32 %v111, 4294901760
    %v899 = vsub.f32 %v111, %v898
    %900 = vmatmul.f32.gmra.mxu0 %v899
    %v901 = vpop.f32.mrf.mxu0
    %v902 = vadd.f32 %v697, %v901
    %v903 = vand.u32 %v114, 4294901760
    %v904 = vsub.f32 %v114, %v903
    %905 = vmatmul.f32.gmra.mxu0 %v904
    %v906 = vpop.f32.mrf.mxu0
    %v907 = vadd.f32 %v701, %v906
    %v908 = vand.u32 %v117, 4294901760
    %v909 = vsub.f32 %v117, %v908
    %910 = vmatmul.f32.gmra.mxu0 %v909
    %v911 = vpop.f32.mrf.mxu0
    %v912 = vadd.f32 %v705, %v911
    %v913 = vand.u32 %v120, 4294901760
    %v914 = vsub.f32 %v120, %v913
    %915 = vmatmul.f32.gmra.mxu0 %v914
    %v916 = vpop.f32.mrf.mxu0
    %v917 = vadd.f32 %v709, %v916
    %v918 = vand.u32 %v123, 4294901760
    %v919 = vsub.f32 %v123, %v918
    %920 = vmatmul.f32.gmra.mxu0 %v919
    %v921 = vpop.f32.mrf.mxu0
    %v922 = vadd.f32 %v713, %v921
    %v923 = vand.u32 %v126, 4294901760
    %v924 = vsub.f32 %v126, %v923
    %925 = vmatmul.f32.gmra.mxu0 %v924
    %v926 = vpop.f32.mrf.mxu0
    %v927 = vadd.f32 %v717, %v926
    %v928 = vand.u32 %v129, 4294901760
    %v929 = vsub.f32 %v129, %v928
    %930 = vmatmul.f32.gmra.mxu0 %v929
    %v931 = vpop.f32.mrf.mxu0
    %v932 = vadd.f32 %v721, %v931
    %v933 = vand.u32 %v132, 4294901760
    %v934 = vsub.f32 %v132, %v933
    %935 = vmatmul.f32.gmra.mxu0 %v934
    %v936 = vpop.f32.mrf.mxu0
    %v937 = vadd.f32 %v725, %v936
    %v938 = vand.u32 %v135, 4294901760
    %v939 = vsub.f32 %v135, %v938
    %940 = vmatmul.f32.gmra.mxu0 %v939
    %v941 = vpop.f32.mrf.mxu0
    %v942 = vadd.f32 %v729, %v941
    %v943 = vand.u32 %v138, 4294901760
    %v944 = vsub.f32 %v138, %v943
    %945 = vmatmul.f32.gmra.mxu0 %v944
    %v946 = vpop.f32.mrf.mxu0
    %v947 = vadd.f32 %v733, %v946
    %v948 = vand.u32 %v141, 4294901760
    %v949 = vsub.f32 %v141, %v948
    %950 = vmatmul.f32.gmra.mxu0 %v949
    %v951 = vpop.f32.mrf.mxu0
    %v952 = vadd.f32 %v737, %v951
    %v953 = vand.u32 %v144, 4294901760
    %v954 = vsub.f32 %v144, %v953
    %955 = vmatmul.f32.gmra.mxu0 %v954
    %v956 = vpop.f32.mrf.mxu0
    %v957 = vadd.f32 %v741, %v956
    %v958 = vand.u32 %v147, 4294901760
    %v959 = vsub.f32 %v147, %v958
    %960 = vmatmul.f32.gmra.mxu0 %v959
    %v961 = vpop.f32.mrf.mxu0
    %v962 = vadd.f32 %v745, %v961
    %v963 = vand.u32 %v150, 4294901760
    %v964 = vsub.f32 %v150, %v963
    %965 = vmatmul.f32.gmra.mxu0 %v964
    %v966 = vpop.f32.mrf.mxu0
    %v967 = vadd.f32 %v749, %v966
    %v968 = vand.u32 %v153, 4294901760
    %v969 = vsub.f32 %v153, %v968
    %970 = vmatmul.f32.gmra.mxu0 %v969
    %v971 = vpop.f32.mrf.mxu0
    %v972 = vadd.f32 %v753, %v971
    %v973 = vand.u32 %v156, 4294901760
    %v974 = vsub.f32 %v156, %v973
    %975 = vmatmul.f32.gmra.mxu0 %v974
    %v976 = vpop.f32.mrf.mxu0
    %v977 = vadd.f32 %v757, %v976
    %v978 = vand.u32 %v159, 4294901760
    %v979 = vsub.f32 %v159, %v978
    %980 = vmatmul.f32.gmra.mxu0 %v979
    %v981 = vpop.f32.mrf.mxu0
    %v982 = vadd.f32 %v761, %v981
    %v983 = vand.u32 %v162, 4294901760
    %v984 = vsub.f32 %v162, %v983
    %985 = vmatmul.f32.gmra.mxu0 %v984
    %v986 = vpop.f32.mrf.mxu0
    %v987 = vadd.f32 %v765, %v986
    %v988 = vand.u32 %v165, 4294901760
    %v989 = vsub.f32 %v165, %v988
    %990 = vmatmul.f32.gmra.mxu0 %v989
    %v991 = vpop.f32.mrf.mxu0
    %v992 = vadd.f32 %v769, %v991
    %v993 = vand.u32 %v168, 4294901760
    %v994 = vsub.f32 %v168, %v993
    %995 = vmatmul.f32.gmra.mxu0 %v994
    %v996 = vpop.f32.mrf.mxu0
    %v997 = vadd.f32 %v773, %v996
    %v998 = vand.u32 %v171, 4294901760
    %v999 = vsub.f32 %v171, %v998
    %1000 = vmatmul.f32.gmra.mxu0 %v999
    %v1001 = vpop.f32.mrf.mxu0
    %v1002 = vadd.f32 %v777, %v1001
    %v1003 = vand.u32 %v174, 4294901760
    %v1004 = vsub.f32 %v174, %v1003
    %1005 = vmatmul.f32.gmra.mxu0 %v1004
    %v1006 = vpop.f32.mrf.mxu0
    %v1007 = vadd.f32 %v781, %v1006
    %v1008 = vand.u32 %v177, 4294901760
    %v1009 = vsub.f32 %v177, %v1008
    %1010 = vmatmul.f32.gmra.mxu0 %v1009
    %v1011 = vpop.f32.mrf.mxu0
    %v1012 = vadd.f32 %v785, %v1011
    %v1013 = vand.u32 %v180, 4294901760
    %v1014 = vsub.f32 %v180, %v1013
    %1015 = vmatmul.f32.gmra.mxu0 %v1014
    %v1016 = vpop.f32.mrf.mxu0
    %v1017 = vadd.f32 %v789, %v1016
    %v1018 = vand.u32 %v183, 4294901760
    %v1019 = vsub.f32 %v183, %v1018
    %1020 = vmatmul.f32.gmra.mxu0 %v1019
    %v1021 = vpop.f32.mrf.mxu0
    %v1022 = vadd.f32 %v793, %v1021
    %1023 = vdwg.mxu0
    %v1024 = vand.u32 %v231, 4294901760
    %1025 = vmatpush.xpose.msra.mxu0 %v1024
    %v1026 = vand.u32 %v228, 4294901760
    %1027 = vmatpush.xpose.msra.mxu0 %v1026
    %v1028 = vand.u32 %v225, 4294901760
    %1029 = vmatpush.xpose.msra.mxu0 %v1028
    %v1030 = vand.u32 %v222, 4294901760
    %1031 = vmatpush.xpose.msra.mxu0 %v1030
    %v1032 = vand.u32 %v219, 4294901760
    %1033 = vmatpush.xpose.msra.mxu0 %v1032
    %v1034 = vand.u32 %v216, 4294901760
    %1035 = vmatpush.xpose.msra.mxu0 %v1034
    %v1036 = vand.u32 %v213, 4294901760
    %1037 = vmatpush.xpose.msra.mxu0 %v1036
    %v1038 = vand.u32 %v210, 4294901760
    %1039 = vmatpush.xpose.msra.mxu0 %v1038
    %v1040 = vand.u32 %v207, 4294901760
    %1041 = vmatpush.xpose.msra.mxu0 %v1040
    %v1042 = vand.u32 %v204, 4294901760
    %1043 = vmatpush.xpose.msra.mxu0 %v1042
    %v1044 = vand.u32 %v201, 4294901760
    %1045 = vmatpush.xpose.msra.mxu0 %v1044
    %v1046 = vand.u32 %v198, 4294901760
    %1047 = vmatpush.xpose.msra.mxu0 %v1046
    %v1048 = vand.u32 %v195, 4294901760
    %1049 = vmatpush.xpose.msra.mxu0 %v1048
    %v1050 = vand.u32 %v192, 4294901760
    %1051 = vmatpush.xpose.msra.mxu0 %v1050
    %v1052 = vand.u32 %v189, 4294901760
    %1053 = vmatpush.xpose.msra.mxu0 %v1052
    %v1054 = vand.u32 %v186, 4294901760
    %1055 = vmatpush.xpose.msra.mxu0 %v1054
    %v1056 = vand.u32 %v78, 4294901760
    %v1057 = vsub.f32 %v78, %v1056
    %v1058 = vand.u32 %v1057, 4294901760
    %1059 = vmatmul.f32.gmra.mxu0 %v1058
    %v1060 = vpop.f32.mrf.mxu0
    %v1061 = vadd.f32 %v847, %v1060
    %v1062 = vand.u32 %v81, 4294901760
    %v1063 = vsub.f32 %v81, %v1062
    %v1064 = vand.u32 %v1063, 4294901760
    %1065 = vmatmul.f32.gmra.mxu0 %v1064
    %v1066 = vpop.f32.mrf.mxu0
    %v1067 = vadd.f32 %v852, %v1066
    %v1068 = vand.u32 %v84, 4294901760
    %v1069 = vsub.f32 %v84, %v1068
    %v1070 = vand.u32 %v1069, 4294901760
    %1071 = vmatmul.f32.gmra.mxu0 %v1070
    %v1072 = vpop.f32.mrf.mxu0
    %v1073 = vadd.f32 %v857, %v1072
    %v1074 = vand.u32 %v87, 4294901760
    %v1075 = vsub.f32 %v87, %v1074
    %v1076 = vand.u32 %v1075, 4294901760
    %1077 = vmatmul.f32.gmra.mxu0 %v1076
    %v1078 = vpop.f32.mrf.mxu0
    %v1079 = vadd.f32 %v862, %v1078
    %v1080 = vand.u32 %v90, 4294901760
    %v1081 = vsub.f32 %v90, %v1080
    %v1082 = vand.u32 %v1081, 4294901760
    %1083 = vmatmul.f32.gmra.mxu0 %v1082
    %v1084 = vpop.f32.mrf.mxu0
    %v1085 = vadd.f32 %v867, %v1084
    %v1086 = vand.u32 %v93, 4294901760
    %v1087 = vsub.f32 %v93, %v1086
    %v1088 = vand.u32 %v1087, 4294901760
    %1089 = vmatmul.f32.gmra.mxu0 %v1088
    %v1090 = vpop.f32.mrf.mxu0
    %v1091 = vadd.f32 %v872, %v1090
    %v1092 = vand.u32 %v96, 4294901760
    %v1093 = vsub.f32 %v96, %v1092
    %v1094 = vand.u32 %v1093, 4294901760
    %1095 = vmatmul.f32.gmra.mxu0 %v1094
    %v1096 = vpop.f32.mrf.mxu0
    %v1097 = vadd.f32 %v877, %v1096
    %v1098 = vand.u32 %v99, 4294901760
    %v1099 = vsub.f32 %v99, %v1098
    %v1100 = vand.u32 %v1099, 4294901760
    %1101 = vmatmul.f32.gmra.mxu0 %v1100
    %v1102 = vpop.f32.mrf.mxu0
    %v1103 = vadd.f32 %v882, %v1102
    %v1104 = vand.u32 %v102, 4294901760
    %v1105 = vsub.f32 %v102, %v1104
    %v1106 = vand.u32 %v1105, 4294901760
    %1107 = vmatmul.f32.gmra.mxu0 %v1106
    %v1108 = vpop.f32.mrf.mxu0
    %v1109 = vadd.f32 %v887, %v1108
    %v1110 = vand.u32 %v105, 4294901760
    %v1111 = vsub.f32 %v105, %v1110
    %v1112 = vand.u32 %v1111, 4294901760
    %1113 = vmatmul.f32.gmra.mxu0 %v1112
    %v1114 = vpop.f32.mrf.mxu0
    %v1115 = vadd.f32 %v892, %v1114
    %v1116 = vand.u32 %v108, 4294901760
    %v1117 = vsub.f32 %v108, %v1116
    %v1118 = vand.u32 %v1117, 4294901760
    %1119 = vmatmul.f32.gmra.mxu0 %v1118
    %v1120 = vpop.f32.mrf.mxu0
    %v1121 = vadd.f32 %v897, %v1120
    %v1122 = vand.u32 %v111, 4294901760
    %v1123 = vsub.f32 %v111, %v1122
    %v1124 = vand.u32 %v1123, 4294901760
    %1125 = vmatmul.f32.gmra.mxu0 %v1124
    %v1126 = vpop.f32.mrf.mxu0
    %v1127 = vadd.f32 %v902, %v1126
    %v1128 = vand.u32 %v114, 4294901760
    %v1129 = vsub.f32 %v114, %v1128
    %v1130 = vand.u32 %v1129, 4294901760
    %1131 = vmatmul.f32.gmra.mxu0 %v1130
    %v1132 = vpop.f32.mrf.mxu0
    %v1133 = vadd.f32 %v907, %v1132
    %v1134 = vand.u32 %v117, 4294901760
    %v1135 = vsub.f32 %v117, %v1134
    %v1136 = vand.u32 %v1135, 4294901760
    %1137 = vmatmul.f32.gmra.mxu0 %v1136
    %v1138 = vpop.f32.mrf.mxu0
    %v1139 = vadd.f32 %v912, %v1138
    %v1140 = vand.u32 %v120, 4294901760
    %v1141 = vsub.f32 %v120, %v1140
    %v1142 = vand.u32 %v1141, 4294901760
    %1143 = vmatmul.f32.gmra.mxu0 %v1142
    %v1144 = vpop.f32.mrf.mxu0
    %v1145 = vadd.f32 %v917, %v1144
    %v1146 = vand.u32 %v123, 4294901760
    %v1147 = vsub.f32 %v123, %v1146
    %v1148 = vand.u32 %v1147, 4294901760
    %1149 = vmatmul.f32.gmra.mxu0 %v1148
    %v1150 = vpop.f32.mrf.mxu0
    %v1151 = vadd.f32 %v922, %v1150
    %v1152 = vand.u32 %v126, 4294901760
    %v1153 = vsub.f32 %v126, %v1152
    %v1154 = vand.u32 %v1153, 4294901760
    %1155 = vmatmul.f32.gmra.mxu0 %v1154
    %v1156 = vpop.f32.mrf.mxu0
    %v1157 = vadd.f32 %v927, %v1156
    %v1158 = vand.u32 %v129, 4294901760
    %v1159 = vsub.f32 %v129, %v1158
    %v1160 = vand.u32 %v1159, 4294901760
    %1161 = vmatmul.f32.gmra.mxu0 %v1160
    %v1162 = vpop.f32.mrf.mxu0
    %v1163 = vadd.f32 %v932, %v1162
    %v1164 = vand.u32 %v132, 4294901760
    %v1165 = vsub.f32 %v132, %v1164
    %v1166 = vand.u32 %v1165, 4294901760
    %1167 = vmatmul.f32.gmra.mxu0 %v1166
    %v1168 = vpop.f32.mrf.mxu0
    %v1169 = vadd.f32 %v937, %v1168
    %v1170 = vand.u32 %v135, 4294901760
    %v1171 = vsub.f32 %v135, %v1170
    %v1172 = vand.u32 %v1171, 4294901760
    %1173 = vmatmul.f32.gmra.mxu0 %v1172
    %v1174 = vpop.f32.mrf.mxu0
    %v1175 = vadd.f32 %v942, %v1174
    %v1176 = vand.u32 %v138, 4294901760
    %v1177 = vsub.f32 %v138, %v1176
    %v1178 = vand.u32 %v1177, 4294901760
    %1179 = vmatmul.f32.gmra.mxu0 %v1178
    %v1180 = vpop.f32.mrf.mxu0
    %v1181 = vadd.f32 %v947, %v1180
    %v1182 = vand.u32 %v141, 4294901760
    %v1183 = vsub.f32 %v141, %v1182
    %v1184 = vand.u32 %v1183, 4294901760
    %1185 = vmatmul.f32.gmra.mxu0 %v1184
    %v1186 = vpop.f32.mrf.mxu0
    %v1187 = vadd.f32 %v952, %v1186
    %v1188 = vand.u32 %v144, 4294901760
    %v1189 = vsub.f32 %v144, %v1188
    %v1190 = vand.u32 %v1189, 4294901760
    %1191 = vmatmul.f32.gmra.mxu0 %v1190
    %v1192 = vpop.f32.mrf.mxu0
    %v1193 = vadd.f32 %v957, %v1192
    %v1194 = vand.u32 %v147, 4294901760
    %v1195 = vsub.f32 %v147, %v1194
    %v1196 = vand.u32 %v1195, 4294901760
    %1197 = vmatmul.f32.gmra.mxu0 %v1196
    %v1198 = vpop.f32.mrf.mxu0
    %v1199 = vadd.f32 %v962, %v1198
    %v1200 = vand.u32 %v150, 4294901760
    %v1201 = vsub.f32 %v150, %v1200
    %v1202 = vand.u32 %v1201, 4294901760
    %1203 = vmatmul.f32.gmra.mxu0 %v1202
    %v1204 = vpop.f32.mrf.mxu0
    %v1205 = vadd.f32 %v967, %v1204
    %v1206 = vand.u32 %v153, 4294901760
    %v1207 = vsub.f32 %v153, %v1206
    %v1208 = vand.u32 %v1207, 4294901760
    %1209 = vmatmul.f32.gmra.mxu0 %v1208
    %v1210 = vpop.f32.mrf.mxu0
    %v1211 = vadd.f32 %v972, %v1210
    %v1212 = vand.u32 %v156, 4294901760
    %v1213 = vsub.f32 %v156, %v1212
    %v1214 = vand.u32 %v1213, 4294901760
    %1215 = vmatmul.f32.gmra.mxu0 %v1214
    %v1216 = vpop.f32.mrf.mxu0
    %v1217 = vadd.f32 %v977, %v1216
    %v1218 = vand.u32 %v159, 4294901760
    %v1219 = vsub.f32 %v159, %v1218
    %v1220 = vand.u32 %v1219, 4294901760
    %1221 = vmatmul.f32.gmra.mxu0 %v1220
    %v1222 = vpop.f32.mrf.mxu0
    %v1223 = vadd.f32 %v982, %v1222
    %v1224 = vand.u32 %v162, 4294901760
    %v1225 = vsub.f32 %v162, %v1224
    %v1226 = vand.u32 %v1225, 4294901760
    %1227 = vmatmul.f32.gmra.mxu0 %v1226
    %v1228 = vpop.f32.mrf.mxu0
    %v1229 = vadd.f32 %v987, %v1228
    %v1230 = vand.u32 %v165, 4294901760
    %v1231 = vsub.f32 %v165, %v1230
    %v1232 = vand.u32 %v1231, 4294901760
    %1233 = vmatmul.f32.gmra.mxu0 %v1232
    %v1234 = vpop.f32.mrf.mxu0
    %v1235 = vadd.f32 %v992, %v1234
    %v1236 = vand.u32 %v168, 4294901760
    %v1237 = vsub.f32 %v168, %v1236
    %v1238 = vand.u32 %v1237, 4294901760
    %1239 = vmatmul.f32.gmra.mxu0 %v1238
    %v1240 = vpop.f32.mrf.mxu0
    %v1241 = vadd.f32 %v997, %v1240
    %v1242 = vand.u32 %v171, 4294901760
    %v1243 = vsub.f32 %v171, %v1242
    %v1244 = vand.u32 %v1243, 4294901760
    %1245 = vmatmul.f32.gmra.mxu0 %v1244
    %v1246 = vpop.f32.mrf.mxu0
    %v1247 = vadd.f32 %v1002, %v1246
    %v1248 = vand.u32 %v174, 4294901760
    %v1249 = vsub.f32 %v174, %v1248
    %v1250 = vand.u32 %v1249, 4294901760
    %1251 = vmatmul.f32.gmra.mxu0 %v1250
    %v1252 = vpop.f32.mrf.mxu0
    %v1253 = vadd.f32 %v1007, %v1252
    %v1254 = vand.u32 %v177, 4294901760
    %v1255 = vsub.f32 %v177, %v1254
    %v1256 = vand.u32 %v1255, 4294901760
    %1257 = vmatmul.f32.gmra.mxu0 %v1256
    %v1258 = vpop.f32.mrf.mxu0
    %v1259 = vadd.f32 %v1012, %v1258
    %v1260 = vand.u32 %v180, 4294901760
    %v1261 = vsub.f32 %v180, %v1260
    %v1262 = vand.u32 %v1261, 4294901760
    %1263 = vmatmul.f32.gmra.mxu0 %v1262
    %v1264 = vpop.f32.mrf.mxu0
    %v1265 = vadd.f32 %v1017, %v1264
    %v1266 = vand.u32 %v183, 4294901760
    %v1267 = vsub.f32 %v183, %v1266
    %v1268 = vand.u32 %v1267, 4294901760
    %1269 = vmatmul.f32.gmra.mxu0 %v1268
    %v1270 = vpop.f32.mrf.mxu0
    %v1271 = vadd.f32 %v1022, %v1270
    %1272 = vdwg.mxu0
    %v1273 = vand.u32 %v231, 4294901760
    %v1274 = vsub.f32 %v231, %v1273
    %v1275 = vand.u32 %v1274, 4294901760
    %1276 = vmatpush.xpose.msra.mxu0 %v1275
    %v1277 = vand.u32 %v228, 4294901760
    %v1278 = vsub.f32 %v228, %v1277
    %v1279 = vand.u32 %v1278, 4294901760
    %1280 = vmatpush.xpose.msra.mxu0 %v1279
    %v1281 = vand.u32 %v225, 4294901760
    %v1282 = vsub.f32 %v225, %v1281
    %v1283 = vand.u32 %v1282, 4294901760
    %1284 = vmatpush.xpose.msra.mxu0 %v1283
    %v1285 = vand.u32 %v222, 4294901760
    %v1286 = vsub.f32 %v222, %v1285
    %v1287 = vand.u32 %v1286, 4294901760
    %1288 = vmatpush.xpose.msra.mxu0 %v1287
    %v1289 = vand.u32 %v219, 4294901760
    %v1290 = vsub.f32 %v219, %v1289
    %v1291 = vand.u32 %v1290, 4294901760
    %1292 = vmatpush.xpose.msra.mxu0 %v1291
    %v1293 = vand.u32 %v216, 4294901760
    %v1294 = vsub.f32 %v216, %v1293
    %v1295 = vand.u32 %v1294, 4294901760
    %1296 = vmatpush.xpose.msra.mxu0 %v1295
    %v1297 = vand.u32 %v213, 4294901760
    %v1298 = vsub.f32 %v213, %v1297
    %v1299 = vand.u32 %v1298, 4294901760
    %1300 = vmatpush.xpose.msra.mxu0 %v1299
    %v1301 = vand.u32 %v210, 4294901760
    %v1302 = vsub.f32 %v210, %v1301
    %v1303 = vand.u32 %v1302, 4294901760
    %1304 = vmatpush.xpose.msra.mxu0 %v1303
    %v1305 = vand.u32 %v207, 4294901760
    %v1306 = vsub.f32 %v207, %v1305
    %v1307 = vand.u32 %v1306, 4294901760
    %1308 = vmatpush.xpose.msra.mxu0 %v1307
    %v1309 = vand.u32 %v204, 4294901760
    %v1310 = vsub.f32 %v204, %v1309
    %v1311 = vand.u32 %v1310, 4294901760
    %1312 = vmatpush.xpose.msra.mxu0 %v1311
    %v1313 = vand.u32 %v201, 4294901760
    %v1314 = vsub.f32 %v201, %v1313
    %v1315 = vand.u32 %v1314, 4294901760
    %1316 = vmatpush.xpose.msra.mxu0 %v1315
    %v1317 = vand.u32 %v198, 4294901760
    %v1318 = vsub.f32 %v198, %v1317
    %v1319 = vand.u32 %v1318, 4294901760
    %1320 = vmatpush.xpose.msra.mxu0 %v1319
    %v1321 = vand.u32 %v195, 4294901760
    %v1322 = vsub.f32 %v195, %v1321
    %v1323 = vand.u32 %v1322, 4294901760
    %1324 = vmatpush.xpose.msra.mxu0 %v1323
    %v1325 = vand.u32 %v192, 4294901760
    %v1326 = vsub.f32 %v192, %v1325
    %v1327 = vand.u32 %v1326, 4294901760
    %1328 = vmatpush.xpose.msra.mxu0 %v1327
    %v1329 = vand.u32 %v189, 4294901760
    %v1330 = vsub.f32 %v189, %v1329
    %v1331 = vand.u32 %v1330, 4294901760
    %1332 = vmatpush.xpose.msra.mxu0 %v1331
    %v1333 = vand.u32 %v186, 4294901760
    %v1334 = vsub.f32 %v186, %v1333
    %v1335 = vand.u32 %v1334, 4294901760
    %1336 = vmatpush.xpose.msra.mxu0 %v1335
    %v1337 = vand.u32 %v78, 4294901760
    %1338 = vmatmul.f32.gmra.mxu0 %v1337
    %v1339 = vpop.f32.mrf.mxu0
    %v1340 = vadd.f32 %v1061, %v1339
    %v1341 = vand.u32 %v81, 4294901760
    %1342 = vmatmul.f32.gmra.mxu0 %v1341
    %v1343 = vpop.f32.mrf.mxu0
    %v1344 = vadd.f32 %v1067, %v1343
    %v1345 = vand.u32 %v84, 4294901760
    %1346 = vmatmul.f32.gmra.mxu0 %v1345
    %v1347 = vpop.f32.mrf.mxu0
    %v1348 = vadd.f32 %v1073, %v1347
    %v1349 = vand.u32 %v87, 4294901760
    %1350 = vmatmul.f32.gmra.mxu0 %v1349
    %v1351 = vpop.f32.mrf.mxu0
    %v1352 = vadd.f32 %v1079, %v1351
    %v1353 = vand.u32 %v90, 4294901760
    %1354 = vmatmul.f32.gmra.mxu0 %v1353
    %v1355 = vpop.f32.mrf.mxu0
    %v1356 = vadd.f32 %v1085, %v1355
    %v1357 = vand.u32 %v93, 4294901760
    %1358 = vmatmul.f32.gmra.mxu0 %v1357
    %v1359 = vpop.f32.mrf.mxu0
    %v1360 = vadd.f32 %v1091, %v1359
    %v1361 = vand.u32 %v96, 4294901760
    %1362 = vmatmul.f32.gmra.mxu0 %v1361
    %v1363 = vpop.f32.mrf.mxu0
    %v1364 = vadd.f32 %v1097, %v1363
    %v1365 = vand.u32 %v99, 4294901760
    %1366 = vmatmul.f32.gmra.mxu0 %v1365
    %v1367 = vpop.f32.mrf.mxu0
    %v1368 = vadd.f32 %v1103, %v1367
    %v1369 = vand.u32 %v102, 4294901760
    %1370 = vmatmul.f32.gmra.mxu0 %v1369
    %v1371 = vpop.f32.mrf.mxu0
    %v1372 = vadd.f32 %v1109, %v1371
    %v1373 = vand.u32 %v105, 4294901760
    %1374 = vmatmul.f32.gmra.mxu0 %v1373
    %v1375 = vpop.f32.mrf.mxu0
    %v1376 = vadd.f32 %v1115, %v1375
    %v1377 = vand.u32 %v108, 4294901760
    %1378 = vmatmul.f32.gmra.mxu0 %v1377
    %v1379 = vpop.f32.mrf.mxu0
    %v1380 = vadd.f32 %v1121, %v1379
    %v1381 = vand.u32 %v111, 4294901760
    %1382 = vmatmul.f32.gmra.mxu0 %v1381
    %v1383 = vpop.f32.mrf.mxu0
    %v1384 = vadd.f32 %v1127, %v1383
    %v1385 = vand.u32 %v114, 4294901760
    %1386 = vmatmul.f32.gmra.mxu0 %v1385
    %v1387 = vpop.f32.mrf.mxu0
    %v1388 = vadd.f32 %v1133, %v1387
    %v1389 = vand.u32 %v117, 4294901760
    %1390 = vmatmul.f32.gmra.mxu0 %v1389
    %v1391 = vpop.f32.mrf.mxu0
    %v1392 = vadd.f32 %v1139, %v1391
    %v1393 = vand.u32 %v120, 4294901760
    %1394 = vmatmul.f32.gmra.mxu0 %v1393
    %v1395 = vpop.f32.mrf.mxu0
    %v1396 = vadd.f32 %v1145, %v1395
    %v1397 = vand.u32 %v123, 4294901760
    %1398 = vmatmul.f32.gmra.mxu0 %v1397
    %v1399 = vpop.f32.mrf.mxu0
    %v1400 = vadd.f32 %v1151, %v1399
    %v1401 = vand.u32 %v126, 4294901760
    %1402 = vmatmul.f32.gmra.mxu0 %v1401
    %v1403 = vpop.f32.mrf.mxu0
    %v1404 = vadd.f32 %v1157, %v1403
    %v1405 = vand.u32 %v129, 4294901760
    %1406 = vmatmul.f32.gmra.mxu0 %v1405
    %v1407 = vpop.f32.mrf.mxu0
    %v1408 = vadd.f32 %v1163, %v1407
    %v1409 = vand.u32 %v132, 4294901760
    %1410 = vmatmul.f32.gmra.mxu0 %v1409
    %v1411 = vpop.f32.mrf.mxu0
    %v1412 = vadd.f32 %v1169, %v1411
    %v1413 = vand.u32 %v135, 4294901760
    %1414 = vmatmul.f32.gmra.mxu0 %v1413
    %v1415 = vpop.f32.mrf.mxu0
    %v1416 = vadd.f32 %v1175, %v1415
    %v1417 = vand.u32 %v138, 4294901760
    %1418 = vmatmul.f32.gmra.mxu0 %v1417
    %v1419 = vpop.f32.mrf.mxu0
    %v1420 = vadd.f32 %v1181, %v1419
    %v1421 = vand.u32 %v141, 4294901760
    %1422 = vmatmul.f32.gmra.mxu0 %v1421
    %v1423 = vpop.f32.mrf.mxu0
    %v1424 = vadd.f32 %v1187, %v1423
    %v1425 = vand.u32 %v144, 4294901760
    %1426 = vmatmul.f32.gmra.mxu0 %v1425
    %v1427 = vpop.f32.mrf.mxu0
    %v1428 = vadd.f32 %v1193, %v1427
    %v1429 = vand.u32 %v147, 4294901760
    %1430 = vmatmul.f32.gmra.mxu0 %v1429
    %v1431 = vpop.f32.mrf.mxu0
    %v1432 = vadd.f32 %v1199, %v1431
    %v1433 = vand.u32 %v150, 4294901760
    %1434 = vmatmul.f32.gmra.mxu0 %v1433
    %v1435 = vpop.f32.mrf.mxu0
    %v1436 = vadd.f32 %v1205, %v1435
    %v1437 = vand.u32 %v153, 4294901760
    %1438 = vmatmul.f32.gmra.mxu0 %v1437
    %v1439 = vpop.f32.mrf.mxu0
    %v1440 = vadd.f32 %v1211, %v1439
    %v1441 = vand.u32 %v156, 4294901760
    %1442 = vmatmul.f32.gmra.mxu0 %v1441
    %v1443 = vpop.f32.mrf.mxu0
    %v1444 = vadd.f32 %v1217, %v1443
    %v1445 = vand.u32 %v159, 4294901760
    %1446 = vmatmul.f32.gmra.mxu0 %v1445
    %v1447 = vpop.f32.mrf.mxu0
    %v1448 = vadd.f32 %v1223, %v1447
    %v1449 = vand.u32 %v162, 4294901760
    %1450 = vmatmul.f32.gmra.mxu0 %v1449
    %v1451 = vpop.f32.mrf.mxu0
    %v1452 = vadd.f32 %v1229, %v1451
    %v1453 = vand.u32 %v165, 4294901760
    %1454 = vmatmul.f32.gmra.mxu0 %v1453
    %v1455 = vpop.f32.mrf.mxu0
    %v1456 = vadd.f32 %v1235, %v1455
    %v1457 = vand.u32 %v168, 4294901760
    %1458 = vmatmul.f32.gmra.mxu0 %v1457
    %v1459 = vpop.f32.mrf.mxu0
    %v1460 = vadd.f32 %v1241, %v1459
    %v1461 = vand.u32 %v171, 4294901760
    %1462 = vmatmul.f32.gmra.mxu0 %v1461
    %v1463 = vpop.f32.mrf.mxu0
    %v1464 = vadd.f32 %v1247, %v1463
    %v1465 = vand.u32 %v174, 4294901760
    %1466 = vmatmul.f32.gmra.mxu0 %v1465
    %v1467 = vpop.f32.mrf.mxu0
    %v1468 = vadd.f32 %v1253, %v1467
    %v1469 = vand.u32 %v177, 4294901760
    %1470 = vmatmul.f32.gmra.mxu0 %v1469
    %v1471 = vpop.f32.mrf.mxu0
    %v1472 = vadd.f32 %v1259, %v1471
    %v1473 = vand.u32 %v180, 4294901760
    %1474 = vmatmul.f32.gmra.mxu0 %v1473
    %v1475 = vpop.f32.mrf.mxu0
    %v1476 = vadd.f32 %v1265, %v1475
    %v1477 = vand.u32 %v183, 4294901760
    %1478 = vmatmul.f32.gmra.mxu0 %v1477
    %v1479 = vpop.f32.mrf.mxu0
    %v1480 = vadd.f32 %v1271, %v1479
    %1481 = vdwg.mxu0
    %v1482 = vand.u32 %v231, 4294901760
    %1483 = vmatpush.xpose.msra.mxu0 %v1482
    %v1484 = vand.u32 %v228, 4294901760
    %1485 = vmatpush.xpose.msra.mxu0 %v1484
    %v1486 = vand.u32 %v225, 4294901760
    %1487 = vmatpush.xpose.msra.mxu0 %v1486
    %v1488 = vand.u32 %v222, 4294901760
    %1489 = vmatpush.xpose.msra.mxu0 %v1488
    %v1490 = vand.u32 %v219, 4294901760
    %1491 = vmatpush.xpose.msra.mxu0 %v1490
    %v1492 = vand.u32 %v216, 4294901760
    %1493 = vmatpush.xpose.msra.mxu0 %v1492
    %v1494 = vand.u32 %v213, 4294901760
    %1495 = vmatpush.xpose.msra.mxu0 %v1494
    %v1496 = vand.u32 %v210, 4294901760
    %1497 = vmatpush.xpose.msra.mxu0 %v1496
    %v1498 = vand.u32 %v207, 4294901760
    %1499 = vmatpush.xpose.msra.mxu0 %v1498
    %v1500 = vand.u32 %v204, 4294901760
    %1501 = vmatpush.xpose.msra.mxu0 %v1500
    %v1502 = vand.u32 %v201, 4294901760
    %1503 = vmatpush.xpose.msra.mxu0 %v1502
    %v1504 = vand.u32 %v198, 4294901760
    %1505 = vmatpush.xpose.msra.mxu0 %v1504
    %v1506 = vand.u32 %v195, 4294901760
    %1507 = vmatpush.xpose.msra.mxu0 %v1506
    %v1508 = vand.u32 %v192, 4294901760
    %1509 = vmatpush.xpose.msra.mxu0 %v1508
    %v1510 = vand.u32 %v189, 4294901760
    %1511 = vmatpush.xpose.msra.mxu0 %v1510
    %v1512 = vand.u32 %v186, 4294901760
    %1513 = vmatpush.xpose.msra.mxu0 %v1512
    %v1514 = vand.u32 %v78, 4294901760
    %1515 = vmatmul.f32.gmra.mxu0 %v1514
    %v1516 = vpop.f32.mrf.mxu0
    %v1517 = vadd.f32 %v1340, %v1516
    %v1518 = vand.u32 %v81, 4294901760
    %1519 = vmatmul.f32.gmra.mxu0 %v1518
    %v1520 = vpop.f32.mrf.mxu0
    %v1521 = vadd.f32 %v1344, %v1520
    %v1522 = vand.u32 %v84, 4294901760
    %1523 = vmatmul.f32.gmra.mxu0 %v1522
    %v1524 = vpop.f32.mrf.mxu0
    %v1525 = vadd.f32 %v1348, %v1524
    %v1526 = vand.u32 %v87, 4294901760
    %1527 = vmatmul.f32.gmra.mxu0 %v1526
    %v1528 = vpop.f32.mrf.mxu0
    %v1529 = vadd.f32 %v1352, %v1528
    %v1530 = vand.u32 %v90, 4294901760
    %1531 = vmatmul.f32.gmra.mxu0 %v1530
    %v1532 = vpop.f32.mrf.mxu0
    %v1533 = vadd.f32 %v1356, %v1532
    %v1534 = vand.u32 %v93, 4294901760
    %1535 = vmatmul.f32.gmra.mxu0 %v1534
    %v1536 = vpop.f32.mrf.mxu0
    %v1537 = vadd.f32 %v1360, %v1536
    %v1538 = vand.u32 %v96, 4294901760
    %1539 = vmatmul.f32.gmra.mxu0 %v1538
    %v1540 = vpop.f32.mrf.mxu0
    %v1541 = vadd.f32 %v1364, %v1540
    %v1542 = vand.u32 %v99, 4294901760
    %1543 = vmatmul.f32.gmra.mxu0 %v1542
    %v1544 = vpop.f32.mrf.mxu0
    %v1545 = vadd.f32 %v1368, %v1544
    %v1546 = vand.u32 %v102, 4294901760
    %1547 = vmatmul.f32.gmra.mxu0 %v1546
    %v1548 = vpop.f32.mrf.mxu0
    %v1549 = vadd.f32 %v1372, %v1548
    %v1550 = vand.u32 %v105, 4294901760
    %1551 = vmatmul.f32.gmra.mxu0 %v1550
    %v1552 = vpop.f32.mrf.mxu0
    %v1553 = vadd.f32 %v1376, %v1552
    %v1554 = vand.u32 %v108, 4294901760
    %1555 = vmatmul.f32.gmra.mxu0 %v1554
    %v1556 = vpop.f32.mrf.mxu0
    %v1557 = vadd.f32 %v1380, %v1556
    %v1558 = vand.u32 %v111, 4294901760
    %1559 = vmatmul.f32.gmra.mxu0 %v1558
    %v1560 = vpop.f32.mrf.mxu0
    %v1561 = vadd.f32 %v1384, %v1560
    %v1562 = vand.u32 %v114, 4294901760
    %1563 = vmatmul.f32.gmra.mxu0 %v1562
    %v1564 = vpop.f32.mrf.mxu0
    %v1565 = vadd.f32 %v1388, %v1564
    %v1566 = vand.u32 %v117, 4294901760
    %1567 = vmatmul.f32.gmra.mxu0 %v1566
    %v1568 = vpop.f32.mrf.mxu0
    %v1569 = vadd.f32 %v1392, %v1568
    %v1570 = vand.u32 %v120, 4294901760
    %1571 = vmatmul.f32.gmra.mxu0 %v1570
    %v1572 = vpop.f32.mrf.mxu0
    %v1573 = vadd.f32 %v1396, %v1572
    %v1574 = vand.u32 %v123, 4294901760
    %1575 = vmatmul.f32.gmra.mxu0 %v1574
    %v1576 = vpop.f32.mrf.mxu0
    %v1577 = vadd.f32 %v1400, %v1576
    %v1578 = vand.u32 %v126, 4294901760
    %1579 = vmatmul.f32.gmra.mxu0 %v1578
    %v1580 = vpop.f32.mrf.mxu0
    %v1581 = vadd.f32 %v1404, %v1580
    %v1582 = vand.u32 %v129, 4294901760
    %1583 = vmatmul.f32.gmra.mxu0 %v1582
    %v1584 = vpop.f32.mrf.mxu0
    %v1585 = vadd.f32 %v1408, %v1584
    %v1586 = vand.u32 %v132, 4294901760
    %1587 = vmatmul.f32.gmra.mxu0 %v1586
    %v1588 = vpop.f32.mrf.mxu0
    %v1589 = vadd.f32 %v1412, %v1588
    %v1590 = vand.u32 %v135, 4294901760
    %1591 = vmatmul.f32.gmra.mxu0 %v1590
    %v1592 = vpop.f32.mrf.mxu0
    %v1593 = vadd.f32 %v1416, %v1592
    %v1594 = vand.u32 %v138, 4294901760
    %1595 = vmatmul.f32.gmra.mxu0 %v1594
    %v1596 = vpop.f32.mrf.mxu0
    %v1597 = vadd.f32 %v1420, %v1596
    %v1598 = vand.u32 %v141, 4294901760
    %1599 = vmatmul.f32.gmra.mxu0 %v1598
    %v1600 = vpop.f32.mrf.mxu0
    %v1601 = vadd.f32 %v1424, %v1600
    %v1602 = vand.u32 %v144, 4294901760
    %1603 = vmatmul.f32.gmra.mxu0 %v1602
    %v1604 = vpop.f32.mrf.mxu0
    %v1605 = vadd.f32 %v1428, %v1604
    %v1606 = vand.u32 %v147, 4294901760
    %1607 = vmatmul.f32.gmra.mxu0 %v1606
    %v1608 = vpop.f32.mrf.mxu0
    %v1609 = vadd.f32 %v1432, %v1608
    %v1610 = vand.u32 %v150, 4294901760
    %1611 = vmatmul.f32.gmra.mxu0 %v1610
    %v1612 = vpop.f32.mrf.mxu0
    %v1613 = vadd.f32 %v1436, %v1612
    %v1614 = vand.u32 %v153, 4294901760
    %1615 = vmatmul.f32.gmra.mxu0 %v1614
    %v1616 = vpop.f32.mrf.mxu0
    %v1617 = vadd.f32 %v1440, %v1616
    %v1618 = vand.u32 %v156, 4294901760
    %1619 = vmatmul.f32.gmra.mxu0 %v1618
    %v1620 = vpop.f32.mrf.mxu0
    %v1621 = vadd.f32 %v1444, %v1620
    %v1622 = vand.u32 %v159, 4294901760
    %1623 = vmatmul.f32.gmra.mxu0 %v1622
    %v1624 = vpop.f32.mrf.mxu0
    %v1625 = vadd.f32 %v1448, %v1624
    %v1626 = vand.u32 %v162, 4294901760
    %1627 = vmatmul.f32.gmra.mxu0 %v1626
    %v1628 = vpop.f32.mrf.mxu0
    %v1629 = vadd.f32 %v1452, %v1628
    %v1630 = vand.u32 %v165, 4294901760
    %1631 = vmatmul.f32.gmra.mxu0 %v1630
    %v1632 = vpop.f32.mrf.mxu0
    %v1633 = vadd.f32 %v1456, %v1632
    %v1634 = vand.u32 %v168, 4294901760
    %1635 = vmatmul.f32.gmra.mxu0 %v1634
    %v1636 = vpop.f32.mrf.mxu0
    %v1637 = vadd.f32 %v1460, %v1636
    %v1638 = vand.u32 %v171, 4294901760
    %1639 = vmatmul.f32.gmra.mxu0 %v1638
    %v1640 = vpop.f32.mrf.mxu0
    %v1641 = vadd.f32 %v1464, %v1640
    %v1642 = vand.u32 %v174, 4294901760
    %1643 = vmatmul.f32.gmra.mxu0 %v1642
    %v1644 = vpop.f32.mrf.mxu0
    %v1645 = vadd.f32 %v1468, %v1644
    %v1646 = vand.u32 %v177, 4294901760
    %1647 = vmatmul.f32.gmra.mxu0 %v1646
    %v1648 = vpop.f32.mrf.mxu0
    %v1649 = vadd.f32 %v1472, %v1648
    %v1650 = vand.u32 %v180, 4294901760
    %1651 = vmatmul.f32.gmra.mxu0 %v1650
    %v1652 = vpop.f32.mrf.mxu0
    %v1653 = vadd.f32 %v1476, %v1652
    %v1654 = vand.u32 %v183, 4294901760
    %1655 = vmatmul.f32.gmra.mxu0 %v1654
    %v1656 = vpop.f32.mrf.mxu0
    %v1657 = vadd.f32 %v1480, %v1656
    %1658 = vdwg.mxu0
    %v1659 = vld [vmem:[%s1] sm:$0xff]
    %v1660 = vld [vmem:[%s1 + $0x8] sm:$0xff]
    %v1661 = vld [vmem:[%s1 + $0x10] sm:$0xff]
    %v1662 = vld [vmem:[%s1 + $0x18] sm:$0xff]
    %v1663 = vld [vmem:[%s1 + $0x20] sm:$0xff]
    %v1664 = vld [vmem:[%s1 + $0x28] sm:$0xff]
    %v1665 = vld [vmem:[%s1 + $0x30] sm:$0xff]
    %v1666 = vld [vmem:[%s1 + $0x38] sm:$0xff]
    %v1667 = vld [vmem:[%s1 + $0x40] sm:$0xff]
    %v1668 = vld [vmem:[%s1 + $0x48] sm:$0xff]
    %v1669 = vld [vmem:[%s1 + $0x50] sm:$0xff]
    %v1670 = vld [vmem:[%s1 + $0x58] sm:$0xff]
    %v1671 = vld [vmem:[%s1 + $0x60] sm:$0xff]
    %v1672 = vld [vmem:[%s1 + $0x68] sm:$0xff]
    %v1673 = vld [vmem:[%s1 + $0x70] sm:$0xff]
    %v1674 = vld [vmem:[%s1 + $0x78] sm:$0xff]
    %v1675 = vld [vmem:[%s1 + $0x80] sm:$0xff]
    %v1676 = vld [vmem:[%s1 + $0x88] sm:$0xff]
    %v1677 = vld [vmem:[%s1 + $0x90] sm:$0xff]
    %v1678 = vld [vmem:[%s1 + $0x98] sm:$0xff]
    %v1679 = vld [vmem:[%s1 + $0xa0] sm:$0xff]
    %v1680 = vld [vmem:[%s1 + $0xa8] sm:$0xff]
    %v1681 = vld [vmem:[%s1 + $0xb0] sm:$0xff]
    %v1682 = vld [vmem:[%s1 + $0xb8] sm:$0xff]
    %v1683 = vld [vmem:[%s1 + $0xc0] sm:$0xff]
    %v1684 = vld [vmem:[%s1 + $0xc8] sm:$0xff]
    %v1685 = vld [vmem:[%s1 + $0xd0] sm:$0xff]
    %v1686 = vld [vmem:[%s1 + $0xd8] sm:$0xff]
    %v1687 = vld [vmem:[%s1 + $0xe0] sm:$0xff]
    %v1688 = vld [vmem:[%s1 + $0xe8] sm:$0xff]
    %v1689 = vld [vmem:[%s1 + $0xf0] sm:$0xff]
    %v1690 = vld [vmem:[%s1 + $0xf8] sm:$0xff]
    %v1691 = vld [vmem:[%s1 + $0x100] sm:$0xff]
    %v1692 = vld [vmem:[%s1 + $0x108] sm:$0xff]
    %v1693 = vld [vmem:[%s1 + $0x110] sm:$0xff]
    %v1694 = vld [vmem:[%s1 + $0x118] sm:$0xff]
    %v1696 = vsel %vm76, %v1659, 0
    %v1699 = vsel %vm76, %v1660, 0
    %v1702 = vsel %vm76, %v1661, 0
    %v1705 = vsel %vm76, %v1662, 0
    %v1708 = vsel %vm76, %v1663, 0
    %v1711 = vsel %vm76, %v1664, 0
    %v1714 = vsel %vm76, %v1665, 0
    %v1717 = vsel %vm76, %v1666, 0
    %v1720 = vsel %vm76, %v1667, 0
    %v1723 = vsel %vm76, %v1668, 0
    %v1726 = vsel %vm76, %v1669, 0
    %v1729 = vsel %vm76, %v1670, 0
    %v1732 = vsel %vm76, %v1671, 0
    %v1735 = vsel %vm76, %v1672, 0
    %v1738 = vsel %vm76, %v1673, 0
    %v1741 = vsel %vm76, %v1674, 0
    %v1744 = vsel %vm76, %v1675, 0
    %v1747 = vsel %vm76, %v1676, 0
    %v1750 = vsel %vm76, %v1677, 0
    %v1753 = vsel %vm76, %v1678, 0
    %v1756 = vsel %vm76, %v1679, 0
    %v1759 = vsel %vm76, %v1680, 0
    %v1762 = vsel %vm76, %v1681, 0
    %v1765 = vsel %vm76, %v1682, 0
    %v1768 = vsel %vm76, %v1683, 0
    %v1771 = vsel %vm76, %v1684, 0
    %v1774 = vsel %vm76, %v1685, 0
    %v1777 = vsel %vm76, %v1686, 0
    %v1780 = vsel %vm76, %v1687, 0
    %v1783 = vsel %vm76, %v1688, 0
    %v1786 = vsel %vm76, %v1689, 0
    %v1789 = vsel %vm76, %v1690, 0
    %v1792 = vsel %vm76, %v1691, 0
    %v1795 = vsel %vm76, %v1692, 0
    %v1798 = vsel %vm76, %v1693, 0
    %v1801 = vsel %vm76, %v1694, 0
    %v1803 = vand.u32 %v231, 4294901760
    %1804 = vmatpush.xpose.msra.mxu0 %v1803
    %v1805 = vand.u32 %v228, 4294901760
    %1806 = vmatpush.xpose.msra.mxu0 %v1805
    %v1807 = vand.u32 %v225, 4294901760
    %1808 = vmatpush.xpose.msra.mxu0 %v1807
    %v1809 = vand.u32 %v222, 4294901760
    %1810 = vmatpush.xpose.msra.mxu0 %v1809
    %v1811 = vand.u32 %v219, 4294901760
    %1812 = vmatpush.xpose.msra.mxu0 %v1811
    %v1813 = vand.u32 %v216, 4294901760
    %1814 = vmatpush.xpose.msra.mxu0 %v1813
    %v1815 = vand.u32 %v213, 4294901760
    %1816 = vmatpush.xpose.msra.mxu0 %v1815
    %v1817 = vand.u32 %v210, 4294901760
    %1818 = vmatpush.xpose.msra.mxu0 %v1817
    %v1819 = vand.u32 %v207, 4294901760
    %1820 = vmatpush.xpose.msra.mxu0 %v1819
    %v1821 = vand.u32 %v204, 4294901760
    %1822 = vmatpush.xpose.msra.mxu0 %v1821
    %v1823 = vand.u32 %v201, 4294901760
    %1824 = vmatpush.xpose.msra.mxu0 %v1823
    %v1825 = vand.u32 %v198, 4294901760
    %1826 = vmatpush.xpose.msra.mxu0 %v1825
    %v1827 = vand.u32 %v195, 4294901760
    %1828 = vmatpush.xpose.msra.mxu0 %v1827
    %v1829 = vand.u32 %v192, 4294901760
    %1830 = vmatpush.xpose.msra.mxu0 %v1829
    %v1831 = vand.u32 %v189, 4294901760
    %1832 = vmatpush.xpose.msra.mxu0 %v1831
    %v1833 = vand.u32 %v186, 4294901760
    %1834 = vmatpush.xpose.msra.mxu0 %v1833
    %v1835 = vand.u32 %v1696, 4294901760
    %v1836 = vsub.f32 %v1696, %v1835
    %v1837 = vand.u32 %v1836, 4294901760
    %v1838 = vsub.f32 %v1836, %v1837
    %v1839 = vand.u32 %v1838, 4294901760
    %1840 = vmatmul.f32.gmra.mxu0 %v1839
    %v1841 = vpop.f32.mrf.mxu0
    %v1842 = vadd.f32 0.0, %v1841
    %v1843 = vand.u32 %v1699, 4294901760
    %v1844 = vsub.f32 %v1699, %v1843
    %v1845 = vand.u32 %v1844, 4294901760
    %v1846 = vsub.f32 %v1844, %v1845
    %v1847 = vand.u32 %v1846, 4294901760
    %1848 = vmatmul.f32.gmra.mxu0 %v1847
    %v1849 = vpop.f32.mrf.mxu0
    %v1850 = vadd.f32 0.0, %v1849
    %v1851 = vand.u32 %v1702, 4294901760
    %v1852 = vsub.f32 %v1702, %v1851
    %v1853 = vand.u32 %v1852, 4294901760
    %v1854 = vsub.f32 %v1852, %v1853
    %v1855 = vand.u32 %v1854, 4294901760
    %1856 = vmatmul.f32.gmra.mxu0 %v1855
    %v1857 = vpop.f32.mrf.mxu0
    %v1858 = vadd.f32 0.0, %v1857
    %v1859 = vand.u32 %v1705, 4294901760
    %v1860 = vsub.f32 %v1705, %v1859
    %v1861 = vand.u32 %v1860, 4294901760
    %v1862 = vsub.f32 %v1860, %v1861
    %v1863 = vand.u32 %v1862, 4294901760
    %1864 = vmatmul.f32.gmra.mxu0 %v1863
    %v1865 = vpop.f32.mrf.mxu0
    %v1866 = vadd.f32 0.0, %v1865
    %v1867 = vand.u32 %v1708, 4294901760
    %v1868 = vsub.f32 %v1708, %v1867
    %v1869 = vand.u32 %v1868, 4294901760
    %v1870 = vsub.f32 %v1868, %v1869
    %v1871 = vand.u32 %v1870, 4294901760
    %1872 = vmatmul.f32.gmra.mxu0 %v1871
    %v1873 = vpop.f32.mrf.mxu0
    %v1874 = vadd.f32 0.0, %v1873
    %v1875 = vand.u32 %v1711, 4294901760
    %v1876 = vsub.f32 %v1711, %v1875
    %v1877 = vand.u32 %v1876, 4294901760
    %v1878 = vsub.f32 %v1876, %v1877
    %v1879 = vand.u32 %v1878, 4294901760
    %1880 = vmatmul.f32.gmra.mxu0 %v1879
    %v1881 = vpop.f32.mrf.mxu0
    %v1882 = vadd.f32 0.0, %v1881
    %v1883 = vand.u32 %v1714, 4294901760
    %v1884 = vsub.f32 %v1714, %v1883
    %v1885 = vand.u32 %v1884, 4294901760
    %v1886 = vsub.f32 %v1884, %v1885
    %v1887 = vand.u32 %v1886, 4294901760
    %1888 = vmatmul.f32.gmra.mxu0 %v1887
    %v1889 = vpop.f32.mrf.mxu0
    %v1890 = vadd.f32 0.0, %v1889
    %v1891 = vand.u32 %v1717, 4294901760
    %v1892 = vsub.f32 %v1717, %v1891
    %v1893 = vand.u32 %v1892, 4294901760
    %v1894 = vsub.f32 %v1892, %v1893
    %v1895 = vand.u32 %v1894, 4294901760
    %1896 = vmatmul.f32.gmra.mxu0 %v1895
    %v1897 = vpop.f32.mrf.mxu0
    %v1898 = vadd.f32 0.0, %v1897
    %v1899 = vand.u32 %v1720, 4294901760
    %v1900 = vsub.f32 %v1720, %v1899
    %v1901 = vand.u32 %v1900, 4294901760
    %v1902 = vsub.f32 %v1900, %v1901
    %v1903 = vand.u32 %v1902, 4294901760
    %1904 = vmatmul.f32.gmra.mxu0 %v1903
    %v1905 = vpop.f32.mrf.mxu0
    %v1906 = vadd.f32 0.0, %v1905
    %v1907 = vand.u32 %v1723, 4294901760
    %v1908 = vsub.f32 %v1723, %v1907
    %v1909 = vand.u32 %v1908, 4294901760
    %v1910 = vsub.f32 %v1908, %v1909
    %v1911 = vand.u32 %v1910, 4294901760
    %1912 = vmatmul.f32.gmra.mxu0 %v1911
    %v1913 = vpop.f32.mrf.mxu0
    %v1914 = vadd.f32 0.0, %v1913
    %v1915 = vand.u32 %v1726, 4294901760
    %v1916 = vsub.f32 %v1726, %v1915
    %v1917 = vand.u32 %v1916, 4294901760
    %v1918 = vsub.f32 %v1916, %v1917
    %v1919 = vand.u32 %v1918, 4294901760
    %1920 = vmatmul.f32.gmra.mxu0 %v1919
    %v1921 = vpop.f32.mrf.mxu0
    %v1922 = vadd.f32 0.0, %v1921
    %v1923 = vand.u32 %v1729, 4294901760
    %v1924 = vsub.f32 %v1729, %v1923
    %v1925 = vand.u32 %v1924, 4294901760
    %v1926 = vsub.f32 %v1924, %v1925
    %v1927 = vand.u32 %v1926, 4294901760
    %1928 = vmatmul.f32.gmra.mxu0 %v1927
    %v1929 = vpop.f32.mrf.mxu0
    %v1930 = vadd.f32 0.0, %v1929
    %v1931 = vand.u32 %v1732, 4294901760
    %v1932 = vsub.f32 %v1732, %v1931
    %v1933 = vand.u32 %v1932, 4294901760
    %v1934 = vsub.f32 %v1932, %v1933
    %v1935 = vand.u32 %v1934, 4294901760
    %1936 = vmatmul.f32.gmra.mxu0 %v1935
    %v1937 = vpop.f32.mrf.mxu0
    %v1938 = vadd.f32 0.0, %v1937
    %v1939 = vand.u32 %v1735, 4294901760
    %v1940 = vsub.f32 %v1735, %v1939
    %v1941 = vand.u32 %v1940, 4294901760
    %v1942 = vsub.f32 %v1940, %v1941
    %v1943 = vand.u32 %v1942, 4294901760
    %1944 = vmatmul.f32.gmra.mxu0 %v1943
    %v1945 = vpop.f32.mrf.mxu0
    %v1946 = vadd.f32 0.0, %v1945
    %v1947 = vand.u32 %v1738, 4294901760
    %v1948 = vsub.f32 %v1738, %v1947
    %v1949 = vand.u32 %v1948, 4294901760
    %v1950 = vsub.f32 %v1948, %v1949
    %v1951 = vand.u32 %v1950, 4294901760
    %1952 = vmatmul.f32.gmra.mxu0 %v1951
    %v1953 = vpop.f32.mrf.mxu0
    %v1954 = vadd.f32 0.0, %v1953
    %v1955 = vand.u32 %v1741, 4294901760
    %v1956 = vsub.f32 %v1741, %v1955
    %v1957 = vand.u32 %v1956, 4294901760
    %v1958 = vsub.f32 %v1956, %v1957
    %v1959 = vand.u32 %v1958, 4294901760
    %1960 = vmatmul.f32.gmra.mxu0 %v1959
    %v1961 = vpop.f32.mrf.mxu0
    %v1962 = vadd.f32 0.0, %v1961
    %v1963 = vand.u32 %v1744, 4294901760
    %v1964 = vsub.f32 %v1744, %v1963
    %v1965 = vand.u32 %v1964, 4294901760
    %v1966 = vsub.f32 %v1964, %v1965
    %v1967 = vand.u32 %v1966, 4294901760
    %1968 = vmatmul.f32.gmra.mxu0 %v1967
    %v1969 = vpop.f32.mrf.mxu0
    %v1970 = vadd.f32 0.0, %v1969
    %v1971 = vand.u32 %v1747, 4294901760
    %v1972 = vsub.f32 %v1747, %v1971
    %v1973 = vand.u32 %v1972, 4294901760
    %v1974 = vsub.f32 %v1972, %v1973
    %v1975 = vand.u32 %v1974, 4294901760
    %1976 = vmatmul.f32.gmra.mxu0 %v1975
    %v1977 = vpop.f32.mrf.mxu0
    %v1978 = vadd.f32 0.0, %v1977
    %v1979 = vand.u32 %v1750, 4294901760
    %v1980 = vsub.f32 %v1750, %v1979
    %v1981 = vand.u32 %v1980, 4294901760
    %v1982 = vsub.f32 %v1980, %v1981
    %v1983 = vand.u32 %v1982, 4294901760
    %1984 = vmatmul.f32.gmra.mxu0 %v1983
    %v1985 = vpop.f32.mrf.mxu0
    %v1986 = vadd.f32 0.0, %v1985
    %v1987 = vand.u32 %v1753, 4294901760
    %v1988 = vsub.f32 %v1753, %v1987
    %v1989 = vand.u32 %v1988, 4294901760
    %v1990 = vsub.f32 %v1988, %v1989
    %v1991 = vand.u32 %v1990, 4294901760
    %1992 = vmatmul.f32.gmra.mxu0 %v1991
    %v1993 = vpop.f32.mrf.mxu0
    %v1994 = vadd.f32 0.0, %v1993
    %v1995 = vand.u32 %v1756, 4294901760
    %v1996 = vsub.f32 %v1756, %v1995
    %v1997 = vand.u32 %v1996, 4294901760
    %v1998 = vsub.f32 %v1996, %v1997
    %v1999 = vand.u32 %v1998, 4294901760
    %2000 = vmatmul.f32.gmra.mxu0 %v1999
    %v2001 = vpop.f32.mrf.mxu0
    %v2002 = vadd.f32 0.0, %v2001
    %v2003 = vand.u32 %v1759, 4294901760
    %v2004 = vsub.f32 %v1759, %v2003
    %v2005 = vand.u32 %v2004, 4294901760
    %v2006 = vsub.f32 %v2004, %v2005
    %v2007 = vand.u32 %v2006, 4294901760
    %2008 = vmatmul.f32.gmra.mxu0 %v2007
    %v2009 = vpop.f32.mrf.mxu0
    %v2010 = vadd.f32 0.0, %v2009
    %v2011 = vand.u32 %v1762, 4294901760
    %v2012 = vsub.f32 %v1762, %v2011
    %v2013 = vand.u32 %v2012, 4294901760
    %v2014 = vsub.f32 %v2012, %v2013
    %v2015 = vand.u32 %v2014, 4294901760
    %2016 = vmatmul.f32.gmra.mxu0 %v2015
    %v2017 = vpop.f32.mrf.mxu0
    %v2018 = vadd.f32 0.0, %v2017
    %v2019 = vand.u32 %v1765, 4294901760
    %v2020 = vsub.f32 %v1765, %v2019
    %v2021 = vand.u32 %v2020, 4294901760
    %v2022 = vsub.f32 %v2020, %v2021
    %v2023 = vand.u32 %v2022, 4294901760
    %2024 = vmatmul.f32.gmra.mxu0 %v2023
    %v2025 = vpop.f32.mrf.mxu0
    %v2026 = vadd.f32 0.0, %v2025
    %v2027 = vand.u32 %v1768, 4294901760
    %v2028 = vsub.f32 %v1768, %v2027
    %v2029 = vand.u32 %v2028, 4294901760
    %v2030 = vsub.f32 %v2028, %v2029
    %v2031 = vand.u32 %v2030, 4294901760
    %2032 = vmatmul.f32.gmra.mxu0 %v2031
    %v2033 = vpop.f32.mrf.mxu0
    %v2034 = vadd.f32 0.0, %v2033
    %v2035 = vand.u32 %v1771, 4294901760
    %v2036 = vsub.f32 %v1771, %v2035
    %v2037 = vand.u32 %v2036, 4294901760
    %v2038 = vsub.f32 %v2036, %v2037
    %v2039 = vand.u32 %v2038, 4294901760
    %2040 = vmatmul.f32.gmra.mxu0 %v2039
    %v2041 = vpop.f32.mrf.mxu0
    %v2042 = vadd.f32 0.0, %v2041
    %v2043 = vand.u32 %v1774, 4294901760
    %v2044 = vsub.f32 %v1774, %v2043
    %v2045 = vand.u32 %v2044, 4294901760
    %v2046 = vsub.f32 %v2044, %v2045
    %v2047 = vand.u32 %v2046, 4294901760
    %2048 = vmatmul.f32.gmra.mxu0 %v2047
    %v2049 = vpop.f32.mrf.mxu0
    %v2050 = vadd.f32 0.0, %v2049
    %v2051 = vand.u32 %v1777, 4294901760
    %v2052 = vsub.f32 %v1777, %v2051
    %v2053 = vand.u32 %v2052, 4294901760
    %v2054 = vsub.f32 %v2052, %v2053
    %v2055 = vand.u32 %v2054, 4294901760
    %2056 = vmatmul.f32.gmra.mxu0 %v2055
    %v2057 = vpop.f32.mrf.mxu0
    %v2058 = vadd.f32 0.0, %v2057
    %v2059 = vand.u32 %v1780, 4294901760
    %v2060 = vsub.f32 %v1780, %v2059
    %v2061 = vand.u32 %v2060, 4294901760
    %v2062 = vsub.f32 %v2060, %v2061
    %v2063 = vand.u32 %v2062, 4294901760
    %2064 = vmatmul.f32.gmra.mxu0 %v2063
    %v2065 = vpop.f32.mrf.mxu0
    %v2066 = vadd.f32 0.0, %v2065
    %v2067 = vand.u32 %v1783, 4294901760
    %v2068 = vsub.f32 %v1783, %v2067
    %v2069 = vand.u32 %v2068, 4294901760
    %v2070 = vsub.f32 %v2068, %v2069
    %v2071 = vand.u32 %v2070, 4294901760
    %2072 = vmatmul.f32.gmra.mxu0 %v2071
    %v2073 = vpop.f32.mrf.mxu0
    %v2074 = vadd.f32 0.0, %v2073
    %v2075 = vand.u32 %v1786, 4294901760
    %v2076 = vsub.f32 %v1786, %v2075
    %v2077 = vand.u32 %v2076, 4294901760
    %v2078 = vsub.f32 %v2076, %v2077
    %v2079 = vand.u32 %v2078, 4294901760
    %2080 = vmatmul.f32.gmra.mxu0 %v2079
    %v2081 = vpop.f32.mrf.mxu0
    %v2082 = vadd.f32 0.0, %v2081
    %v2083 = vand.u32 %v1789, 4294901760
    %v2084 = vsub.f32 %v1789, %v2083
    %v2085 = vand.u32 %v2084, 4294901760
    %v2086 = vsub.f32 %v2084, %v2085
    %v2087 = vand.u32 %v2086, 4294901760
    %2088 = vmatmul.f32.gmra.mxu0 %v2087
    %v2089 = vpop.f32.mrf.mxu0
    %v2090 = vadd.f32 0.0, %v2089
    %v2091 = vand.u32 %v1792, 4294901760
    %v2092 = vsub.f32 %v1792, %v2091
    %v2093 = vand.u32 %v2092, 4294901760
    %v2094 = vsub.f32 %v2092, %v2093
    %v2095 = vand.u32 %v2094, 4294901760
    %2096 = vmatmul.f32.gmra.mxu0 %v2095
    %v2097 = vpop.f32.mrf.mxu0
    %v2098 = vadd.f32 0.0, %v2097
    %v2099 = vand.u32 %v1795, 4294901760
    %v2100 = vsub.f32 %v1795, %v2099
    %v2101 = vand.u32 %v2100, 4294901760
    %v2102 = vsub.f32 %v2100, %v2101
    %v2103 = vand.u32 %v2102, 4294901760
    %2104 = vmatmul.f32.gmra.mxu0 %v2103
    %v2105 = vpop.f32.mrf.mxu0
    %v2106 = vadd.f32 0.0, %v2105
    %v2107 = vand.u32 %v1798, 4294901760
    %v2108 = vsub.f32 %v1798, %v2107
    %v2109 = vand.u32 %v2108, 4294901760
    %v2110 = vsub.f32 %v2108, %v2109
    %v2111 = vand.u32 %v2110, 4294901760
    %2112 = vmatmul.f32.gmra.mxu0 %v2111
    %v2113 = vpop.f32.mrf.mxu0
    %v2114 = vadd.f32 0.0, %v2113
    %v2115 = vand.u32 %v1801, 4294901760
    %v2116 = vsub.f32 %v1801, %v2115
    %v2117 = vand.u32 %v2116, 4294901760
    %v2118 = vsub.f32 %v2116, %v2117
    %v2119 = vand.u32 %v2118, 4294901760
    %2120 = vmatmul.f32.gmra.mxu0 %v2119
    %v2121 = vpop.f32.mrf.mxu0
    %v2122 = vadd.f32 0.0, %v2121
    %2123 = vdwg.mxu0
    %v2124 = vand.u32 %v231, 4294901760
    %v2125 = vsub.f32 %v231, %v2124
    %v2126 = vand.u32 %v2125, 4294901760
    %v2127 = vsub.f32 %v2125, %v2126
    %v2128 = vand.u32 %v2127, 4294901760
    %2129 = vmatpush.xpose.msra.mxu0 %v2128
    %v2130 = vand.u32 %v228, 4294901760
    %v2131 = vsub.f32 %v228, %v2130
    %v2132 = vand.u32 %v2131, 4294901760
    %v2133 = vsub.f32 %v2131, %v2132
    %v2134 = vand.u32 %v2133, 4294901760
    %2135 = vmatpush.xpose.msra.mxu0 %v2134
    %v2136 = vand.u32 %v225, 4294901760
    %v2137 = vsub.f32 %v225, %v2136
    %v2138 = vand.u32 %v2137, 4294901760
    %v2139 = vsub.f32 %v2137, %v2138
    %v2140 = vand.u32 %v2139, 4294901760
    %2141 = vmatpush.xpose.msra.mxu0 %v2140
    %v2142 = vand.u32 %v222, 4294901760
    %v2143 = vsub.f32 %v222, %v2142
    %v2144 = vand.u32 %v2143, 4294901760
    %v2145 = vsub.f32 %v2143, %v2144
    %v2146 = vand.u32 %v2145, 4294901760
    %2147 = vmatpush.xpose.msra.mxu0 %v2146
    %v2148 = vand.u32 %v219, 4294901760
    %v2149 = vsub.f32 %v219, %v2148
    %v2150 = vand.u32 %v2149, 4294901760
    %v2151 = vsub.f32 %v2149, %v2150
    %v2152 = vand.u32 %v2151, 4294901760
    %2153 = vmatpush.xpose.msra.mxu0 %v2152
    %v2154 = vand.u32 %v216, 4294901760
    %v2155 = vsub.f32 %v216, %v2154
    %v2156 = vand.u32 %v2155, 4294901760
    %v2157 = vsub.f32 %v2155, %v2156
    %v2158 = vand.u32 %v2157, 4294901760
    %2159 = vmatpush.xpose.msra.mxu0 %v2158
    %v2160 = vand.u32 %v213, 4294901760
    %v2161 = vsub.f32 %v213, %v2160
    %v2162 = vand.u32 %v2161, 4294901760
    %v2163 = vsub.f32 %v2161, %v2162
    %v2164 = vand.u32 %v2163, 4294901760
    %2165 = vmatpush.xpose.msra.mxu0 %v2164
    %v2166 = vand.u32 %v210, 4294901760
    %v2167 = vsub.f32 %v210, %v2166
    %v2168 = vand.u32 %v2167, 4294901760
    %v2169 = vsub.f32 %v2167, %v2168
    %v2170 = vand.u32 %v2169, 4294901760
    %2171 = vmatpush.xpose.msra.mxu0 %v2170
    %v2172 = vand.u32 %v207, 4294901760
    %v2173 = vsub.f32 %v207, %v2172
    %v2174 = vand.u32 %v2173, 4294901760
    %v2175 = vsub.f32 %v2173, %v2174
    %v2176 = vand.u32 %v2175, 4294901760
    %2177 = vmatpush.xpose.msra.mxu0 %v2176
    %v2178 = vand.u32 %v204, 4294901760
    %v2179 = vsub.f32 %v204, %v2178
    %v2180 = vand.u32 %v2179, 4294901760
    %v2181 = vsub.f32 %v2179, %v2180
    %v2182 = vand.u32 %v2181, 4294901760
    %2183 = vmatpush.xpose.msra.mxu0 %v2182
    %v2184 = vand.u32 %v201, 4294901760
    %v2185 = vsub.f32 %v201, %v2184
    %v2186 = vand.u32 %v2185, 4294901760
    %v2187 = vsub.f32 %v2185, %v2186
    %v2188 = vand.u32 %v2187, 4294901760
    %2189 = vmatpush.xpose.msra.mxu0 %v2188
    %v2190 = vand.u32 %v198, 4294901760
    %v2191 = vsub.f32 %v198, %v2190
    %v2192 = vand.u32 %v2191, 4294901760
    %v2193 = vsub.f32 %v2191, %v2192
    %v2194 = vand.u32 %v2193, 4294901760
    %2195 = vmatpush.xpose.msra.mxu0 %v2194
    %v2196 = vand.u32 %v195, 4294901760
    %v2197 = vsub.f32 %v195, %v2196
    %v2198 = vand.u32 %v2197, 4294901760
    %v2199 = vsub.f32 %v2197, %v2198
    %v2200 = vand.u32 %v2199, 4294901760
    %2201 = vmatpush.xpose.msra.mxu0 %v2200
    %v2202 = vand.u32 %v192, 4294901760
    %v2203 = vsub.f32 %v192, %v2202
    %v2204 = vand.u32 %v2203, 4294901760
    %v2205 = vsub.f32 %v2203, %v2204
    %v2206 = vand.u32 %v2205, 4294901760
    %2207 = vmatpush.xpose.msra.mxu0 %v2206
    %v2208 = vand.u32 %v189, 4294901760
    %v2209 = vsub.f32 %v189, %v2208
    %v2210 = vand.u32 %v2209, 4294901760
    %v2211 = vsub.f32 %v2209, %v2210
    %v2212 = vand.u32 %v2211, 4294901760
    %2213 = vmatpush.xpose.msra.mxu0 %v2212
    %v2214 = vand.u32 %v186, 4294901760
    %v2215 = vsub.f32 %v186, %v2214
    %v2216 = vand.u32 %v2215, 4294901760
    %v2217 = vsub.f32 %v2215, %v2216
    %v2218 = vand.u32 %v2217, 4294901760
    %2219 = vmatpush.xpose.msra.mxu0 %v2218
    %v2220 = vand.u32 %v1696, 4294901760
    %2221 = vmatmul.f32.gmra.mxu0 %v2220
    %v2222 = vpop.f32.mrf.mxu0
    %v2223 = vadd.f32 %v1842, %v2222
    %v2224 = vand.u32 %v1699, 4294901760
    %2225 = vmatmul.f32.gmra.mxu0 %v2224
    %v2226 = vpop.f32.mrf.mxu0
    %v2227 = vadd.f32 %v1850, %v2226
    %v2228 = vand.u32 %v1702, 4294901760
    %2229 = vmatmul.f32.gmra.mxu0 %v2228
    %v2230 = vpop.f32.mrf.mxu0
    %v2231 = vadd.f32 %v1858, %v2230
    %v2232 = vand.u32 %v1705, 4294901760
    %2233 = vmatmul.f32.gmra.mxu0 %v2232
    %v2234 = vpop.f32.mrf.mxu0
    %v2235 = vadd.f32 %v1866, %v2234
    %v2236 = vand.u32 %v1708, 4294901760
    %2237 = vmatmul.f32.gmra.mxu0 %v2236
    %v2238 = vpop.f32.mrf.mxu0
    %v2239 = vadd.f32 %v1874, %v2238
    %v2240 = vand.u32 %v1711, 4294901760
    %2241 = vmatmul.f32.gmra.mxu0 %v2240
    %v2242 = vpop.f32.mrf.mxu0
    %v2243 = vadd.f32 %v1882, %v2242
    %v2244 = vand.u32 %v1714, 4294901760
    %2245 = vmatmul.f32.gmra.mxu0 %v2244
    %v2246 = vpop.f32.mrf.mxu0
    %v2247 = vadd.f32 %v1890, %v2246
    %v2248 = vand.u32 %v1717, 4294901760
    %2249 = vmatmul.f32.gmra.mxu0 %v2248
    %v2250 = vpop.f32.mrf.mxu0
    %v2251 = vadd.f32 %v1898, %v2250
    %v2252 = vand.u32 %v1720, 4294901760
    %2253 = vmatmul.f32.gmra.mxu0 %v2252
    %v2254 = vpop.f32.mrf.mxu0
    %v2255 = vadd.f32 %v1906, %v2254
    %v2256 = vand.u32 %v1723, 4294901760
    %2257 = vmatmul.f32.gmra.mxu0 %v2256
    %v2258 = vpop.f32.mrf.mxu0
    %v2259 = vadd.f32 %v1914, %v2258
    %v2260 = vand.u32 %v1726, 4294901760
    %2261 = vmatmul.f32.gmra.mxu0 %v2260
    %v2262 = vpop.f32.mrf.mxu0
    %v2263 = vadd.f32 %v1922, %v2262
    %v2264 = vand.u32 %v1729, 4294901760
    %2265 = vmatmul.f32.gmra.mxu0 %v2264
    %v2266 = vpop.f32.mrf.mxu0
    %v2267 = vadd.f32 %v1930, %v2266
    %v2268 = vand.u32 %v1732, 4294901760
    %2269 = vmatmul.f32.gmra.mxu0 %v2268
    %v2270 = vpop.f32.mrf.mxu0
    %v2271 = vadd.f32 %v1938, %v2270
    %v2272 = vand.u32 %v1735, 4294901760
    %2273 = vmatmul.f32.gmra.mxu0 %v2272
    %v2274 = vpop.f32.mrf.mxu0
    %v2275 = vadd.f32 %v1946, %v2274
    %v2276 = vand.u32 %v1738, 4294901760
    %2277 = vmatmul.f32.gmra.mxu0 %v2276
    %v2278 = vpop.f32.mrf.mxu0
    %v2279 = vadd.f32 %v1954, %v2278
    %v2280 = vand.u32 %v1741, 4294901760
    %2281 = vmatmul.f32.gmra.mxu0 %v2280
    %v2282 = vpop.f32.mrf.mxu0
    %v2283 = vadd.f32 %v1962, %v2282
    %v2284 = vand.u32 %v1744, 4294901760
    %2285 = vmatmul.f32.gmra.mxu0 %v2284
    %v2286 = vpop.f32.mrf.mxu0
    %v2287 = vadd.f32 %v1970, %v2286
    %v2288 = vand.u32 %v1747, 4294901760
    %2289 = vmatmul.f32.gmra.mxu0 %v2288
    %v2290 = vpop.f32.mrf.mxu0
    %v2291 = vadd.f32 %v1978, %v2290
    %v2292 = vand.u32 %v1750, 4294901760
    %2293 = vmatmul.f32.gmra.mxu0 %v2292
    %v2294 = vpop.f32.mrf.mxu0
    %v2295 = vadd.f32 %v1986, %v2294
    %v2296 = vand.u32 %v1753, 4294901760
    %2297 = vmatmul.f32.gmra.mxu0 %v2296
    %v2298 = vpop.f32.mrf.mxu0
    %v2299 = vadd.f32 %v1994, %v2298
    %v2300 = vand.u32 %v1756, 4294901760
    %2301 = vmatmul.f32.gmra.mxu0 %v2300
    %v2302 = vpop.f32.mrf.mxu0
    %v2303 = vadd.f32 %v2002, %v2302
    %v2304 = vand.u32 %v1759, 4294901760
    %2305 = vmatmul.f32.gmra.mxu0 %v2304
    %v2306 = vpop.f32.mrf.mxu0
    %v2307 = vadd.f32 %v2010, %v2306
    %v2308 = vand.u32 %v1762, 4294901760
    %2309 = vmatmul.f32.gmra.mxu0 %v2308
    %v2310 = vpop.f32.mrf.mxu0
    %v2311 = vadd.f32 %v2018, %v2310
    %v2312 = vand.u32 %v1765, 4294901760
    %2313 = vmatmul.f32.gmra.mxu0 %v2312
    %v2314 = vpop.f32.mrf.mxu0
    %v2315 = vadd.f32 %v2026, %v2314
    %v2316 = vand.u32 %v1768, 4294901760
    %2317 = vmatmul.f32.gmra.mxu0 %v2316
    %v2318 = vpop.f32.mrf.mxu0
    %v2319 = vadd.f32 %v2034, %v2318
    %v2320 = vand.u32 %v1771, 4294901760
    %2321 = vmatmul.f32.gmra.mxu0 %v2320
    %v2322 = vpop.f32.mrf.mxu0
    %v2323 = vadd.f32 %v2042, %v2322
    %v2324 = vand.u32 %v1774, 4294901760
    %2325 = vmatmul.f32.gmra.mxu0 %v2324
    %v2326 = vpop.f32.mrf.mxu0
    %v2327 = vadd.f32 %v2050, %v2326
    %v2328 = vand.u32 %v1777, 4294901760
    %2329 = vmatmul.f32.gmra.mxu0 %v2328
    %v2330 = vpop.f32.mrf.mxu0
    %v2331 = vadd.f32 %v2058, %v2330
    %v2332 = vand.u32 %v1780, 4294901760
    %2333 = vmatmul.f32.gmra.mxu0 %v2332
    %v2334 = vpop.f32.mrf.mxu0
    %v2335 = vadd.f32 %v2066, %v2334
    %v2336 = vand.u32 %v1783, 4294901760
    %2337 = vmatmul.f32.gmra.mxu0 %v2336
    %v2338 = vpop.f32.mrf.mxu0
    %v2339 = vadd.f32 %v2074, %v2338
    %v2340 = vand.u32 %v1786, 4294901760
    %2341 = vmatmul.f32.gmra.mxu0 %v2340
    %v2342 = vpop.f32.mrf.mxu0
    %v2343 = vadd.f32 %v2082, %v2342
    %v2344 = vand.u32 %v1789, 4294901760
    %2345 = vmatmul.f32.gmra.mxu0 %v2344
    %v2346 = vpop.f32.mrf.mxu0
    %v2347 = vadd.f32 %v2090, %v2346
    %v2348 = vand.u32 %v1792, 4294901760
    %2349 = vmatmul.f32.gmra.mxu0 %v2348
    %v2350 = vpop.f32.mrf.mxu0
    %v2351 = vadd.f32 %v2098, %v2350
    %v2352 = vand.u32 %v1795, 4294901760
    %2353 = vmatmul.f32.gmra.mxu0 %v2352
    %v2354 = vpop.f32.mrf.mxu0
    %v2355 = vadd.f32 %v2106, %v2354
    %v2356 = vand.u32 %v1798, 4294901760
    %2357 = vmatmul.f32.gmra.mxu0 %v2356
    %v2358 = vpop.f32.mrf.mxu0
    %v2359 = vadd.f32 %v2114, %v2358
    %v2360 = vand.u32 %v1801, 4294901760
    %2361 = vmatmul.f32.gmra.mxu0 %v2360
    %v2362 = vpop.f32.mrf.mxu0
    %v2363 = vadd.f32 %v2122, %v2362
    %2364 = vdwg.mxu0
    %v2365 = vand.u32 %v231, 4294901760
    %v2366 = vsub.f32 %v231, %v2365
    %2367 = vmatpush.xpose.msra.mxu0 %v2366
    %v2368 = vand.u32 %v228, 4294901760
    %v2369 = vsub.f32 %v228, %v2368
    %2370 = vmatpush.xpose.msra.mxu0 %v2369
    %v2371 = vand.u32 %v225, 4294901760
    %v2372 = vsub.f32 %v225, %v2371
    %2373 = vmatpush.xpose.msra.mxu0 %v2372
    %v2374 = vand.u32 %v222, 4294901760
    %v2375 = vsub.f32 %v222, %v2374
    %2376 = vmatpush.xpose.msra.mxu0 %v2375
    %v2377 = vand.u32 %v219, 4294901760
    %v2378 = vsub.f32 %v219, %v2377
    %2379 = vmatpush.xpose.msra.mxu0 %v2378
    %v2380 = vand.u32 %v216, 4294901760
    %v2381 = vsub.f32 %v216, %v2380
    %2382 = vmatpush.xpose.msra.mxu0 %v2381
    %v2383 = vand.u32 %v213, 4294901760
    %v2384 = vsub.f32 %v213, %v2383
    %2385 = vmatpush.xpose.msra.mxu0 %v2384
    %v2386 = vand.u32 %v210, 4294901760
    %v2387 = vsub.f32 %v210, %v2386
    %2388 = vmatpush.xpose.msra.mxu0 %v2387
    %v2389 = vand.u32 %v207, 4294901760
    %v2390 = vsub.f32 %v207, %v2389
    %2391 = vmatpush.xpose.msra.mxu0 %v2390
    %v2392 = vand.u32 %v204, 4294901760
    %v2393 = vsub.f32 %v204, %v2392
    %2394 = vmatpush.xpose.msra.mxu0 %v2393
    %v2395 = vand.u32 %v201, 4294901760
    %v2396 = vsub.f32 %v201, %v2395
    %2397 = vmatpush.xpose.msra.mxu0 %v2396
    %v2398 = vand.u32 %v198, 4294901760
    %v2399 = vsub.f32 %v198, %v2398
    %2400 = vmatpush.xpose.msra.mxu0 %v2399
    %v2401 = vand.u32 %v195, 4294901760
    %v2402 = vsub.f32 %v195, %v2401
    %2403 = vmatpush.xpose.msra.mxu0 %v2402
    %v2404 = vand.u32 %v192, 4294901760
    %v2405 = vsub.f32 %v192, %v2404
    %2406 = vmatpush.xpose.msra.mxu0 %v2405
    %v2407 = vand.u32 %v189, 4294901760
    %v2408 = vsub.f32 %v189, %v2407
    %2409 = vmatpush.xpose.msra.mxu0 %v2408
    %v2410 = vand.u32 %v186, 4294901760
    %v2411 = vsub.f32 %v186, %v2410
    %2412 = vmatpush.xpose.msra.mxu0 %v2411
    %v2413 = vand.u32 %v1696, 4294901760
    %v2414 = vsub.f32 %v1696, %v2413
    %2415 = vmatmul.f32.gmra.mxu0 %v2414
    %v2416 = vpop.f32.mrf.mxu0
    %v2417 = vadd.f32 %v2223, %v2416
    %v2418 = vand.u32 %v1699, 4294901760
    %v2419 = vsub.f32 %v1699, %v2418
    %2420 = vmatmul.f32.gmra.mxu0 %v2419
    %v2421 = vpop.f32.mrf.mxu0
    %v2422 = vadd.f32 %v2227, %v2421
    %v2423 = vand.u32 %v1702, 4294901760
    %v2424 = vsub.f32 %v1702, %v2423
    %2425 = vmatmul.f32.gmra.mxu0 %v2424
    %v2426 = vpop.f32.mrf.mxu0
    %v2427 = vadd.f32 %v2231, %v2426
    %v2428 = vand.u32 %v1705, 4294901760
    %v2429 = vsub.f32 %v1705, %v2428
    %2430 = vmatmul.f32.gmra.mxu0 %v2429
    %v2431 = vpop.f32.mrf.mxu0
    %v2432 = vadd.f32 %v2235, %v2431
    %v2433 = vand.u32 %v1708, 4294901760
    %v2434 = vsub.f32 %v1708, %v2433
    %2435 = vmatmul.f32.gmra.mxu0 %v2434
    %v2436 = vpop.f32.mrf.mxu0
    %v2437 = vadd.f32 %v2239, %v2436
    %v2438 = vand.u32 %v1711, 4294901760
    %v2439 = vsub.f32 %v1711, %v2438
    %2440 = vmatmul.f32.gmra.mxu0 %v2439
    %v2441 = vpop.f32.mrf.mxu0
    %v2442 = vadd.f32 %v2243, %v2441
    %v2443 = vand.u32 %v1714, 4294901760
    %v2444 = vsub.f32 %v1714, %v2443
    %2445 = vmatmul.f32.gmra.mxu0 %v2444
    %v2446 = vpop.f32.mrf.mxu0
    %v2447 = vadd.f32 %v2247, %v2446
    %v2448 = vand.u32 %v1717, 4294901760
    %v2449 = vsub.f32 %v1717, %v2448
    %2450 = vmatmul.f32.gmra.mxu0 %v2449
    %v2451 = vpop.f32.mrf.mxu0
    %v2452 = vadd.f32 %v2251, %v2451
    %v2453 = vand.u32 %v1720, 4294901760
    %v2454 = vsub.f32 %v1720, %v2453
    %2455 = vmatmul.f32.gmra.mxu0 %v2454
    %v2456 = vpop.f32.mrf.mxu0
    %v2457 = vadd.f32 %v2255, %v2456
    %v2458 = vand.u32 %v1723, 4294901760
    %v2459 = vsub.f32 %v1723, %v2458
    %2460 = vmatmul.f32.gmra.mxu0 %v2459
    %v2461 = vpop.f32.mrf.mxu0
    %v2462 = vadd.f32 %v2259, %v2461
    %v2463 = vand.u32 %v1726, 4294901760
    %v2464 = vsub.f32 %v1726, %v2463
    %2465 = vmatmul.f32.gmra.mxu0 %v2464
    %v2466 = vpop.f32.mrf.mxu0
    %v2467 = vadd.f32 %v2263, %v2466
    %v2468 = vand.u32 %v1729, 4294901760
    %v2469 = vsub.f32 %v1729, %v2468
    %2470 = vmatmul.f32.gmra.mxu0 %v2469
    %v2471 = vpop.f32.mrf.mxu0
    %v2472 = vadd.f32 %v2267, %v2471
    %v2473 = vand.u32 %v1732, 4294901760
    %v2474 = vsub.f32 %v1732, %v2473
    %2475 = vmatmul.f32.gmra.mxu0 %v2474
    %v2476 = vpop.f32.mrf.mxu0
    %v2477 = vadd.f32 %v2271, %v2476
    %v2478 = vand.u32 %v1735, 4294901760
    %v2479 = vsub.f32 %v1735, %v2478
    %2480 = vmatmul.f32.gmra.mxu0 %v2479
    %v2481 = vpop.f32.mrf.mxu0
    %v2482 = vadd.f32 %v2275, %v2481
    %v2483 = vand.u32 %v1738, 4294901760
    %v2484 = vsub.f32 %v1738, %v2483
    %2485 = vmatmul.f32.gmra.mxu0 %v2484
    %v2486 = vpop.f32.mrf.mxu0
    %v2487 = vadd.f32 %v2279, %v2486
    %v2488 = vand.u32 %v1741, 4294901760
    %v2489 = vsub.f32 %v1741, %v2488
    %2490 = vmatmul.f32.gmra.mxu0 %v2489
    %v2491 = vpop.f32.mrf.mxu0
    %v2492 = vadd.f32 %v2283, %v2491
    %v2493 = vand.u32 %v1744, 4294901760
    %v2494 = vsub.f32 %v1744, %v2493
    %2495 = vmatmul.f32.gmra.mxu0 %v2494
    %v2496 = vpop.f32.mrf.mxu0
    %v2497 = vadd.f32 %v2287, %v2496
    %v2498 = vand.u32 %v1747, 4294901760
    %v2499 = vsub.f32 %v1747, %v2498
    %2500 = vmatmul.f32.gmra.mxu0 %v2499
    %v2501 = vpop.f32.mrf.mxu0
    %v2502 = vadd.f32 %v2291, %v2501
    %v2503 = vand.u32 %v1750, 4294901760
    %v2504 = vsub.f32 %v1750, %v2503
    %2505 = vmatmul.f32.gmra.mxu0 %v2504
    %v2506 = vpop.f32.mrf.mxu0
    %v2507 = vadd.f32 %v2295, %v2506
    %v2508 = vand.u32 %v1753, 4294901760
    %v2509 = vsub.f32 %v1753, %v2508
    %2510 = vmatmul.f32.gmra.mxu0 %v2509
    %v2511 = vpop.f32.mrf.mxu0
    %v2512 = vadd.f32 %v2299, %v2511
    %v2513 = vand.u32 %v1756, 4294901760
    %v2514 = vsub.f32 %v1756, %v2513
    %2515 = vmatmul.f32.gmra.mxu0 %v2514
    %v2516 = vpop.f32.mrf.mxu0
    %v2517 = vadd.f32 %v2303, %v2516
    %v2518 = vand.u32 %v1759, 4294901760
    %v2519 = vsub.f32 %v1759, %v2518
    %2520 = vmatmul.f32.gmra.mxu0 %v2519
    %v2521 = vpop.f32.mrf.mxu0
    %v2522 = vadd.f32 %v2307, %v2521
    %v2523 = vand.u32 %v1762, 4294901760
    %v2524 = vsub.f32 %v1762, %v2523
    %2525 = vmatmul.f32.gmra.mxu0 %v2524
    %v2526 = vpop.f32.mrf.mxu0
    %v2527 = vadd.f32 %v2311, %v2526
    %v2528 = vand.u32 %v1765, 4294901760
    %v2529 = vsub.f32 %v1765, %v2528
    %2530 = vmatmul.f32.gmra.mxu0 %v2529
    %v2531 = vpop.f32.mrf.mxu0
    %v2532 = vadd.f32 %v2315, %v2531
    %v2533 = vand.u32 %v1768, 4294901760
    %v2534 = vsub.f32 %v1768, %v2533
    %2535 = vmatmul.f32.gmra.mxu0 %v2534
    %v2536 = vpop.f32.mrf.mxu0
    %v2537 = vadd.f32 %v2319, %v2536
    %v2538 = vand.u32 %v1771, 4294901760
    %v2539 = vsub.f32 %v1771, %v2538
    %2540 = vmatmul.f32.gmra.mxu0 %v2539
    %v2541 = vpop.f32.mrf.mxu0
    %v2542 = vadd.f32 %v2323, %v2541
    %v2543 = vand.u32 %v1774, 4294901760
    %v2544 = vsub.f32 %v1774, %v2543
    %2545 = vmatmul.f32.gmra.mxu0 %v2544
    %v2546 = vpop.f32.mrf.mxu0
    %v2547 = vadd.f32 %v2327, %v2546
    %v2548 = vand.u32 %v1777, 4294901760
    %v2549 = vsub.f32 %v1777, %v2548
    %2550 = vmatmul.f32.gmra.mxu0 %v2549
    %v2551 = vpop.f32.mrf.mxu0
    %v2552 = vadd.f32 %v2331, %v2551
    %v2553 = vand.u32 %v1780, 4294901760
    %v2554 = vsub.f32 %v1780, %v2553
    %2555 = vmatmul.f32.gmra.mxu0 %v2554
    %v2556 = vpop.f32.mrf.mxu0
    %v2557 = vadd.f32 %v2335, %v2556
    %v2558 = vand.u32 %v1783, 4294901760
    %v2559 = vsub.f32 %v1783, %v2558
    %2560 = vmatmul.f32.gmra.mxu0 %v2559
    %v2561 = vpop.f32.mrf.mxu0
    %v2562 = vadd.f32 %v2339, %v2561
    %v2563 = vand.u32 %v1786, 4294901760
    %v2564 = vsub.f32 %v1786, %v2563
    %2565 = vmatmul.f32.gmra.mxu0 %v2564
    %v2566 = vpop.f32.mrf.mxu0
    %v2567 = vadd.f32 %v2343, %v2566
    %v2568 = vand.u32 %v1789, 4294901760
    %v2569 = vsub.f32 %v1789, %v2568
    %2570 = vmatmul.f32.gmra.mxu0 %v2569
    %v2571 = vpop.f32.mrf.mxu0
    %v2572 = vadd.f32 %v2347, %v2571
    %v2573 = vand.u32 %v1792, 4294901760
    %v2574 = vsub.f32 %v1792, %v2573
    %2575 = vmatmul.f32.gmra.mxu0 %v2574
    %v2576 = vpop.f32.mrf.mxu0
    %v2577 = vadd.f32 %v2351, %v2576
    %v2578 = vand.u32 %v1795, 4294901760
    %v2579 = vsub.f32 %v1795, %v2578
    %2580 = vmatmul.f32.gmra.mxu0 %v2579
    %v2581 = vpop.f32.mrf.mxu0
    %v2582 = vadd.f32 %v2355, %v2581
    %v2583 = vand.u32 %v1798, 4294901760
    %v2584 = vsub.f32 %v1798, %v2583
    %2585 = vmatmul.f32.gmra.mxu0 %v2584
    %v2586 = vpop.f32.mrf.mxu0
    %v2587 = vadd.f32 %v2359, %v2586
    %v2588 = vand.u32 %v1801, 4294901760
    %v2589 = vsub.f32 %v1801, %v2588
    %2590 = vmatmul.f32.gmra.mxu0 %v2589
    %v2591 = vpop.f32.mrf.mxu0
    %v2592 = vadd.f32 %v2363, %v2591
    %2593 = vdwg.mxu0
    %v2594 = vand.u32 %v231, 4294901760
    %2595 = vmatpush.xpose.msra.mxu0 %v2594
    %v2596 = vand.u32 %v228, 4294901760
    %2597 = vmatpush.xpose.msra.mxu0 %v2596
    %v2598 = vand.u32 %v225, 4294901760
    %2599 = vmatpush.xpose.msra.mxu0 %v2598
    %v2600 = vand.u32 %v222, 4294901760
    %2601 = vmatpush.xpose.msra.mxu0 %v2600
    %v2602 = vand.u32 %v219, 4294901760
    %2603 = vmatpush.xpose.msra.mxu0 %v2602
    %v2604 = vand.u32 %v216, 4294901760
    %2605 = vmatpush.xpose.msra.mxu0 %v2604
    %v2606 = vand.u32 %v213, 4294901760
    %2607 = vmatpush.xpose.msra.mxu0 %v2606
    %v2608 = vand.u32 %v210, 4294901760
    %2609 = vmatpush.xpose.msra.mxu0 %v2608
    %v2610 = vand.u32 %v207, 4294901760
    %2611 = vmatpush.xpose.msra.mxu0 %v2610
    %v2612 = vand.u32 %v204, 4294901760
    %2613 = vmatpush.xpose.msra.mxu0 %v2612
    %v2614 = vand.u32 %v201, 4294901760
    %2615 = vmatpush.xpose.msra.mxu0 %v2614
    %v2616 = vand.u32 %v198, 4294901760
    %2617 = vmatpush.xpose.msra.mxu0 %v2616
    %v2618 = vand.u32 %v195, 4294901760
    %2619 = vmatpush.xpose.msra.mxu0 %v2618
    %v2620 = vand.u32 %v192, 4294901760
    %2621 = vmatpush.xpose.msra.mxu0 %v2620
    %v2622 = vand.u32 %v189, 4294901760
    %2623 = vmatpush.xpose.msra.mxu0 %v2622
    %v2624 = vand.u32 %v186, 4294901760
    %2625 = vmatpush.xpose.msra.mxu0 %v2624
    %v2626 = vand.u32 %v1696, 4294901760
    %v2627 = vsub.f32 %v1696, %v2626
    %v2628 = vand.u32 %v2627, 4294901760
    %2629 = vmatmul.f32.gmra.mxu0 %v2628
    %v2630 = vpop.f32.mrf.mxu0
    %v2631 = vadd.f32 %v2417, %v2630
    %v2632 = vand.u32 %v1699, 4294901760
    %v2633 = vsub.f32 %v1699, %v2632
    %v2634 = vand.u32 %v2633, 4294901760
    %2635 = vmatmul.f32.gmra.mxu0 %v2634
    %v2636 = vpop.f32.mrf.mxu0
    %v2637 = vadd.f32 %v2422, %v2636
    %v2638 = vand.u32 %v1702, 4294901760
    %v2639 = vsub.f32 %v1702, %v2638
    %v2640 = vand.u32 %v2639, 4294901760
    %2641 = vmatmul.f32.gmra.mxu0 %v2640
    %v2642 = vpop.f32.mrf.mxu0
    %v2643 = vadd.f32 %v2427, %v2642
    %v2644 = vand.u32 %v1705, 4294901760
    %v2645 = vsub.f32 %v1705, %v2644
    %v2646 = vand.u32 %v2645, 4294901760
    %2647 = vmatmul.f32.gmra.mxu0 %v2646
    %v2648 = vpop.f32.mrf.mxu0
    %v2649 = vadd.f32 %v2432, %v2648
    %v2650 = vand.u32 %v1708, 4294901760
    %v2651 = vsub.f32 %v1708, %v2650
    %v2652 = vand.u32 %v2651, 4294901760
    %2653 = vmatmul.f32.gmra.mxu0 %v2652
    %v2654 = vpop.f32.mrf.mxu0
    %v2655 = vadd.f32 %v2437, %v2654
    %v2656 = vand.u32 %v1711, 4294901760
    %v2657 = vsub.f32 %v1711, %v2656
    %v2658 = vand.u32 %v2657, 4294901760
    %2659 = vmatmul.f32.gmra.mxu0 %v2658
    %v2660 = vpop.f32.mrf.mxu0
    %v2661 = vadd.f32 %v2442, %v2660
    %v2662 = vand.u32 %v1714, 4294901760
    %v2663 = vsub.f32 %v1714, %v2662
    %v2664 = vand.u32 %v2663, 4294901760
    %2665 = vmatmul.f32.gmra.mxu0 %v2664
    %v2666 = vpop.f32.mrf.mxu0
    %v2667 = vadd.f32 %v2447, %v2666
    %v2668 = vand.u32 %v1717, 4294901760
    %v2669 = vsub.f32 %v1717, %v2668
    %v2670 = vand.u32 %v2669, 4294901760
    %2671 = vmatmul.f32.gmra.mxu0 %v2670
    %v2672 = vpop.f32.mrf.mxu0
    %v2673 = vadd.f32 %v2452, %v2672
    %v2674 = vand.u32 %v1720, 4294901760
    %v2675 = vsub.f32 %v1720, %v2674
    %v2676 = vand.u32 %v2675, 4294901760
    %2677 = vmatmul.f32.gmra.mxu0 %v2676
    %v2678 = vpop.f32.mrf.mxu0
    %v2679 = vadd.f32 %v2457, %v2678
    %v2680 = vand.u32 %v1723, 4294901760
    %v2681 = vsub.f32 %v1723, %v2680
    %v2682 = vand.u32 %v2681, 4294901760
    %2683 = vmatmul.f32.gmra.mxu0 %v2682
    %v2684 = vpop.f32.mrf.mxu0
    %v2685 = vadd.f32 %v2462, %v2684
    %v2686 = vand.u32 %v1726, 4294901760
    %v2687 = vsub.f32 %v1726, %v2686
    %v2688 = vand.u32 %v2687, 4294901760
    %2689 = vmatmul.f32.gmra.mxu0 %v2688
    %v2690 = vpop.f32.mrf.mxu0
    %v2691 = vadd.f32 %v2467, %v2690
    %v2692 = vand.u32 %v1729, 4294901760
    %v2693 = vsub.f32 %v1729, %v2692
    %v2694 = vand.u32 %v2693, 4294901760
    %2695 = vmatmul.f32.gmra.mxu0 %v2694
    %v2696 = vpop.f32.mrf.mxu0
    %v2697 = vadd.f32 %v2472, %v2696
    %v2698 = vand.u32 %v1732, 4294901760
    %v2699 = vsub.f32 %v1732, %v2698
    %v2700 = vand.u32 %v2699, 4294901760
    %2701 = vmatmul.f32.gmra.mxu0 %v2700
    %v2702 = vpop.f32.mrf.mxu0
    %v2703 = vadd.f32 %v2477, %v2702
    %v2704 = vand.u32 %v1735, 4294901760
    %v2705 = vsub.f32 %v1735, %v2704
    %v2706 = vand.u32 %v2705, 4294901760
    %2707 = vmatmul.f32.gmra.mxu0 %v2706
    %v2708 = vpop.f32.mrf.mxu0
    %v2709 = vadd.f32 %v2482, %v2708
    %v2710 = vand.u32 %v1738, 4294901760
    %v2711 = vsub.f32 %v1738, %v2710
    %v2712 = vand.u32 %v2711, 4294901760
    %2713 = vmatmul.f32.gmra.mxu0 %v2712
    %v2714 = vpop.f32.mrf.mxu0
    %v2715 = vadd.f32 %v2487, %v2714
    %v2716 = vand.u32 %v1741, 4294901760
    %v2717 = vsub.f32 %v1741, %v2716
    %v2718 = vand.u32 %v2717, 4294901760
    %2719 = vmatmul.f32.gmra.mxu0 %v2718
    %v2720 = vpop.f32.mrf.mxu0
    %v2721 = vadd.f32 %v2492, %v2720
    %v2722 = vand.u32 %v1744, 4294901760
    %v2723 = vsub.f32 %v1744, %v2722
    %v2724 = vand.u32 %v2723, 4294901760
    %2725 = vmatmul.f32.gmra.mxu0 %v2724
    %v2726 = vpop.f32.mrf.mxu0
    %v2727 = vadd.f32 %v2497, %v2726
    %v2728 = vand.u32 %v1747, 4294901760
    %v2729 = vsub.f32 %v1747, %v2728
    %v2730 = vand.u32 %v2729, 4294901760
    %2731 = vmatmul.f32.gmra.mxu0 %v2730
    %v2732 = vpop.f32.mrf.mxu0
    %v2733 = vadd.f32 %v2502, %v2732
    %v2734 = vand.u32 %v1750, 4294901760
    %v2735 = vsub.f32 %v1750, %v2734
    %v2736 = vand.u32 %v2735, 4294901760
    %2737 = vmatmul.f32.gmra.mxu0 %v2736
    %v2738 = vpop.f32.mrf.mxu0
    %v2739 = vadd.f32 %v2507, %v2738
    %v2740 = vand.u32 %v1753, 4294901760
    %v2741 = vsub.f32 %v1753, %v2740
    %v2742 = vand.u32 %v2741, 4294901760
    %2743 = vmatmul.f32.gmra.mxu0 %v2742
    %v2744 = vpop.f32.mrf.mxu0
    %v2745 = vadd.f32 %v2512, %v2744
    %v2746 = vand.u32 %v1756, 4294901760
    %v2747 = vsub.f32 %v1756, %v2746
    %v2748 = vand.u32 %v2747, 4294901760
    %2749 = vmatmul.f32.gmra.mxu0 %v2748
    %v2750 = vpop.f32.mrf.mxu0
    %v2751 = vadd.f32 %v2517, %v2750
    %v2752 = vand.u32 %v1759, 4294901760
    %v2753 = vsub.f32 %v1759, %v2752
    %v2754 = vand.u32 %v2753, 4294901760
    %2755 = vmatmul.f32.gmra.mxu0 %v2754
    %v2756 = vpop.f32.mrf.mxu0
    %v2757 = vadd.f32 %v2522, %v2756
    %v2758 = vand.u32 %v1762, 4294901760
    %v2759 = vsub.f32 %v1762, %v2758
    %v2760 = vand.u32 %v2759, 4294901760
    %2761 = vmatmul.f32.gmra.mxu0 %v2760
    %v2762 = vpop.f32.mrf.mxu0
    %v2763 = vadd.f32 %v2527, %v2762
    %v2764 = vand.u32 %v1765, 4294901760
    %v2765 = vsub.f32 %v1765, %v2764
    %v2766 = vand.u32 %v2765, 4294901760
    %2767 = vmatmul.f32.gmra.mxu0 %v2766
    %v2768 = vpop.f32.mrf.mxu0
    %v2769 = vadd.f32 %v2532, %v2768
    %v2770 = vand.u32 %v1768, 4294901760
    %v2771 = vsub.f32 %v1768, %v2770
    %v2772 = vand.u32 %v2771, 4294901760
    %2773 = vmatmul.f32.gmra.mxu0 %v2772
    %v2774 = vpop.f32.mrf.mxu0
    %v2775 = vadd.f32 %v2537, %v2774
    %v2776 = vand.u32 %v1771, 4294901760
    %v2777 = vsub.f32 %v1771, %v2776
    %v2778 = vand.u32 %v2777, 4294901760
    %2779 = vmatmul.f32.gmra.mxu0 %v2778
    %v2780 = vpop.f32.mrf.mxu0
    %v2781 = vadd.f32 %v2542, %v2780
    %v2782 = vand.u32 %v1774, 4294901760
    %v2783 = vsub.f32 %v1774, %v2782
    %v2784 = vand.u32 %v2783, 4294901760
    %2785 = vmatmul.f32.gmra.mxu0 %v2784
    %v2786 = vpop.f32.mrf.mxu0
    %v2787 = vadd.f32 %v2547, %v2786
    %v2788 = vand.u32 %v1777, 4294901760
    %v2789 = vsub.f32 %v1777, %v2788
    %v2790 = vand.u32 %v2789, 4294901760
    %2791 = vmatmul.f32.gmra.mxu0 %v2790
    %v2792 = vpop.f32.mrf.mxu0
    %v2793 = vadd.f32 %v2552, %v2792
    %v2794 = vand.u32 %v1780, 4294901760
    %v2795 = vsub.f32 %v1780, %v2794
    %v2796 = vand.u32 %v2795, 4294901760
    %2797 = vmatmul.f32.gmra.mxu0 %v2796
    %v2798 = vpop.f32.mrf.mxu0
    %v2799 = vadd.f32 %v2557, %v2798
    %v2800 = vand.u32 %v1783, 4294901760
    %v2801 = vsub.f32 %v1783, %v2800
    %v2802 = vand.u32 %v2801, 4294901760
    %2803 = vmatmul.f32.gmra.mxu0 %v2802
    %v2804 = vpop.f32.mrf.mxu0
    %v2805 = vadd.f32 %v2562, %v2804
    %v2806 = vand.u32 %v1786, 4294901760
    %v2807 = vsub.f32 %v1786, %v2806
    %v2808 = vand.u32 %v2807, 4294901760
    %2809 = vmatmul.f32.gmra.mxu0 %v2808
    %v2810 = vpop.f32.mrf.mxu0
    %v2811 = vadd.f32 %v2567, %v2810
    %v2812 = vand.u32 %v1789, 4294901760
    %v2813 = vsub.f32 %v1789, %v2812
    %v2814 = vand.u32 %v2813, 4294901760
    %2815 = vmatmul.f32.gmra.mxu0 %v2814
    %v2816 = vpop.f32.mrf.mxu0
    %v2817 = vadd.f32 %v2572, %v2816
    %v2818 = vand.u32 %v1792, 4294901760
    %v2819 = vsub.f32 %v1792, %v2818
    %v2820 = vand.u32 %v2819, 4294901760
    %2821 = vmatmul.f32.gmra.mxu0 %v2820
    %v2822 = vpop.f32.mrf.mxu0
    %v2823 = vadd.f32 %v2577, %v2822
    %v2824 = vand.u32 %v1795, 4294901760
    %v2825 = vsub.f32 %v1795, %v2824
    %v2826 = vand.u32 %v2825, 4294901760
    %2827 = vmatmul.f32.gmra.mxu0 %v2826
    %v2828 = vpop.f32.mrf.mxu0
    %v2829 = vadd.f32 %v2582, %v2828
    %v2830 = vand.u32 %v1798, 4294901760
    %v2831 = vsub.f32 %v1798, %v2830
    %v2832 = vand.u32 %v2831, 4294901760
    %2833 = vmatmul.f32.gmra.mxu0 %v2832
    %v2834 = vpop.f32.mrf.mxu0
    %v2835 = vadd.f32 %v2587, %v2834
    %v2836 = vand.u32 %v1801, 4294901760
    %v2837 = vsub.f32 %v1801, %v2836
    %v2838 = vand.u32 %v2837, 4294901760
    %2839 = vmatmul.f32.gmra.mxu0 %v2838
    %v2840 = vpop.f32.mrf.mxu0
    %v2841 = vadd.f32 %v2592, %v2840
    %2842 = vdwg.mxu0
    %v2843 = vand.u32 %v231, 4294901760
    %v2844 = vsub.f32 %v231, %v2843
    %v2845 = vand.u32 %v2844, 4294901760
    %2846 = vmatpush.xpose.msra.mxu0 %v2845
    %v2847 = vand.u32 %v228, 4294901760
    %v2848 = vsub.f32 %v228, %v2847
    %v2849 = vand.u32 %v2848, 4294901760
    %2850 = vmatpush.xpose.msra.mxu0 %v2849
    %v2851 = vand.u32 %v225, 4294901760
    %v2852 = vsub.f32 %v225, %v2851
    %v2853 = vand.u32 %v2852, 4294901760
    %2854 = vmatpush.xpose.msra.mxu0 %v2853
    %v2855 = vand.u32 %v222, 4294901760
    %v2856 = vsub.f32 %v222, %v2855
    %v2857 = vand.u32 %v2856, 4294901760
    %2858 = vmatpush.xpose.msra.mxu0 %v2857
    %v2859 = vand.u32 %v219, 4294901760
    %v2860 = vsub.f32 %v219, %v2859
    %v2861 = vand.u32 %v2860, 4294901760
    %2862 = vmatpush.xpose.msra.mxu0 %v2861
    %v2863 = vand.u32 %v216, 4294901760
    %v2864 = vsub.f32 %v216, %v2863
    %v2865 = vand.u32 %v2864, 4294901760
    %2866 = vmatpush.xpose.msra.mxu0 %v2865
    %v2867 = vand.u32 %v213, 4294901760
    %v2868 = vsub.f32 %v213, %v2867
    %v2869 = vand.u32 %v2868, 4294901760
    %2870 = vmatpush.xpose.msra.mxu0 %v2869
    %v2871 = vand.u32 %v210, 4294901760
    %v2872 = vsub.f32 %v210, %v2871
    %v2873 = vand.u32 %v2872, 4294901760
    %2874 = vmatpush.xpose.msra.mxu0 %v2873
    %v2875 = vand.u32 %v207, 4294901760
    %v2876 = vsub.f32 %v207, %v2875
    %v2877 = vand.u32 %v2876, 4294901760
    %2878 = vmatpush.xpose.msra.mxu0 %v2877
    %v2879 = vand.u32 %v204, 4294901760
    %v2880 = vsub.f32 %v204, %v2879
    %v2881 = vand.u32 %v2880, 4294901760
    %2882 = vmatpush.xpose.msra.mxu0 %v2881
    %v2883 = vand.u32 %v201, 4294901760
    %v2884 = vsub.f32 %v201, %v2883
    %v2885 = vand.u32 %v2884, 4294901760
    %2886 = vmatpush.xpose.msra.mxu0 %v2885
    %v2887 = vand.u32 %v198, 4294901760
    %v2888 = vsub.f32 %v198, %v2887
    %v2889 = vand.u32 %v2888, 4294901760
    %2890 = vmatpush.xpose.msra.mxu0 %v2889
    %v2891 = vand.u32 %v195, 4294901760
    %v2892 = vsub.f32 %v195, %v2891
    %v2893 = vand.u32 %v2892, 4294901760
    %2894 = vmatpush.xpose.msra.mxu0 %v2893
    %v2895 = vand.u32 %v192, 4294901760
    %v2896 = vsub.f32 %v192, %v2895
    %v2897 = vand.u32 %v2896, 4294901760
    %2898 = vmatpush.xpose.msra.mxu0 %v2897
    %v2899 = vand.u32 %v189, 4294901760
    %v2900 = vsub.f32 %v189, %v2899
    %v2901 = vand.u32 %v2900, 4294901760
    %2902 = vmatpush.xpose.msra.mxu0 %v2901
    %v2903 = vand.u32 %v186, 4294901760
    %v2904 = vsub.f32 %v186, %v2903
    %v2905 = vand.u32 %v2904, 4294901760
    %2906 = vmatpush.xpose.msra.mxu0 %v2905
    %v2907 = vand.u32 %v1696, 4294901760
    %2908 = vmatmul.f32.gmra.mxu0 %v2907
    %v2909 = vpop.f32.mrf.mxu0
    %v2910 = vadd.f32 %v2631, %v2909
    %v2911 = vand.u32 %v1699, 4294901760
    %2912 = vmatmul.f32.gmra.mxu0 %v2911
    %v2913 = vpop.f32.mrf.mxu0
    %v2914 = vadd.f32 %v2637, %v2913
    %v2915 = vand.u32 %v1702, 4294901760
    %2916 = vmatmul.f32.gmra.mxu0 %v2915
    %v2917 = vpop.f32.mrf.mxu0
    %v2918 = vadd.f32 %v2643, %v2917
    %v2919 = vand.u32 %v1705, 4294901760
    %2920 = vmatmul.f32.gmra.mxu0 %v2919
    %v2921 = vpop.f32.mrf.mxu0
    %v2922 = vadd.f32 %v2649, %v2921
    %v2923 = vand.u32 %v1708, 4294901760
    %2924 = vmatmul.f32.gmra.mxu0 %v2923
    %v2925 = vpop.f32.mrf.mxu0
    %v2926 = vadd.f32 %v2655, %v2925
    %v2927 = vand.u32 %v1711, 4294901760
    %2928 = vmatmul.f32.gmra.mxu0 %v2927
    %v2929 = vpop.f32.mrf.mxu0
    %v2930 = vadd.f32 %v2661, %v2929
    %v2931 = vand.u32 %v1714, 4294901760
    %2932 = vmatmul.f32.gmra.mxu0 %v2931
    %v2933 = vpop.f32.mrf.mxu0
    %v2934 = vadd.f32 %v2667, %v2933
    %v2935 = vand.u32 %v1717, 4294901760
    %2936 = vmatmul.f32.gmra.mxu0 %v2935
    %v2937 = vpop.f32.mrf.mxu0
    %v2938 = vadd.f32 %v2673, %v2937
    %v2939 = vand.u32 %v1720, 4294901760
    %2940 = vmatmul.f32.gmra.mxu0 %v2939
    %v2941 = vpop.f32.mrf.mxu0
    %v2942 = vadd.f32 %v2679, %v2941
    %v2943 = vand.u32 %v1723, 4294901760
    %2944 = vmatmul.f32.gmra.mxu0 %v2943
    %v2945 = vpop.f32.mrf.mxu0
    %v2946 = vadd.f32 %v2685, %v2945
    %v2947 = vand.u32 %v1726, 4294901760
    %2948 = vmatmul.f32.gmra.mxu0 %v2947
    %v2949 = vpop.f32.mrf.mxu0
    %v2950 = vadd.f32 %v2691, %v2949
    %v2951 = vand.u32 %v1729, 4294901760
    %2952 = vmatmul.f32.gmra.mxu0 %v2951
    %v2953 = vpop.f32.mrf.mxu0
    %v2954 = vadd.f32 %v2697, %v2953
    %v2955 = vand.u32 %v1732, 4294901760
    %2956 = vmatmul.f32.gmra.mxu0 %v2955
    %v2957 = vpop.f32.mrf.mxu0
    %v2958 = vadd.f32 %v2703, %v2957
    %v2959 = vand.u32 %v1735, 4294901760
    %2960 = vmatmul.f32.gmra.mxu0 %v2959
    %v2961 = vpop.f32.mrf.mxu0
    %v2962 = vadd.f32 %v2709, %v2961
    %v2963 = vand.u32 %v1738, 4294901760
    %2964 = vmatmul.f32.gmra.mxu0 %v2963
    %v2965 = vpop.f32.mrf.mxu0
    %v2966 = vadd.f32 %v2715, %v2965
    %v2967 = vand.u32 %v1741, 4294901760
    %2968 = vmatmul.f32.gmra.mxu0 %v2967
    %v2969 = vpop.f32.mrf.mxu0
    %v2970 = vadd.f32 %v2721, %v2969
    %v2971 = vand.u32 %v1744, 4294901760
    %2972 = vmatmul.f32.gmra.mxu0 %v2971
    %v2973 = vpop.f32.mrf.mxu0
    %v2974 = vadd.f32 %v2727, %v2973
    %v2975 = vand.u32 %v1747, 4294901760
    %2976 = vmatmul.f32.gmra.mxu0 %v2975
    %v2977 = vpop.f32.mrf.mxu0
    %v2978 = vadd.f32 %v2733, %v2977
    %v2979 = vand.u32 %v1750, 4294901760
    %2980 = vmatmul.f32.gmra.mxu0 %v2979
    %v2981 = vpop.f32.mrf.mxu0
    %v2982 = vadd.f32 %v2739, %v2981
    %v2983 = vand.u32 %v1753, 4294901760
    %2984 = vmatmul.f32.gmra.mxu0 %v2983
    %v2985 = vpop.f32.mrf.mxu0
    %v2986 = vadd.f32 %v2745, %v2985
    %v2987 = vand.u32 %v1756, 4294901760
    %2988 = vmatmul.f32.gmra.mxu0 %v2987
    %v2989 = vpop.f32.mrf.mxu0
    %v2990 = vadd.f32 %v2751, %v2989
    %v2991 = vand.u32 %v1759, 4294901760
    %2992 = vmatmul.f32.gmra.mxu0 %v2991
    %v2993 = vpop.f32.mrf.mxu0
    %v2994 = vadd.f32 %v2757, %v2993
    %v2995 = vand.u32 %v1762, 4294901760
    %2996 = vmatmul.f32.gmra.mxu0 %v2995
    %v2997 = vpop.f32.mrf.mxu0
    %v2998 = vadd.f32 %v2763, %v2997
    %v2999 = vand.u32 %v1765, 4294901760
    %3000 = vmatmul.f32.gmra.mxu0 %v2999
    %v3001 = vpop.f32.mrf.mxu0
    %v3002 = vadd.f32 %v2769, %v3001
    %v3003 = vand.u32 %v1768, 4294901760
    %3004 = vmatmul.f32.gmra.mxu0 %v3003
    %v3005 = vpop.f32.mrf.mxu0
    %v3006 = vadd.f32 %v2775, %v3005
    %v3007 = vand.u32 %v1771, 4294901760
    %3008 = vmatmul.f32.gmra.mxu0 %v3007
    %v3009 = vpop.f32.mrf.mxu0
    %v3010 = vadd.f32 %v2781, %v3009
    %v3011 = vand.u32 %v1774, 4294901760
    %3012 = vmatmul.f32.gmra.mxu0 %v3011
    %v3013 = vpop.f32.mrf.mxu0
    %v3014 = vadd.f32 %v2787, %v3013
    %v3015 = vand.u32 %v1777, 4294901760
    %3016 = vmatmul.f32.gmra.mxu0 %v3015
    %v3017 = vpop.f32.mrf.mxu0
    %v3018 = vadd.f32 %v2793, %v3017
    %v3019 = vand.u32 %v1780, 4294901760
    %3020 = vmatmul.f32.gmra.mxu0 %v3019
    %v3021 = vpop.f32.mrf.mxu0
    %v3022 = vadd.f32 %v2799, %v3021
    %v3023 = vand.u32 %v1783, 4294901760
    %3024 = vmatmul.f32.gmra.mxu0 %v3023
    %v3025 = vpop.f32.mrf.mxu0
    %v3026 = vadd.f32 %v2805, %v3025
    %v3027 = vand.u32 %v1786, 4294901760
    %3028 = vmatmul.f32.gmra.mxu0 %v3027
    %v3029 = vpop.f32.mrf.mxu0
    %v3030 = vadd.f32 %v2811, %v3029
    %v3031 = vand.u32 %v1789, 4294901760
    %3032 = vmatmul.f32.gmra.mxu0 %v3031
    %v3033 = vpop.f32.mrf.mxu0
    %v3034 = vadd.f32 %v2817, %v3033
    %v3035 = vand.u32 %v1792, 4294901760
    %3036 = vmatmul.f32.gmra.mxu0 %v3035
    %v3037 = vpop.f32.mrf.mxu0
    %v3038 = vadd.f32 %v2823, %v3037
    %v3039 = vand.u32 %v1795, 4294901760
    %3040 = vmatmul.f32.gmra.mxu0 %v3039
    %v3041 = vpop.f32.mrf.mxu0
    %v3042 = vadd.f32 %v2829, %v3041
    %v3043 = vand.u32 %v1798, 4294901760
    %3044 = vmatmul.f32.gmra.mxu0 %v3043
    %v3045 = vpop.f32.mrf.mxu0
    %v3046 = vadd.f32 %v2835, %v3045
    %v3047 = vand.u32 %v1801, 4294901760
    %3048 = vmatmul.f32.gmra.mxu0 %v3047
    %v3049 = vpop.f32.mrf.mxu0
    %v3050 = vadd.f32 %v2841, %v3049
    %3051 = vdwg.mxu0
    %v3052 = vand.u32 %v231, 4294901760
    %3053 = vmatpush.xpose.msra.mxu0 %v3052
    %v3054 = vand.u32 %v228, 4294901760
    %3055 = vmatpush.xpose.msra.mxu0 %v3054
    %v3056 = vand.u32 %v225, 4294901760
    %3057 = vmatpush.xpose.msra.mxu0 %v3056
    %v3058 = vand.u32 %v222, 4294901760
    %3059 = vmatpush.xpose.msra.mxu0 %v3058
    %v3060 = vand.u32 %v219, 4294901760
    %3061 = vmatpush.xpose.msra.mxu0 %v3060
    %v3062 = vand.u32 %v216, 4294901760
    %3063 = vmatpush.xpose.msra.mxu0 %v3062
    %v3064 = vand.u32 %v213, 4294901760
    %3065 = vmatpush.xpose.msra.mxu0 %v3064
    %v3066 = vand.u32 %v210, 4294901760
    %3067 = vmatpush.xpose.msra.mxu0 %v3066
    %v3068 = vand.u32 %v207, 4294901760
    %3069 = vmatpush.xpose.msra.mxu0 %v3068
    %v3070 = vand.u32 %v204, 4294901760
    %3071 = vmatpush.xpose.msra.mxu0 %v3070
    %v3072 = vand.u32 %v201, 4294901760
    %3073 = vmatpush.xpose.msra.mxu0 %v3072
    %v3074 = vand.u32 %v198, 4294901760
    %3075 = vmatpush.xpose.msra.mxu0 %v3074
    %v3076 = vand.u32 %v195, 4294901760
    %3077 = vmatpush.xpose.msra.mxu0 %v3076
    %v3078 = vand.u32 %v192, 4294901760
    %3079 = vmatpush.xpose.msra.mxu0 %v3078
    %v3080 = vand.u32 %v189, 4294901760
    %3081 = vmatpush.xpose.msra.mxu0 %v3080
    %v3082 = vand.u32 %v186, 4294901760
    %3083 = vmatpush.xpose.msra.mxu0 %v3082
    %v3084 = vand.u32 %v1696, 4294901760
    %3085 = vmatmul.f32.gmra.mxu0 %v3084
    %v3086 = vpop.f32.mrf.mxu0
    %v3087 = vadd.f32 %v2910, %v3086
    %v3088 = vand.u32 %v1699, 4294901760
    %3089 = vmatmul.f32.gmra.mxu0 %v3088
    %v3090 = vpop.f32.mrf.mxu0
    %v3091 = vadd.f32 %v2914, %v3090
    %v3092 = vand.u32 %v1702, 4294901760
    %3093 = vmatmul.f32.gmra.mxu0 %v3092
    %v3094 = vpop.f32.mrf.mxu0
    %v3095 = vadd.f32 %v2918, %v3094
    %v3096 = vand.u32 %v1705, 4294901760
    %3097 = vmatmul.f32.gmra.mxu0 %v3096
    %v3098 = vpop.f32.mrf.mxu0
    %v3099 = vadd.f32 %v2922, %v3098
    %v3100 = vand.u32 %v1708, 4294901760
    %3101 = vmatmul.f32.gmra.mxu0 %v3100
    %v3102 = vpop.f32.mrf.mxu0
    %v3103 = vadd.f32 %v2926, %v3102
    %v3104 = vand.u32 %v1711, 4294901760
    %3105 = vmatmul.f32.gmra.mxu0 %v3104
    %v3106 = vpop.f32.mrf.mxu0
    %v3107 = vadd.f32 %v2930, %v3106
    %v3108 = vand.u32 %v1714, 4294901760
    %3109 = vmatmul.f32.gmra.mxu0 %v3108
    %v3110 = vpop.f32.mrf.mxu0
    %v3111 = vadd.f32 %v2934, %v3110
    %v3112 = vand.u32 %v1717, 4294901760
    %3113 = vmatmul.f32.gmra.mxu0 %v3112
    %v3114 = vpop.f32.mrf.mxu0
    %v3115 = vadd.f32 %v2938, %v3114
    %v3116 = vand.u32 %v1720, 4294901760
    %3117 = vmatmul.f32.gmra.mxu0 %v3116
    %v3118 = vpop.f32.mrf.mxu0
    %v3119 = vadd.f32 %v2942, %v3118
    %v3120 = vand.u32 %v1723, 4294901760
    %3121 = vmatmul.f32.gmra.mxu0 %v3120
    %v3122 = vpop.f32.mrf.mxu0
    %v3123 = vadd.f32 %v2946, %v3122
    %v3124 = vand.u32 %v1726, 4294901760
    %3125 = vmatmul.f32.gmra.mxu0 %v3124
    %v3126 = vpop.f32.mrf.mxu0
    %v3127 = vadd.f32 %v2950, %v3126
    %v3128 = vand.u32 %v1729, 4294901760
    %3129 = vmatmul.f32.gmra.mxu0 %v3128
    %v3130 = vpop.f32.mrf.mxu0
    %v3131 = vadd.f32 %v2954, %v3130
    %v3132 = vand.u32 %v1732, 4294901760
    %3133 = vmatmul.f32.gmra.mxu0 %v3132
    %v3134 = vpop.f32.mrf.mxu0
    %v3135 = vadd.f32 %v2958, %v3134
    %v3136 = vand.u32 %v1735, 4294901760
    %3137 = vmatmul.f32.gmra.mxu0 %v3136
    %v3138 = vpop.f32.mrf.mxu0
    %v3139 = vadd.f32 %v2962, %v3138
    %v3140 = vand.u32 %v1738, 4294901760
    %3141 = vmatmul.f32.gmra.mxu0 %v3140
    %v3142 = vpop.f32.mrf.mxu0
    %v3143 = vadd.f32 %v2966, %v3142
    %v3144 = vand.u32 %v1741, 4294901760
    %3145 = vmatmul.f32.gmra.mxu0 %v3144
    %v3146 = vpop.f32.mrf.mxu0
    %v3147 = vadd.f32 %v2970, %v3146
    %v3148 = vand.u32 %v1744, 4294901760
    %3149 = vmatmul.f32.gmra.mxu0 %v3148
    %v3150 = vpop.f32.mrf.mxu0
    %v3151 = vadd.f32 %v2974, %v3150
    %v3152 = vand.u32 %v1747, 4294901760
    %3153 = vmatmul.f32.gmra.mxu0 %v3152
    %v3154 = vpop.f32.mrf.mxu0
    %v3155 = vadd.f32 %v2978, %v3154
    %v3156 = vand.u32 %v1750, 4294901760
    %3157 = vmatmul.f32.gmra.mxu0 %v3156
    %v3158 = vpop.f32.mrf.mxu0
    %v3159 = vadd.f32 %v2982, %v3158
    %v3160 = vand.u32 %v1753, 4294901760
    %3161 = vmatmul.f32.gmra.mxu0 %v3160
    %v3162 = vpop.f32.mrf.mxu0
    %v3163 = vadd.f32 %v2986, %v3162
    %v3164 = vand.u32 %v1756, 4294901760
    %3165 = vmatmul.f32.gmra.mxu0 %v3164
    %v3166 = vpop.f32.mrf.mxu0
    %v3167 = vadd.f32 %v2990, %v3166
    %v3168 = vand.u32 %v1759, 4294901760
    %3169 = vmatmul.f32.gmra.mxu0 %v3168
    %v3170 = vpop.f32.mrf.mxu0
    %v3171 = vadd.f32 %v2994, %v3170
    %v3172 = vand.u32 %v1762, 4294901760
    %3173 = vmatmul.f32.gmra.mxu0 %v3172
    %v3174 = vpop.f32.mrf.mxu0
    %v3175 = vadd.f32 %v2998, %v3174
    %v3176 = vand.u32 %v1765, 4294901760
    %3177 = vmatmul.f32.gmra.mxu0 %v3176
    %v3178 = vpop.f32.mrf.mxu0
    %v3179 = vadd.f32 %v3002, %v3178
    %v3180 = vand.u32 %v1768, 4294901760
    %3181 = vmatmul.f32.gmra.mxu0 %v3180
    %v3182 = vpop.f32.mrf.mxu0
    %v3183 = vadd.f32 %v3006, %v3182
    %v3184 = vand.u32 %v1771, 4294901760
    %3185 = vmatmul.f32.gmra.mxu0 %v3184
    %v3186 = vpop.f32.mrf.mxu0
    %v3187 = vadd.f32 %v3010, %v3186
    %v3188 = vand.u32 %v1774, 4294901760
    %3189 = vmatmul.f32.gmra.mxu0 %v3188
    %v3190 = vpop.f32.mrf.mxu0
    %v3191 = vadd.f32 %v3014, %v3190
    %v3192 = vand.u32 %v1777, 4294901760
    %3193 = vmatmul.f32.gmra.mxu0 %v3192
    %v3194 = vpop.f32.mrf.mxu0
    %v3195 = vadd.f32 %v3018, %v3194
    %v3196 = vand.u32 %v1780, 4294901760
    %3197 = vmatmul.f32.gmra.mxu0 %v3196
    %v3198 = vpop.f32.mrf.mxu0
    %v3199 = vadd.f32 %v3022, %v3198
    %v3200 = vand.u32 %v1783, 4294901760
    %3201 = vmatmul.f32.gmra.mxu0 %v3200
    %v3202 = vpop.f32.mrf.mxu0
    %v3203 = vadd.f32 %v3026, %v3202
    %v3204 = vand.u32 %v1786, 4294901760
    %3205 = vmatmul.f32.gmra.mxu0 %v3204
    %v3206 = vpop.f32.mrf.mxu0
    %v3207 = vadd.f32 %v3030, %v3206
    %v3208 = vand.u32 %v1789, 4294901760
    %3209 = vmatmul.f32.gmra.mxu0 %v3208
    %v3210 = vpop.f32.mrf.mxu0
    %v3211 = vadd.f32 %v3034, %v3210
    %v3212 = vand.u32 %v1792, 4294901760
    %3213 = vmatmul.f32.gmra.mxu0 %v3212
    %v3214 = vpop.f32.mrf.mxu0
    %v3215 = vadd.f32 %v3038, %v3214
    %v3216 = vand.u32 %v1795, 4294901760
    %3217 = vmatmul.f32.gmra.mxu0 %v3216
    %v3218 = vpop.f32.mrf.mxu0
    %v3219 = vadd.f32 %v3042, %v3218
    %v3220 = vand.u32 %v1798, 4294901760
    %3221 = vmatmul.f32.gmra.mxu0 %v3220
    %v3222 = vpop.f32.mrf.mxu0
    %v3223 = vadd.f32 %v3046, %v3222
    %v3224 = vand.u32 %v1801, 4294901760
    %3225 = vmatmul.f32.gmra.mxu0 %v3224
    %v3226 = vpop.f32.mrf.mxu0
    %v3227 = vadd.f32 %v3050, %v3226
    %3228 = vdwg.mxu0
    %v3229 = vmax.f32 %v1517, %v3087
    %v3230 = vmax.f32 %v1521, %v3091
    %v3231 = vmax.f32 %v1525, %v3095
    %v3232 = vmax.f32 %v1529, %v3099
    %v3233 = vmax.f32 %v1533, %v3103
    %v3234 = vmax.f32 %v1537, %v3107
    %v3235 = vmax.f32 %v1541, %v3111
    %v3236 = vmax.f32 %v1545, %v3115
    %v3237 = vmax.f32 %v1549, %v3119
    %v3238 = vmax.f32 %v1553, %v3123
    %v3239 = vmax.f32 %v1557, %v3127
    %v3240 = vmax.f32 %v1561, %v3131
    %v3241 = vmax.f32 %v1565, %v3135
    %v3242 = vmax.f32 %v1569, %v3139
    %v3243 = vmax.f32 %v1573, %v3143
    %v3244 = vmax.f32 %v1577, %v3147
    %v3245 = vmax.f32 %v1581, %v3151
    %v3246 = vmax.f32 %v1585, %v3155
    %v3247 = vmax.f32 %v1589, %v3159
    %v3248 = vmax.f32 %v1593, %v3163
    %v3249 = vmax.f32 %v1597, %v3167
    %v3250 = vmax.f32 %v1601, %v3171
    %v3251 = vmax.f32 %v1605, %v3175
    %v3252 = vmax.f32 %v1609, %v3179
    %v3253 = vmax.f32 %v1613, %v3183
    %v3254 = vmax.f32 %v1617, %v3187
    %v3255 = vmax.f32 %v1621, %v3191
    %v3256 = vmax.f32 %v1625, %v3195
    %v3257 = vmax.f32 %v1629, %v3199
    %v3258 = vmax.f32 %v1633, %v3203
    %v3259 = vmax.f32 %v1637, %v3207
    %v3260 = vmax.f32 %v1641, %v3211
    %v3261 = vmax.f32 %v1645, %v3215
    %v3262 = vmax.f32 %v1649, %v3219
    %v3263 = vmax.f32 %v1653, %v3223
    %v3264 = vmax.f32 %v1657, %v3227
    %v3265 = vld [vmem:[%s2] sm:$0xff]
    %v3266 = vld [vmem:[%s2 + $0x8] sm:$0xff]
    %v3267 = vld [vmem:[%s2 + $0x10] sm:$0xff]
    %v3268 = vld [vmem:[%s2 + $0x18] sm:$0xff]
    %v3269 = vld [vmem:[%s2 + $0x20] sm:$0xff]
    %v3270 = vld [vmem:[%s2 + $0x28] sm:$0xff]
    %v3271 = vld [vmem:[%s2 + $0x30] sm:$0xff]
    %v3272 = vld [vmem:[%s2 + $0x38] sm:$0xff]
    %v3273 = vld [vmem:[%s2 + $0x40] sm:$0xff]
    %v3274 = vld [vmem:[%s2 + $0x48] sm:$0xff]
    %v3275 = vld [vmem:[%s2 + $0x50] sm:$0xff]
    %v3276 = vld [vmem:[%s2 + $0x58] sm:$0xff]
    %v3277 = vld [vmem:[%s2 + $0x60] sm:$0xff]
    %v3278 = vld [vmem:[%s2 + $0x68] sm:$0xff]
    %v3279 = vld [vmem:[%s2 + $0x70] sm:$0xff]
    %v3280 = vld [vmem:[%s2 + $0x78] sm:$0xff]
    %v3281 = vld [vmem:[%s2 + $0x80] sm:$0xff]
    %v3282 = vld [vmem:[%s2 + $0x88] sm:$0xff]
    %v3283 = vld [vmem:[%s2 + $0x90] sm:$0xff]
    %v3284 = vld [vmem:[%s2 + $0x98] sm:$0xff]
    %v3285 = vld [vmem:[%s2 + $0xa0] sm:$0xff]
    %v3286 = vld [vmem:[%s2 + $0xa8] sm:$0xff]
    %v3287 = vld [vmem:[%s2 + $0xb0] sm:$0xff]
    %v3288 = vld [vmem:[%s2 + $0xb8] sm:$0xff]
    %v3289 = vld [vmem:[%s2 + $0xc0] sm:$0xff]
    %v3290 = vld [vmem:[%s2 + $0xc8] sm:$0xff]
    %v3291 = vld [vmem:[%s2 + $0xd0] sm:$0xff]
    %v3292 = vld [vmem:[%s2 + $0xd8] sm:$0xff]
    %v3293 = vld [vmem:[%s2 + $0xe0] sm:$0xff]
    %v3294 = vld [vmem:[%s2 + $0xe8] sm:$0xff]
    %v3295 = vld [vmem:[%s2 + $0xf0] sm:$0xff]
    %v3296 = vld [vmem:[%s2 + $0xf8] sm:$0xff]
    %v3297 = vld [vmem:[%s2 + $0x100] sm:$0xff]
    %v3298 = vld [vmem:[%s2 + $0x108] sm:$0xff]
    %v3299 = vld [vmem:[%s2 + $0x110] sm:$0xff]
    %v3300 = vld [vmem:[%s2 + $0x118] sm:$0xff]
    %v3302 = vsel %vm76, %v3265, 0
    %v3305 = vsel %vm76, %v3266, 0
    %v3308 = vsel %vm76, %v3267, 0
    %v3311 = vsel %vm76, %v3268, 0
    %v3314 = vsel %vm76, %v3269, 0
    %v3317 = vsel %vm76, %v3270, 0
    %v3320 = vsel %vm76, %v3271, 0
    %v3323 = vsel %vm76, %v3272, 0
    %v3326 = vsel %vm76, %v3273, 0
    %v3329 = vsel %vm76, %v3274, 0
    %v3332 = vsel %vm76, %v3275, 0
    %v3335 = vsel %vm76, %v3276, 0
    %v3338 = vsel %vm76, %v3277, 0
    %v3341 = vsel %vm76, %v3278, 0
    %v3344 = vsel %vm76, %v3279, 0
    %v3347 = vsel %vm76, %v3280, 0
    %v3350 = vsel %vm76, %v3281, 0
    %v3353 = vsel %vm76, %v3282, 0
    %v3356 = vsel %vm76, %v3283, 0
    %v3359 = vsel %vm76, %v3284, 0
    %v3362 = vsel %vm76, %v3285, 0
    %v3365 = vsel %vm76, %v3286, 0
    %v3368 = vsel %vm76, %v3287, 0
    %v3371 = vsel %vm76, %v3288, 0
    %v3374 = vsel %vm76, %v3289, 0
    %v3377 = vsel %vm76, %v3290, 0
    %v3380 = vsel %vm76, %v3291, 0
    %v3383 = vsel %vm76, %v3292, 0
    %v3386 = vsel %vm76, %v3293, 0
    %v3389 = vsel %vm76, %v3294, 0
    %v3392 = vsel %vm76, %v3295, 0
    %v3395 = vsel %vm76, %v3296, 0
    %v3398 = vsel %vm76, %v3297, 0
    %v3401 = vsel %vm76, %v3298, 0
    %v3404 = vsel %vm76, %v3299, 0
    %v3407 = vsel %vm76, %v3300, 0
    %v3409 = vand.u32 %v231, 4294901760
    %3410 = vmatpush.xpose.msra.mxu0 %v3409
    %v3411 = vand.u32 %v228, 4294901760
    %3412 = vmatpush.xpose.msra.mxu0 %v3411
    %v3413 = vand.u32 %v225, 4294901760
    %3414 = vmatpush.xpose.msra.mxu0 %v3413
    %v3415 = vand.u32 %v222, 4294901760
    %3416 = vmatpush.xpose.msra.mxu0 %v3415
    %v3417 = vand.u32 %v219, 4294901760
    %3418 = vmatpush.xpose.msra.mxu0 %v3417
    %v3419 = vand.u32 %v216, 4294901760
    %3420 = vmatpush.xpose.msra.mxu0 %v3419
    %v3421 = vand.u32 %v213, 4294901760
    %3422 = vmatpush.xpose.msra.mxu0 %v3421
    %v3423 = vand.u32 %v210, 4294901760
    %3424 = vmatpush.xpose.msra.mxu0 %v3423
    %v3425 = vand.u32 %v207, 4294901760
    %3426 = vmatpush.xpose.msra.mxu0 %v3425
    %v3427 = vand.u32 %v204, 4294901760
    %3428 = vmatpush.xpose.msra.mxu0 %v3427
    %v3429 = vand.u32 %v201, 4294901760
    %3430 = vmatpush.xpose.msra.mxu0 %v3429
    %v3431 = vand.u32 %v198, 4294901760
    %3432 = vmatpush.xpose.msra.mxu0 %v3431
    %v3433 = vand.u32 %v195, 4294901760
    %3434 = vmatpush.xpose.msra.mxu0 %v3433
    %v3435 = vand.u32 %v192, 4294901760
    %3436 = vmatpush.xpose.msra.mxu0 %v3435
    %v3437 = vand.u32 %v189, 4294901760
    %3438 = vmatpush.xpose.msra.mxu0 %v3437
    %v3439 = vand.u32 %v186, 4294901760
    %3440 = vmatpush.xpose.msra.mxu0 %v3439
    %v3441 = vand.u32 %v3302, 4294901760
    %v3442 = vsub.f32 %v3302, %v3441
    %v3443 = vand.u32 %v3442, 4294901760
    %v3444 = vsub.f32 %v3442, %v3443
    %v3445 = vand.u32 %v3444, 4294901760
    %3446 = vmatmul.f32.gmra.mxu0 %v3445
    %v3447 = vpop.f32.mrf.mxu0
    %v3448 = vadd.f32 0.0, %v3447
    %v3449 = vand.u32 %v3305, 4294901760
    %v3450 = vsub.f32 %v3305, %v3449
    %v3451 = vand.u32 %v3450, 4294901760
    %v3452 = vsub.f32 %v3450, %v3451
    %v3453 = vand.u32 %v3452, 4294901760
    %3454 = vmatmul.f32.gmra.mxu0 %v3453
    %v3455 = vpop.f32.mrf.mxu0
    %v3456 = vadd.f32 0.0, %v3455
    %v3457 = vand.u32 %v3308, 4294901760
    %v3458 = vsub.f32 %v3308, %v3457
    %v3459 = vand.u32 %v3458, 4294901760
    %v3460 = vsub.f32 %v3458, %v3459
    %v3461 = vand.u32 %v3460, 4294901760
    %3462 = vmatmul.f32.gmra.mxu0 %v3461
    %v3463 = vpop.f32.mrf.mxu0
    %v3464 = vadd.f32 0.0, %v3463
    %v3465 = vand.u32 %v3311, 4294901760
    %v3466 = vsub.f32 %v3311, %v3465
    %v3467 = vand.u32 %v3466, 4294901760
    %v3468 = vsub.f32 %v3466, %v3467
    %v3469 = vand.u32 %v3468, 4294901760
    %3470 = vmatmul.f32.gmra.mxu0 %v3469
    %v3471 = vpop.f32.mrf.mxu0
    %v3472 = vadd.f32 0.0, %v3471
    %v3473 = vand.u32 %v3314, 4294901760
    %v3474 = vsub.f32 %v3314, %v3473
    %v3475 = vand.u32 %v3474, 4294901760
    %v3476 = vsub.f32 %v3474, %v3475
    %v3477 = vand.u32 %v3476, 4294901760
    %3478 = vmatmul.f32.gmra.mxu0 %v3477
    %v3479 = vpop.f32.mrf.mxu0
    %v3480 = vadd.f32 0.0, %v3479
    %v3481 = vand.u32 %v3317, 4294901760
    %v3482 = vsub.f32 %v3317, %v3481
    %v3483 = vand.u32 %v3482, 4294901760
    %v3484 = vsub.f32 %v3482, %v3483
    %v3485 = vand.u32 %v3484, 4294901760
    %3486 = vmatmul.f32.gmra.mxu0 %v3485
    %v3487 = vpop.f32.mrf.mxu0
    %v3488 = vadd.f32 0.0, %v3487
    %v3489 = vand.u32 %v3320, 4294901760
    %v3490 = vsub.f32 %v3320, %v3489
    %v3491 = vand.u32 %v3490, 4294901760
    %v3492 = vsub.f32 %v3490, %v3491
    %v3493 = vand.u32 %v3492, 4294901760
    %3494 = vmatmul.f32.gmra.mxu0 %v3493
    %v3495 = vpop.f32.mrf.mxu0
    %v3496 = vadd.f32 0.0, %v3495
    %v3497 = vand.u32 %v3323, 4294901760
    %v3498 = vsub.f32 %v3323, %v3497
    %v3499 = vand.u32 %v3498, 4294901760
    %v3500 = vsub.f32 %v3498, %v3499
    %v3501 = vand.u32 %v3500, 4294901760
    %3502 = vmatmul.f32.gmra.mxu0 %v3501
    %v3503 = vpop.f32.mrf.mxu0
    %v3504 = vadd.f32 0.0, %v3503
    %v3505 = vand.u32 %v3326, 4294901760
    %v3506 = vsub.f32 %v3326, %v3505
    %v3507 = vand.u32 %v3506, 4294901760
    %v3508 = vsub.f32 %v3506, %v3507
    %v3509 = vand.u32 %v3508, 4294901760
    %3510 = vmatmul.f32.gmra.mxu0 %v3509
    %v3511 = vpop.f32.mrf.mxu0
    %v3512 = vadd.f32 0.0, %v3511
    %v3513 = vand.u32 %v3329, 4294901760
    %v3514 = vsub.f32 %v3329, %v3513
    %v3515 = vand.u32 %v3514, 4294901760
    %v3516 = vsub.f32 %v3514, %v3515
    %v3517 = vand.u32 %v3516, 4294901760
    %3518 = vmatmul.f32.gmra.mxu0 %v3517
    %v3519 = vpop.f32.mrf.mxu0
    %v3520 = vadd.f32 0.0, %v3519
    %v3521 = vand.u32 %v3332, 4294901760
    %v3522 = vsub.f32 %v3332, %v3521
    %v3523 = vand.u32 %v3522, 4294901760
    %v3524 = vsub.f32 %v3522, %v3523
    %v3525 = vand.u32 %v3524, 4294901760
    %3526 = vmatmul.f32.gmra.mxu0 %v3525
    %v3527 = vpop.f32.mrf.mxu0
    %v3528 = vadd.f32 0.0, %v3527
    %v3529 = vand.u32 %v3335, 4294901760
    %v3530 = vsub.f32 %v3335, %v3529
    %v3531 = vand.u32 %v3530, 4294901760
    %v3532 = vsub.f32 %v3530, %v3531
    %v3533 = vand.u32 %v3532, 4294901760
    %3534 = vmatmul.f32.gmra.mxu0 %v3533
    %v3535 = vpop.f32.mrf.mxu0
    %v3536 = vadd.f32 0.0, %v3535
    %v3537 = vand.u32 %v3338, 4294901760
    %v3538 = vsub.f32 %v3338, %v3537
    %v3539 = vand.u32 %v3538, 4294901760
    %v3540 = vsub.f32 %v3538, %v3539
    %v3541 = vand.u32 %v3540, 4294901760
    %3542 = vmatmul.f32.gmra.mxu0 %v3541
    %v3543 = vpop.f32.mrf.mxu0
    %v3544 = vadd.f32 0.0, %v3543
    %v3545 = vand.u32 %v3341, 4294901760
    %v3546 = vsub.f32 %v3341, %v3545
    %v3547 = vand.u32 %v3546, 4294901760
    %v3548 = vsub.f32 %v3546, %v3547
    %v3549 = vand.u32 %v3548, 4294901760
    %3550 = vmatmul.f32.gmra.mxu0 %v3549
    %v3551 = vpop.f32.mrf.mxu0
    %v3552 = vadd.f32 0.0, %v3551
    %v3553 = vand.u32 %v3344, 4294901760
    %v3554 = vsub.f32 %v3344, %v3553
    %v3555 = vand.u32 %v3554, 4294901760
    %v3556 = vsub.f32 %v3554, %v3555
    %v3557 = vand.u32 %v3556, 4294901760
    %3558 = vmatmul.f32.gmra.mxu0 %v3557
    %v3559 = vpop.f32.mrf.mxu0
    %v3560 = vadd.f32 0.0, %v3559
    %v3561 = vand.u32 %v3347, 4294901760
    %v3562 = vsub.f32 %v3347, %v3561
    %v3563 = vand.u32 %v3562, 4294901760
    %v3564 = vsub.f32 %v3562, %v3563
    %v3565 = vand.u32 %v3564, 4294901760
    %3566 = vmatmul.f32.gmra.mxu0 %v3565
    %v3567 = vpop.f32.mrf.mxu0
    %v3568 = vadd.f32 0.0, %v3567
    %v3569 = vand.u32 %v3350, 4294901760
    %v3570 = vsub.f32 %v3350, %v3569
    %v3571 = vand.u32 %v3570, 4294901760
    %v3572 = vsub.f32 %v3570, %v3571
    %v3573 = vand.u32 %v3572, 4294901760
    %3574 = vmatmul.f32.gmra.mxu0 %v3573
    %v3575 = vpop.f32.mrf.mxu0
    %v3576 = vadd.f32 0.0, %v3575
    %v3577 = vand.u32 %v3353, 4294901760
    %v3578 = vsub.f32 %v3353, %v3577
    %v3579 = vand.u32 %v3578, 4294901760
    %v3580 = vsub.f32 %v3578, %v3579
    %v3581 = vand.u32 %v3580, 4294901760
    %3582 = vmatmul.f32.gmra.mxu0 %v3581
    %v3583 = vpop.f32.mrf.mxu0
    %v3584 = vadd.f32 0.0, %v3583
    %v3585 = vand.u32 %v3356, 4294901760
    %v3586 = vsub.f32 %v3356, %v3585
    %v3587 = vand.u32 %v3586, 4294901760
    %v3588 = vsub.f32 %v3586, %v3587
    %v3589 = vand.u32 %v3588, 4294901760
    %3590 = vmatmul.f32.gmra.mxu0 %v3589
    %v3591 = vpop.f32.mrf.mxu0
    %v3592 = vadd.f32 0.0, %v3591
    %v3593 = vand.u32 %v3359, 4294901760
    %v3594 = vsub.f32 %v3359, %v3593
    %v3595 = vand.u32 %v3594, 4294901760
    %v3596 = vsub.f32 %v3594, %v3595
    %v3597 = vand.u32 %v3596, 4294901760
    %3598 = vmatmul.f32.gmra.mxu0 %v3597
    %v3599 = vpop.f32.mrf.mxu0
    %v3600 = vadd.f32 0.0, %v3599
    %v3601 = vand.u32 %v3362, 4294901760
    %v3602 = vsub.f32 %v3362, %v3601
    %v3603 = vand.u32 %v3602, 4294901760
    %v3604 = vsub.f32 %v3602, %v3603
    %v3605 = vand.u32 %v3604, 4294901760
    %3606 = vmatmul.f32.gmra.mxu0 %v3605
    %v3607 = vpop.f32.mrf.mxu0
    %v3608 = vadd.f32 0.0, %v3607
    %v3609 = vand.u32 %v3365, 4294901760
    %v3610 = vsub.f32 %v3365, %v3609
    %v3611 = vand.u32 %v3610, 4294901760
    %v3612 = vsub.f32 %v3610, %v3611
    %v3613 = vand.u32 %v3612, 4294901760
    %3614 = vmatmul.f32.gmra.mxu0 %v3613
    %v3615 = vpop.f32.mrf.mxu0
    %v3616 = vadd.f32 0.0, %v3615
    %v3617 = vand.u32 %v3368, 4294901760
    %v3618 = vsub.f32 %v3368, %v3617
    %v3619 = vand.u32 %v3618, 4294901760
    %v3620 = vsub.f32 %v3618, %v3619
    %v3621 = vand.u32 %v3620, 4294901760
    %3622 = vmatmul.f32.gmra.mxu0 %v3621
    %v3623 = vpop.f32.mrf.mxu0
    %v3624 = vadd.f32 0.0, %v3623
    %v3625 = vand.u32 %v3371, 4294901760
    %v3626 = vsub.f32 %v3371, %v3625
    %v3627 = vand.u32 %v3626, 4294901760
    %v3628 = vsub.f32 %v3626, %v3627
    %v3629 = vand.u32 %v3628, 4294901760
    %3630 = vmatmul.f32.gmra.mxu0 %v3629
    %v3631 = vpop.f32.mrf.mxu0
    %v3632 = vadd.f32 0.0, %v3631
    %v3633 = vand.u32 %v3374, 4294901760
    %v3634 = vsub.f32 %v3374, %v3633
    %v3635 = vand.u32 %v3634, 4294901760
    %v3636 = vsub.f32 %v3634, %v3635
    %v3637 = vand.u32 %v3636, 4294901760
    %3638 = vmatmul.f32.gmra.mxu0 %v3637
    %v3639 = vpop.f32.mrf.mxu0
    %v3640 = vadd.f32 0.0, %v3639
    %v3641 = vand.u32 %v3377, 4294901760
    %v3642 = vsub.f32 %v3377, %v3641
    %v3643 = vand.u32 %v3642, 4294901760
    %v3644 = vsub.f32 %v3642, %v3643
    %v3645 = vand.u32 %v3644, 4294901760
    %3646 = vmatmul.f32.gmra.mxu0 %v3645
    %v3647 = vpop.f32.mrf.mxu0
    %v3648 = vadd.f32 0.0, %v3647
    %v3649 = vand.u32 %v3380, 4294901760
    %v3650 = vsub.f32 %v3380, %v3649
    %v3651 = vand.u32 %v3650, 4294901760
    %v3652 = vsub.f32 %v3650, %v3651
    %v3653 = vand.u32 %v3652, 4294901760
    %3654 = vmatmul.f32.gmra.mxu0 %v3653
    %v3655 = vpop.f32.mrf.mxu0
    %v3656 = vadd.f32 0.0, %v3655
    %v3657 = vand.u32 %v3383, 4294901760
    %v3658 = vsub.f32 %v3383, %v3657
    %v3659 = vand.u32 %v3658, 4294901760
    %v3660 = vsub.f32 %v3658, %v3659
    %v3661 = vand.u32 %v3660, 4294901760
    %3662 = vmatmul.f32.gmra.mxu0 %v3661
    %v3663 = vpop.f32.mrf.mxu0
    %v3664 = vadd.f32 0.0, %v3663
    %v3665 = vand.u32 %v3386, 4294901760
    %v3666 = vsub.f32 %v3386, %v3665
    %v3667 = vand.u32 %v3666, 4294901760
    %v3668 = vsub.f32 %v3666, %v3667
    %v3669 = vand.u32 %v3668, 4294901760
    %3670 = vmatmul.f32.gmra.mxu0 %v3669
    %v3671 = vpop.f32.mrf.mxu0
    %v3672 = vadd.f32 0.0, %v3671
    %v3673 = vand.u32 %v3389, 4294901760
    %v3674 = vsub.f32 %v3389, %v3673
    %v3675 = vand.u32 %v3674, 4294901760
    %v3676 = vsub.f32 %v3674, %v3675
    %v3677 = vand.u32 %v3676, 4294901760
    %3678 = vmatmul.f32.gmra.mxu0 %v3677
    %v3679 = vpop.f32.mrf.mxu0
    %v3680 = vadd.f32 0.0, %v3679
    %v3681 = vand.u32 %v3392, 4294901760
    %v3682 = vsub.f32 %v3392, %v3681
    %v3683 = vand.u32 %v3682, 4294901760
    %v3684 = vsub.f32 %v3682, %v3683
    %v3685 = vand.u32 %v3684, 4294901760
    %3686 = vmatmul.f32.gmra.mxu0 %v3685
    %v3687 = vpop.f32.mrf.mxu0
    %v3688 = vadd.f32 0.0, %v3687
    %v3689 = vand.u32 %v3395, 4294901760
    %v3690 = vsub.f32 %v3395, %v3689
    %v3691 = vand.u32 %v3690, 4294901760
    %v3692 = vsub.f32 %v3690, %v3691
    %v3693 = vand.u32 %v3692, 4294901760
    %3694 = vmatmul.f32.gmra.mxu0 %v3693
    %v3695 = vpop.f32.mrf.mxu0
    %v3696 = vadd.f32 0.0, %v3695
    %v3697 = vand.u32 %v3398, 4294901760
    %v3698 = vsub.f32 %v3398, %v3697
    %v3699 = vand.u32 %v3698, 4294901760
    %v3700 = vsub.f32 %v3698, %v3699
    %v3701 = vand.u32 %v3700, 4294901760
    %3702 = vmatmul.f32.gmra.mxu0 %v3701
    %v3703 = vpop.f32.mrf.mxu0
    %v3704 = vadd.f32 0.0, %v3703
    %v3705 = vand.u32 %v3401, 4294901760
    %v3706 = vsub.f32 %v3401, %v3705
    %v3707 = vand.u32 %v3706, 4294901760
    %v3708 = vsub.f32 %v3706, %v3707
    %v3709 = vand.u32 %v3708, 4294901760
    %3710 = vmatmul.f32.gmra.mxu0 %v3709
    %v3711 = vpop.f32.mrf.mxu0
    %v3712 = vadd.f32 0.0, %v3711
    %v3713 = vand.u32 %v3404, 4294901760
    %v3714 = vsub.f32 %v3404, %v3713
    %v3715 = vand.u32 %v3714, 4294901760
    %v3716 = vsub.f32 %v3714, %v3715
    %v3717 = vand.u32 %v3716, 4294901760
    %3718 = vmatmul.f32.gmra.mxu0 %v3717
    %v3719 = vpop.f32.mrf.mxu0
    %v3720 = vadd.f32 0.0, %v3719
    %v3721 = vand.u32 %v3407, 4294901760
    %v3722 = vsub.f32 %v3407, %v3721
    %v3723 = vand.u32 %v3722, 4294901760
    %v3724 = vsub.f32 %v3722, %v3723
    %v3725 = vand.u32 %v3724, 4294901760
    %3726 = vmatmul.f32.gmra.mxu0 %v3725
    %v3727 = vpop.f32.mrf.mxu0
    %v3728 = vadd.f32 0.0, %v3727
    %3729 = vdwg.mxu0
    %v3730 = vand.u32 %v231, 4294901760
    %v3731 = vsub.f32 %v231, %v3730
    %v3732 = vand.u32 %v3731, 4294901760
    %v3733 = vsub.f32 %v3731, %v3732
    %v3734 = vand.u32 %v3733, 4294901760
    %3735 = vmatpush.xpose.msra.mxu0 %v3734
    %v3736 = vand.u32 %v228, 4294901760
    %v3737 = vsub.f32 %v228, %v3736
    %v3738 = vand.u32 %v3737, 4294901760
    %v3739 = vsub.f32 %v3737, %v3738
    %v3740 = vand.u32 %v3739, 4294901760
    %3741 = vmatpush.xpose.msra.mxu0 %v3740
    %v3742 = vand.u32 %v225, 4294901760
    %v3743 = vsub.f32 %v225, %v3742
    %v3744 = vand.u32 %v3743, 4294901760
    %v3745 = vsub.f32 %v3743, %v3744
    %v3746 = vand.u32 %v3745, 4294901760
    %3747 = vmatpush.xpose.msra.mxu0 %v3746
    %v3748 = vand.u32 %v222, 4294901760
    %v3749 = vsub.f32 %v222, %v3748
    %v3750 = vand.u32 %v3749, 4294901760
    %v3751 = vsub.f32 %v3749, %v3750
    %v3752 = vand.u32 %v3751, 4294901760
    %3753 = vmatpush.xpose.msra.mxu0 %v3752
    %v3754 = vand.u32 %v219, 4294901760
    %v3755 = vsub.f32 %v219, %v3754
    %v3756 = vand.u32 %v3755, 4294901760
    %v3757 = vsub.f32 %v3755, %v3756
    %v3758 = vand.u32 %v3757, 4294901760
    %3759 = vmatpush.xpose.msra.mxu0 %v3758
    %v3760 = vand.u32 %v216, 4294901760
    %v3761 = vsub.f32 %v216, %v3760
    %v3762 = vand.u32 %v3761, 4294901760
    %v3763 = vsub.f32 %v3761, %v3762
    %v3764 = vand.u32 %v3763, 4294901760
    %3765 = vmatpush.xpose.msra.mxu0 %v3764
    %v3766 = vand.u32 %v213, 4294901760
    %v3767 = vsub.f32 %v213, %v3766
    %v3768 = vand.u32 %v3767, 4294901760
    %v3769 = vsub.f32 %v3767, %v3768
    %v3770 = vand.u32 %v3769, 4294901760
    %3771 = vmatpush.xpose.msra.mxu0 %v3770
    %v3772 = vand.u32 %v210, 4294901760
    %v3773 = vsub.f32 %v210, %v3772
    %v3774 = vand.u32 %v3773, 4294901760
    %v3775 = vsub.f32 %v3773, %v3774
    %v3776 = vand.u32 %v3775, 4294901760
    %3777 = vmatpush.xpose.msra.mxu0 %v3776
    %v3778 = vand.u32 %v207, 4294901760
    %v3779 = vsub.f32 %v207, %v3778
    %v3780 = vand.u32 %v3779, 4294901760
    %v3781 = vsub.f32 %v3779, %v3780
    %v3782 = vand.u32 %v3781, 4294901760
    %3783 = vmatpush.xpose.msra.mxu0 %v3782
    %v3784 = vand.u32 %v204, 4294901760
    %v3785 = vsub.f32 %v204, %v3784
    %v3786 = vand.u32 %v3785, 4294901760
    %v3787 = vsub.f32 %v3785, %v3786
    %v3788 = vand.u32 %v3787, 4294901760
    %3789 = vmatpush.xpose.msra.mxu0 %v3788
    %v3790 = vand.u32 %v201, 4294901760
    %v3791 = vsub.f32 %v201, %v3790
    %v3792 = vand.u32 %v3791, 4294901760
    %v3793 = vsub.f32 %v3791, %v3792
    %v3794 = vand.u32 %v3793, 4294901760
    %3795 = vmatpush.xpose.msra.mxu0 %v3794
    %v3796 = vand.u32 %v198, 4294901760
    %v3797 = vsub.f32 %v198, %v3796
    %v3798 = vand.u32 %v3797, 4294901760
    %v3799 = vsub.f32 %v3797, %v3798
    %v3800 = vand.u32 %v3799, 4294901760
    %3801 = vmatpush.xpose.msra.mxu0 %v3800
    %v3802 = vand.u32 %v195, 4294901760
    %v3803 = vsub.f32 %v195, %v3802
    %v3804 = vand.u32 %v3803, 4294901760
    %v3805 = vsub.f32 %v3803, %v3804
    %v3806 = vand.u32 %v3805, 4294901760
    %3807 = vmatpush.xpose.msra.mxu0 %v3806
    %v3808 = vand.u32 %v192, 4294901760
    %v3809 = vsub.f32 %v192, %v3808
    %v3810 = vand.u32 %v3809, 4294901760
    %v3811 = vsub.f32 %v3809, %v3810
    %v3812 = vand.u32 %v3811, 4294901760
    %3813 = vmatpush.xpose.msra.mxu0 %v3812
    %v3814 = vand.u32 %v189, 4294901760
    %v3815 = vsub.f32 %v189, %v3814
    %v3816 = vand.u32 %v3815, 4294901760
    %v3817 = vsub.f32 %v3815, %v3816
    %v3818 = vand.u32 %v3817, 4294901760
    %3819 = vmatpush.xpose.msra.mxu0 %v3818
    %v3820 = vand.u32 %v186, 4294901760
    %v3821 = vsub.f32 %v186, %v3820
    %v3822 = vand.u32 %v3821, 4294901760
    %v3823 = vsub.f32 %v3821, %v3822
    %v3824 = vand.u32 %v3823, 4294901760
    %3825 = vmatpush.xpose.msra.mxu0 %v3824
    %v3826 = vand.u32 %v3302, 4294901760
    %3827 = vmatmul.f32.gmra.mxu0 %v3826
    %v3828 = vpop.f32.mrf.mxu0
    %v3829 = vadd.f32 %v3448, %v3828
    %v3830 = vand.u32 %v3305, 4294901760
    %3831 = vmatmul.f32.gmra.mxu0 %v3830
    %v3832 = vpop.f32.mrf.mxu0
    %v3833 = vadd.f32 %v3456, %v3832
    %v3834 = vand.u32 %v3308, 4294901760
    %3835 = vmatmul.f32.gmra.mxu0 %v3834
    %v3836 = vpop.f32.mrf.mxu0
    %v3837 = vadd.f32 %v3464, %v3836
    %v3838 = vand.u32 %v3311, 4294901760
    %3839 = vmatmul.f32.gmra.mxu0 %v3838
    %v3840 = vpop.f32.mrf.mxu0
    %v3841 = vadd.f32 %v3472, %v3840
    %v3842 = vand.u32 %v3314, 4294901760
    %3843 = vmatmul.f32.gmra.mxu0 %v3842
    %v3844 = vpop.f32.mrf.mxu0
    %v3845 = vadd.f32 %v3480, %v3844
    %v3846 = vand.u32 %v3317, 4294901760
    %3847 = vmatmul.f32.gmra.mxu0 %v3846
    %v3848 = vpop.f32.mrf.mxu0
    %v3849 = vadd.f32 %v3488, %v3848
    %v3850 = vand.u32 %v3320, 4294901760
    %3851 = vmatmul.f32.gmra.mxu0 %v3850
    %v3852 = vpop.f32.mrf.mxu0
    %v3853 = vadd.f32 %v3496, %v3852
    %v3854 = vand.u32 %v3323, 4294901760
    %3855 = vmatmul.f32.gmra.mxu0 %v3854
    %v3856 = vpop.f32.mrf.mxu0
    %v3857 = vadd.f32 %v3504, %v3856
    %v3858 = vand.u32 %v3326, 4294901760
    %3859 = vmatmul.f32.gmra.mxu0 %v3858
    %v3860 = vpop.f32.mrf.mxu0
    %v3861 = vadd.f32 %v3512, %v3860
    %v3862 = vand.u32 %v3329, 4294901760
    %3863 = vmatmul.f32.gmra.mxu0 %v3862
    %v3864 = vpop.f32.mrf.mxu0
    %v3865 = vadd.f32 %v3520, %v3864
    %v3866 = vand.u32 %v3332, 4294901760
    %3867 = vmatmul.f32.gmra.mxu0 %v3866
    %v3868 = vpop.f32.mrf.mxu0
    %v3869 = vadd.f32 %v3528, %v3868
    %v3870 = vand.u32 %v3335, 4294901760
    %3871 = vmatmul.f32.gmra.mxu0 %v3870
    %v3872 = vpop.f32.mrf.mxu0
    %v3873 = vadd.f32 %v3536, %v3872
    %v3874 = vand.u32 %v3338, 4294901760
    %3875 = vmatmul.f32.gmra.mxu0 %v3874
    %v3876 = vpop.f32.mrf.mxu0
    %v3877 = vadd.f32 %v3544, %v3876
    %v3878 = vand.u32 %v3341, 4294901760
    %3879 = vmatmul.f32.gmra.mxu0 %v3878
    %v3880 = vpop.f32.mrf.mxu0
    %v3881 = vadd.f32 %v3552, %v3880
    %v3882 = vand.u32 %v3344, 4294901760
    %3883 = vmatmul.f32.gmra.mxu0 %v3882
    %v3884 = vpop.f32.mrf.mxu0
    %v3885 = vadd.f32 %v3560, %v3884
    %v3886 = vand.u32 %v3347, 4294901760
    %3887 = vmatmul.f32.gmra.mxu0 %v3886
    %v3888 = vpop.f32.mrf.mxu0
    %v3889 = vadd.f32 %v3568, %v3888
    %v3890 = vand.u32 %v3350, 4294901760
    %3891 = vmatmul.f32.gmra.mxu0 %v3890
    %v3892 = vpop.f32.mrf.mxu0
    %v3893 = vadd.f32 %v3576, %v3892
    %v3894 = vand.u32 %v3353, 4294901760
    %3895 = vmatmul.f32.gmra.mxu0 %v3894
    %v3896 = vpop.f32.mrf.mxu0
    %v3897 = vadd.f32 %v3584, %v3896
    %v3898 = vand.u32 %v3356, 4294901760
    %3899 = vmatmul.f32.gmra.mxu0 %v3898
    %v3900 = vpop.f32.mrf.mxu0
    %v3901 = vadd.f32 %v3592, %v3900
    %v3902 = vand.u32 %v3359, 4294901760
    %3903 = vmatmul.f32.gmra.mxu0 %v3902
    %v3904 = vpop.f32.mrf.mxu0
    %v3905 = vadd.f32 %v3600, %v3904
    %v3906 = vand.u32 %v3362, 4294901760
    %3907 = vmatmul.f32.gmra.mxu0 %v3906
    %v3908 = vpop.f32.mrf.mxu0
    %v3909 = vadd.f32 %v3608, %v3908
    %v3910 = vand.u32 %v3365, 4294901760
    %3911 = vmatmul.f32.gmra.mxu0 %v3910
    %v3912 = vpop.f32.mrf.mxu0
    %v3913 = vadd.f32 %v3616, %v3912
    %v3914 = vand.u32 %v3368, 4294901760
    %3915 = vmatmul.f32.gmra.mxu0 %v3914
    %v3916 = vpop.f32.mrf.mxu0
    %v3917 = vadd.f32 %v3624, %v3916
    %v3918 = vand.u32 %v3371, 4294901760
    %3919 = vmatmul.f32.gmra.mxu0 %v3918
    %v3920 = vpop.f32.mrf.mxu0
    %v3921 = vadd.f32 %v3632, %v3920
    %v3922 = vand.u32 %v3374, 4294901760
    %3923 = vmatmul.f32.gmra.mxu0 %v3922
    %v3924 = vpop.f32.mrf.mxu0
    %v3925 = vadd.f32 %v3640, %v3924
    %v3926 = vand.u32 %v3377, 4294901760
    %3927 = vmatmul.f32.gmra.mxu0 %v3926
    %v3928 = vpop.f32.mrf.mxu0
    %v3929 = vadd.f32 %v3648, %v3928
    %v3930 = vand.u32 %v3380, 4294901760
    %3931 = vmatmul.f32.gmra.mxu0 %v3930
    %v3932 = vpop.f32.mrf.mxu0
    %v3933 = vadd.f32 %v3656, %v3932
    %v3934 = vand.u32 %v3383, 4294901760
    %3935 = vmatmul.f32.gmra.mxu0 %v3934
    %v3936 = vpop.f32.mrf.mxu0
    %v3937 = vadd.f32 %v3664, %v3936
    %v3938 = vand.u32 %v3386, 4294901760
    %3939 = vmatmul.f32.gmra.mxu0 %v3938
    %v3940 = vpop.f32.mrf.mxu0
    %v3941 = vadd.f32 %v3672, %v3940
    %v3942 = vand.u32 %v3389, 4294901760
    %3943 = vmatmul.f32.gmra.mxu0 %v3942
    %v3944 = vpop.f32.mrf.mxu0
    %v3945 = vadd.f32 %v3680, %v3944
    %v3946 = vand.u32 %v3392, 4294901760
    %3947 = vmatmul.f32.gmra.mxu0 %v3946
    %v3948 = vpop.f32.mrf.mxu0
    %v3949 = vadd.f32 %v3688, %v3948
    %v3950 = vand.u32 %v3395, 4294901760
    %3951 = vmatmul.f32.gmra.mxu0 %v3950
    %v3952 = vpop.f32.mrf.mxu0
    %v3953 = vadd.f32 %v3696, %v3952
    %v3954 = vand.u32 %v3398, 4294901760
    %3955 = vmatmul.f32.gmra.mxu0 %v3954
    %v3956 = vpop.f32.mrf.mxu0
    %v3957 = vadd.f32 %v3704, %v3956
    %v3958 = vand.u32 %v3401, 4294901760
    %3959 = vmatmul.f32.gmra.mxu0 %v3958
    %v3960 = vpop.f32.mrf.mxu0
    %v3961 = vadd.f32 %v3712, %v3960
    %v3962 = vand.u32 %v3404, 4294901760
    %3963 = vmatmul.f32.gmra.mxu0 %v3962
    %v3964 = vpop.f32.mrf.mxu0
    %v3965 = vadd.f32 %v3720, %v3964
    %v3966 = vand.u32 %v3407, 4294901760
    %3967 = vmatmul.f32.gmra.mxu0 %v3966
    %v3968 = vpop.f32.mrf.mxu0
    %v3969 = vadd.f32 %v3728, %v3968
    %3970 = vdwg.mxu0
    %v3971 = vand.u32 %v231, 4294901760
    %v3972 = vsub.f32 %v231, %v3971
    %3973 = vmatpush.xpose.msra.mxu0 %v3972
    %v3974 = vand.u32 %v228, 4294901760
    %v3975 = vsub.f32 %v228, %v3974
    %3976 = vmatpush.xpose.msra.mxu0 %v3975
    %v3977 = vand.u32 %v225, 4294901760
    %v3978 = vsub.f32 %v225, %v3977
    %3979 = vmatpush.xpose.msra.mxu0 %v3978
    %v3980 = vand.u32 %v222, 4294901760
    %v3981 = vsub.f32 %v222, %v3980
    %3982 = vmatpush.xpose.msra.mxu0 %v3981
    %v3983 = vand.u32 %v219, 4294901760
    %v3984 = vsub.f32 %v219, %v3983
    %3985 = vmatpush.xpose.msra.mxu0 %v3984
    %v3986 = vand.u32 %v216, 4294901760
    %v3987 = vsub.f32 %v216, %v3986
    %3988 = vmatpush.xpose.msra.mxu0 %v3987
    %v3989 = vand.u32 %v213, 4294901760
    %v3990 = vsub.f32 %v213, %v3989
    %3991 = vmatpush.xpose.msra.mxu0 %v3990
    %v3992 = vand.u32 %v210, 4294901760
    %v3993 = vsub.f32 %v210, %v3992
    %3994 = vmatpush.xpose.msra.mxu0 %v3993
    %v3995 = vand.u32 %v207, 4294901760
    %v3996 = vsub.f32 %v207, %v3995
    %3997 = vmatpush.xpose.msra.mxu0 %v3996
    %v3998 = vand.u32 %v204, 4294901760
    %v3999 = vsub.f32 %v204, %v3998
    %4000 = vmatpush.xpose.msra.mxu0 %v3999
    %v4001 = vand.u32 %v201, 4294901760
    %v4002 = vsub.f32 %v201, %v4001
    %4003 = vmatpush.xpose.msra.mxu0 %v4002
    %v4004 = vand.u32 %v198, 4294901760
    %v4005 = vsub.f32 %v198, %v4004
    %4006 = vmatpush.xpose.msra.mxu0 %v4005
    %v4007 = vand.u32 %v195, 4294901760
    %v4008 = vsub.f32 %v195, %v4007
    %4009 = vmatpush.xpose.msra.mxu0 %v4008
    %v4010 = vand.u32 %v192, 4294901760
    %v4011 = vsub.f32 %v192, %v4010
    %4012 = vmatpush.xpose.msra.mxu0 %v4011
    %v4013 = vand.u32 %v189, 4294901760
    %v4014 = vsub.f32 %v189, %v4013
    %4015 = vmatpush.xpose.msra.mxu0 %v4014
    %v4016 = vand.u32 %v186, 4294901760
    %v4017 = vsub.f32 %v186, %v4016
    %4018 = vmatpush.xpose.msra.mxu0 %v4017
    %v4019 = vand.u32 %v3302, 4294901760
    %v4020 = vsub.f32 %v3302, %v4019
    %4021 = vmatmul.f32.gmra.mxu0 %v4020
    %v4022 = vpop.f32.mrf.mxu0
    %v4023 = vadd.f32 %v3829, %v4022
    %v4024 = vand.u32 %v3305, 4294901760
    %v4025 = vsub.f32 %v3305, %v4024
    %4026 = vmatmul.f32.gmra.mxu0 %v4025
    %v4027 = vpop.f32.mrf.mxu0
    %v4028 = vadd.f32 %v3833, %v4027
    %v4029 = vand.u32 %v3308, 4294901760
    %v4030 = vsub.f32 %v3308, %v4029
    %4031 = vmatmul.f32.gmra.mxu0 %v4030
    %v4032 = vpop.f32.mrf.mxu0
    %v4033 = vadd.f32 %v3837, %v4032
    %v4034 = vand.u32 %v3311, 4294901760
    %v4035 = vsub.f32 %v3311, %v4034
    %4036 = vmatmul.f32.gmra.mxu0 %v4035
    %v4037 = vpop.f32.mrf.mxu0
    %v4038 = vadd.f32 %v3841, %v4037
    %v4039 = vand.u32 %v3314, 4294901760
    %v4040 = vsub.f32 %v3314, %v4039
    %4041 = vmatmul.f32.gmra.mxu0 %v4040
    %v4042 = vpop.f32.mrf.mxu0
    %v4043 = vadd.f32 %v3845, %v4042
    %v4044 = vand.u32 %v3317, 4294901760
    %v4045 = vsub.f32 %v3317, %v4044
    %4046 = vmatmul.f32.gmra.mxu0 %v4045
    %v4047 = vpop.f32.mrf.mxu0
    %v4048 = vadd.f32 %v3849, %v4047
    %v4049 = vand.u32 %v3320, 4294901760
    %v4050 = vsub.f32 %v3320, %v4049
    %4051 = vmatmul.f32.gmra.mxu0 %v4050
    %v4052 = vpop.f32.mrf.mxu0
    %v4053 = vadd.f32 %v3853, %v4052
    %v4054 = vand.u32 %v3323, 4294901760
    %v4055 = vsub.f32 %v3323, %v4054
    %4056 = vmatmul.f32.gmra.mxu0 %v4055
    %v4057 = vpop.f32.mrf.mxu0
    %v4058 = vadd.f32 %v3857, %v4057
    %v4059 = vand.u32 %v3326, 4294901760
    %v4060 = vsub.f32 %v3326, %v4059
    %4061 = vmatmul.f32.gmra.mxu0 %v4060
    %v4062 = vpop.f32.mrf.mxu0
    %v4063 = vadd.f32 %v3861, %v4062
    %v4064 = vand.u32 %v3329, 4294901760
    %v4065 = vsub.f32 %v3329, %v4064
    %4066 = vmatmul.f32.gmra.mxu0 %v4065
    %v4067 = vpop.f32.mrf.mxu0
    %v4068 = vadd.f32 %v3865, %v4067
    %v4069 = vand.u32 %v3332, 4294901760
    %v4070 = vsub.f32 %v3332, %v4069
    %4071 = vmatmul.f32.gmra.mxu0 %v4070
    %v4072 = vpop.f32.mrf.mxu0
    %v4073 = vadd.f32 %v3869, %v4072
    %v4074 = vand.u32 %v3335, 4294901760
    %v4075 = vsub.f32 %v3335, %v4074
    %4076 = vmatmul.f32.gmra.mxu0 %v4075
    %v4077 = vpop.f32.mrf.mxu0
    %v4078 = vadd.f32 %v3873, %v4077
    %v4079 = vand.u32 %v3338, 4294901760
    %v4080 = vsub.f32 %v3338, %v4079
    %4081 = vmatmul.f32.gmra.mxu0 %v4080
    %v4082 = vpop.f32.mrf.mxu0
    %v4083 = vadd.f32 %v3877, %v4082
    %v4084 = vand.u32 %v3341, 4294901760
    %v4085 = vsub.f32 %v3341, %v4084
    %4086 = vmatmul.f32.gmra.mxu0 %v4085
    %v4087 = vpop.f32.mrf.mxu0
    %v4088 = vadd.f32 %v3881, %v4087
    %v4089 = vand.u32 %v3344, 4294901760
    %v4090 = vsub.f32 %v3344, %v4089
    %4091 = vmatmul.f32.gmra.mxu0 %v4090
    %v4092 = vpop.f32.mrf.mxu0
    %v4093 = vadd.f32 %v3885, %v4092
    %v4094 = vand.u32 %v3347, 4294901760
    %v4095 = vsub.f32 %v3347, %v4094
    %4096 = vmatmul.f32.gmra.mxu0 %v4095
    %v4097 = vpop.f32.mrf.mxu0
    %v4098 = vadd.f32 %v3889, %v4097
    %v4099 = vand.u32 %v3350, 4294901760
    %v4100 = vsub.f32 %v3350, %v4099
    %4101 = vmatmul.f32.gmra.mxu0 %v4100
    %v4102 = vpop.f32.mrf.mxu0
    %v4103 = vadd.f32 %v3893, %v4102
    %v4104 = vand.u32 %v3353, 4294901760
    %v4105 = vsub.f32 %v3353, %v4104
    %4106 = vmatmul.f32.gmra.mxu0 %v4105
    %v4107 = vpop.f32.mrf.mxu0
    %v4108 = vadd.f32 %v3897, %v4107
    %v4109 = vand.u32 %v3356, 4294901760
    %v4110 = vsub.f32 %v3356, %v4109
    %4111 = vmatmul.f32.gmra.mxu0 %v4110
    %v4112 = vpop.f32.mrf.mxu0
    %v4113 = vadd.f32 %v3901, %v4112
    %v4114 = vand.u32 %v3359, 4294901760
    %v4115 = vsub.f32 %v3359, %v4114
    %4116 = vmatmul.f32.gmra.mxu0 %v4115
    %v4117 = vpop.f32.mrf.mxu0
    %v4118 = vadd.f32 %v3905, %v4117
    %v4119 = vand.u32 %v3362, 4294901760
    %v4120 = vsub.f32 %v3362, %v4119
    %4121 = vmatmul.f32.gmra.mxu0 %v4120
    %v4122 = vpop.f32.mrf.mxu0
    %v4123 = vadd.f32 %v3909, %v4122
    %v4124 = vand.u32 %v3365, 4294901760
    %v4125 = vsub.f32 %v3365, %v4124
    %4126 = vmatmul.f32.gmra.mxu0 %v4125
    %v4127 = vpop.f32.mrf.mxu0
    %v4128 = vadd.f32 %v3913, %v4127
    %v4129 = vand.u32 %v3368, 4294901760
    %v4130 = vsub.f32 %v3368, %v4129
    %4131 = vmatmul.f32.gmra.mxu0 %v4130
    %v4132 = vpop.f32.mrf.mxu0
    %v4133 = vadd.f32 %v3917, %v4132
    %v4134 = vand.u32 %v3371, 4294901760
    %v4135 = vsub.f32 %v3371, %v4134
    %4136 = vmatmul.f32.gmra.mxu0 %v4135
    %v4137 = vpop.f32.mrf.mxu0
    %v4138 = vadd.f32 %v3921, %v4137
    %v4139 = vand.u32 %v3374, 4294901760
    %v4140 = vsub.f32 %v3374, %v4139
    %4141 = vmatmul.f32.gmra.mxu0 %v4140
    %v4142 = vpop.f32.mrf.mxu0
    %v4143 = vadd.f32 %v3925, %v4142
    %v4144 = vand.u32 %v3377, 4294901760
    %v4145 = vsub.f32 %v3377, %v4144
    %4146 = vmatmul.f32.gmra.mxu0 %v4145
    %v4147 = vpop.f32.mrf.mxu0
    %v4148 = vadd.f32 %v3929, %v4147
    %v4149 = vand.u32 %v3380, 4294901760
    %v4150 = vsub.f32 %v3380, %v4149
    %4151 = vmatmul.f32.gmra.mxu0 %v4150
    %v4152 = vpop.f32.mrf.mxu0
    %v4153 = vadd.f32 %v3933, %v4152
    %v4154 = vand.u32 %v3383, 4294901760
    %v4155 = vsub.f32 %v3383, %v4154
    %4156 = vmatmul.f32.gmra.mxu0 %v4155
    %v4157 = vpop.f32.mrf.mxu0
    %v4158 = vadd.f32 %v3937, %v4157
    %v4159 = vand.u32 %v3386, 4294901760
    %v4160 = vsub.f32 %v3386, %v4159
    %4161 = vmatmul.f32.gmra.mxu0 %v4160
    %v4162 = vpop.f32.mrf.mxu0
    %v4163 = vadd.f32 %v3941, %v4162
    %v4164 = vand.u32 %v3389, 4294901760
    %v4165 = vsub.f32 %v3389, %v4164
    %4166 = vmatmul.f32.gmra.mxu0 %v4165
    %v4167 = vpop.f32.mrf.mxu0
    %v4168 = vadd.f32 %v3945, %v4167
    %v4169 = vand.u32 %v3392, 4294901760
    %v4170 = vsub.f32 %v3392, %v4169
    %4171 = vmatmul.f32.gmra.mxu0 %v4170
    %v4172 = vpop.f32.mrf.mxu0
    %v4173 = vadd.f32 %v3949, %v4172
    %v4174 = vand.u32 %v3395, 4294901760
    %v4175 = vsub.f32 %v3395, %v4174
    %4176 = vmatmul.f32.gmra.mxu0 %v4175
    %v4177 = vpop.f32.mrf.mxu0
    %v4178 = vadd.f32 %v3953, %v4177
    %v4179 = vand.u32 %v3398, 4294901760
    %v4180 = vsub.f32 %v3398, %v4179
    %4181 = vmatmul.f32.gmra.mxu0 %v4180
    %v4182 = vpop.f32.mrf.mxu0
    %v4183 = vadd.f32 %v3957, %v4182
    %v4184 = vand.u32 %v3401, 4294901760
    %v4185 = vsub.f32 %v3401, %v4184
    %4186 = vmatmul.f32.gmra.mxu0 %v4185
    %v4187 = vpop.f32.mrf.mxu0
    %v4188 = vadd.f32 %v3961, %v4187
    %v4189 = vand.u32 %v3404, 4294901760
    %v4190 = vsub.f32 %v3404, %v4189
    %4191 = vmatmul.f32.gmra.mxu0 %v4190
    %v4192 = vpop.f32.mrf.mxu0
    %v4193 = vadd.f32 %v3965, %v4192
    %v4194 = vand.u32 %v3407, 4294901760
    %v4195 = vsub.f32 %v3407, %v4194
    %4196 = vmatmul.f32.gmra.mxu0 %v4195
    %v4197 = vpop.f32.mrf.mxu0
    %v4198 = vadd.f32 %v3969, %v4197
    %4199 = vdwg.mxu0
    %v4200 = vand.u32 %v231, 4294901760
    %4201 = vmatpush.xpose.msra.mxu0 %v4200
    %v4202 = vand.u32 %v228, 4294901760
    %4203 = vmatpush.xpose.msra.mxu0 %v4202
    %v4204 = vand.u32 %v225, 4294901760
    %4205 = vmatpush.xpose.msra.mxu0 %v4204
    %v4206 = vand.u32 %v222, 4294901760
    %4207 = vmatpush.xpose.msra.mxu0 %v4206
    %v4208 = vand.u32 %v219, 4294901760
    %4209 = vmatpush.xpose.msra.mxu0 %v4208
    %v4210 = vand.u32 %v216, 4294901760
    %4211 = vmatpush.xpose.msra.mxu0 %v4210
    %v4212 = vand.u32 %v213, 4294901760
    %4213 = vmatpush.xpose.msra.mxu0 %v4212
    %v4214 = vand.u32 %v210, 4294901760
    %4215 = vmatpush.xpose.msra.mxu0 %v4214
    %v4216 = vand.u32 %v207, 4294901760
    %4217 = vmatpush.xpose.msra.mxu0 %v4216
    %v4218 = vand.u32 %v204, 4294901760
    %4219 = vmatpush.xpose.msra.mxu0 %v4218
    %v4220 = vand.u32 %v201, 4294901760
    %4221 = vmatpush.xpose.msra.mxu0 %v4220
    %v4222 = vand.u32 %v198, 4294901760
    %4223 = vmatpush.xpose.msra.mxu0 %v4222
    %v4224 = vand.u32 %v195, 4294901760
    %4225 = vmatpush.xpose.msra.mxu0 %v4224
    %v4226 = vand.u32 %v192, 4294901760
    %4227 = vmatpush.xpose.msra.mxu0 %v4226
    %v4228 = vand.u32 %v189, 4294901760
    %4229 = vmatpush.xpose.msra.mxu0 %v4228
    %v4230 = vand.u32 %v186, 4294901760
    %4231 = vmatpush.xpose.msra.mxu0 %v4230
    %v4232 = vand.u32 %v3302, 4294901760
    %v4233 = vsub.f32 %v3302, %v4232
    %v4234 = vand.u32 %v4233, 4294901760
    %4235 = vmatmul.f32.gmra.mxu0 %v4234
    %v4236 = vpop.f32.mrf.mxu0
    %v4237 = vadd.f32 %v4023, %v4236
    %v4238 = vand.u32 %v3305, 4294901760
    %v4239 = vsub.f32 %v3305, %v4238
    %v4240 = vand.u32 %v4239, 4294901760
    %4241 = vmatmul.f32.gmra.mxu0 %v4240
    %v4242 = vpop.f32.mrf.mxu0
    %v4243 = vadd.f32 %v4028, %v4242
    %v4244 = vand.u32 %v3308, 4294901760
    %v4245 = vsub.f32 %v3308, %v4244
    %v4246 = vand.u32 %v4245, 4294901760
    %4247 = vmatmul.f32.gmra.mxu0 %v4246
    %v4248 = vpop.f32.mrf.mxu0
    %v4249 = vadd.f32 %v4033, %v4248
    %v4250 = vand.u32 %v3311, 4294901760
    %v4251 = vsub.f32 %v3311, %v4250
    %v4252 = vand.u32 %v4251, 4294901760
    %4253 = vmatmul.f32.gmra.mxu0 %v4252
    %v4254 = vpop.f32.mrf.mxu0
    %v4255 = vadd.f32 %v4038, %v4254
    %v4256 = vand.u32 %v3314, 4294901760
    %v4257 = vsub.f32 %v3314, %v4256
    %v4258 = vand.u32 %v4257, 4294901760
    %4259 = vmatmul.f32.gmra.mxu0 %v4258
    %v4260 = vpop.f32.mrf.mxu0
    %v4261 = vadd.f32 %v4043, %v4260
    %v4262 = vand.u32 %v3317, 4294901760
    %v4263 = vsub.f32 %v3317, %v4262
    %v4264 = vand.u32 %v4263, 4294901760
    %4265 = vmatmul.f32.gmra.mxu0 %v4264
    %v4266 = vpop.f32.mrf.mxu0
    %v4267 = vadd.f32 %v4048, %v4266
    %v4268 = vand.u32 %v3320, 4294901760
    %v4269 = vsub.f32 %v3320, %v4268
    %v4270 = vand.u32 %v4269, 4294901760
    %4271 = vmatmul.f32.gmra.mxu0 %v4270
    %v4272 = vpop.f32.mrf.mxu0
    %v4273 = vadd.f32 %v4053, %v4272
    %v4274 = vand.u32 %v3323, 4294901760
    %v4275 = vsub.f32 %v3323, %v4274
    %v4276 = vand.u32 %v4275, 4294901760
    %4277 = vmatmul.f32.gmra.mxu0 %v4276
    %v4278 = vpop.f32.mrf.mxu0
    %v4279 = vadd.f32 %v4058, %v4278
    %v4280 = vand.u32 %v3326, 4294901760
    %v4281 = vsub.f32 %v3326, %v4280
    %v4282 = vand.u32 %v4281, 4294901760
    %4283 = vmatmul.f32.gmra.mxu0 %v4282
    %v4284 = vpop.f32.mrf.mxu0
    %v4285 = vadd.f32 %v4063, %v4284
    %v4286 = vand.u32 %v3329, 4294901760
    %v4287 = vsub.f32 %v3329, %v4286
    %v4288 = vand.u32 %v4287, 4294901760
    %4289 = vmatmul.f32.gmra.mxu0 %v4288
    %v4290 = vpop.f32.mrf.mxu0
    %v4291 = vadd.f32 %v4068, %v4290
    %v4292 = vand.u32 %v3332, 4294901760
    %v4293 = vsub.f32 %v3332, %v4292
    %v4294 = vand.u32 %v4293, 4294901760
    %4295 = vmatmul.f32.gmra.mxu0 %v4294
    %v4296 = vpop.f32.mrf.mxu0
    %v4297 = vadd.f32 %v4073, %v4296
    %v4298 = vand.u32 %v3335, 4294901760
    %v4299 = vsub.f32 %v3335, %v4298
    %v4300 = vand.u32 %v4299, 4294901760
    %4301 = vmatmul.f32.gmra.mxu0 %v4300
    %v4302 = vpop.f32.mrf.mxu0
    %v4303 = vadd.f32 %v4078, %v4302
    %v4304 = vand.u32 %v3338, 4294901760
    %v4305 = vsub.f32 %v3338, %v4304
    %v4306 = vand.u32 %v4305, 4294901760
    %4307 = vmatmul.f32.gmra.mxu0 %v4306
    %v4308 = vpop.f32.mrf.mxu0
    %v4309 = vadd.f32 %v4083, %v4308
    %v4310 = vand.u32 %v3341, 4294901760
    %v4311 = vsub.f32 %v3341, %v4310
    %v4312 = vand.u32 %v4311, 4294901760
    %4313 = vmatmul.f32.gmra.mxu0 %v4312
    %v4314 = vpop.f32.mrf.mxu0
    %v4315 = vadd.f32 %v4088, %v4314
    %v4316 = vand.u32 %v3344, 4294901760
    %v4317 = vsub.f32 %v3344, %v4316
    %v4318 = vand.u32 %v4317, 4294901760
    %4319 = vmatmul.f32.gmra.mxu0 %v4318
    %v4320 = vpop.f32.mrf.mxu0
    %v4321 = vadd.f32 %v4093, %v4320
    %v4322 = vand.u32 %v3347, 4294901760
    %v4323 = vsub.f32 %v3347, %v4322
    %v4324 = vand.u32 %v4323, 4294901760
    %4325 = vmatmul.f32.gmra.mxu0 %v4324
    %v4326 = vpop.f32.mrf.mxu0
    %v4327 = vadd.f32 %v4098, %v4326
    %v4328 = vand.u32 %v3350, 4294901760
    %v4329 = vsub.f32 %v3350, %v4328
    %v4330 = vand.u32 %v4329, 4294901760
    %4331 = vmatmul.f32.gmra.mxu0 %v4330
    %v4332 = vpop.f32.mrf.mxu0
    %v4333 = vadd.f32 %v4103, %v4332
    %v4334 = vand.u32 %v3353, 4294901760
    %v4335 = vsub.f32 %v3353, %v4334
    %v4336 = vand.u32 %v4335, 4294901760
    %4337 = vmatmul.f32.gmra.mxu0 %v4336
    %v4338 = vpop.f32.mrf.mxu0
    %v4339 = vadd.f32 %v4108, %v4338
    %v4340 = vand.u32 %v3356, 4294901760
    %v4341 = vsub.f32 %v3356, %v4340
    %v4342 = vand.u32 %v4341, 4294901760
    %4343 = vmatmul.f32.gmra.mxu0 %v4342
    %v4344 = vpop.f32.mrf.mxu0
    %v4345 = vadd.f32 %v4113, %v4344
    %v4346 = vand.u32 %v3359, 4294901760
    %v4347 = vsub.f32 %v3359, %v4346
    %v4348 = vand.u32 %v4347, 4294901760
    %4349 = vmatmul.f32.gmra.mxu0 %v4348
    %v4350 = vpop.f32.mrf.mxu0
    %v4351 = vadd.f32 %v4118, %v4350
    %v4352 = vand.u32 %v3362, 4294901760
    %v4353 = vsub.f32 %v3362, %v4352
    %v4354 = vand.u32 %v4353, 4294901760
    %4355 = vmatmul.f32.gmra.mxu0 %v4354
    %v4356 = vpop.f32.mrf.mxu0
    %v4357 = vadd.f32 %v4123, %v4356
    %v4358 = vand.u32 %v3365, 4294901760
    %v4359 = vsub.f32 %v3365, %v4358
    %v4360 = vand.u32 %v4359, 4294901760
    %4361 = vmatmul.f32.gmra.mxu0 %v4360
    %v4362 = vpop.f32.mrf.mxu0
    %v4363 = vadd.f32 %v4128, %v4362
    %v4364 = vand.u32 %v3368, 4294901760
    %v4365 = vsub.f32 %v3368, %v4364
    %v4366 = vand.u32 %v4365, 4294901760
    %4367 = vmatmul.f32.gmra.mxu0 %v4366
    %v4368 = vpop.f32.mrf.mxu0
    %v4369 = vadd.f32 %v4133, %v4368
    %v4370 = vand.u32 %v3371, 4294901760
    %v4371 = vsub.f32 %v3371, %v4370
    %v4372 = vand.u32 %v4371, 4294901760
    %4373 = vmatmul.f32.gmra.mxu0 %v4372
    %v4374 = vpop.f32.mrf.mxu0
    %v4375 = vadd.f32 %v4138, %v4374
    %v4376 = vand.u32 %v3374, 4294901760
    %v4377 = vsub.f32 %v3374, %v4376
    %v4378 = vand.u32 %v4377, 4294901760
    %4379 = vmatmul.f32.gmra.mxu0 %v4378
    %v4380 = vpop.f32.mrf.mxu0
    %v4381 = vadd.f32 %v4143, %v4380
    %v4382 = vand.u32 %v3377, 4294901760
    %v4383 = vsub.f32 %v3377, %v4382
    %v4384 = vand.u32 %v4383, 4294901760
    %4385 = vmatmul.f32.gmra.mxu0 %v4384
    %v4386 = vpop.f32.mrf.mxu0
    %v4387 = vadd.f32 %v4148, %v4386
    %v4388 = vand.u32 %v3380, 4294901760
    %v4389 = vsub.f32 %v3380, %v4388
    %v4390 = vand.u32 %v4389, 4294901760
    %4391 = vmatmul.f32.gmra.mxu0 %v4390
    %v4392 = vpop.f32.mrf.mxu0
    %v4393 = vadd.f32 %v4153, %v4392
    %v4394 = vand.u32 %v3383, 4294901760
    %v4395 = vsub.f32 %v3383, %v4394
    %v4396 = vand.u32 %v4395, 4294901760
    %4397 = vmatmul.f32.gmra.mxu0 %v4396
    %v4398 = vpop.f32.mrf.mxu0
    %v4399 = vadd.f32 %v4158, %v4398
    %v4400 = vand.u32 %v3386, 4294901760
    %v4401 = vsub.f32 %v3386, %v4400
    %v4402 = vand.u32 %v4401, 4294901760
    %4403 = vmatmul.f32.gmra.mxu0 %v4402
    %v4404 = vpop.f32.mrf.mxu0
    %v4405 = vadd.f32 %v4163, %v4404
    %v4406 = vand.u32 %v3389, 4294901760
    %v4407 = vsub.f32 %v3389, %v4406
    %v4408 = vand.u32 %v4407, 4294901760
    %4409 = vmatmul.f32.gmra.mxu0 %v4408
    %v4410 = vpop.f32.mrf.mxu0
    %v4411 = vadd.f32 %v4168, %v4410
    %v4412 = vand.u32 %v3392, 4294901760
    %v4413 = vsub.f32 %v3392, %v4412
    %v4414 = vand.u32 %v4413, 4294901760
    %4415 = vmatmul.f32.gmra.mxu0 %v4414
    %v4416 = vpop.f32.mrf.mxu0
    %v4417 = vadd.f32 %v4173, %v4416
    %v4418 = vand.u32 %v3395, 4294901760
    %v4419 = vsub.f32 %v3395, %v4418
    %v4420 = vand.u32 %v4419, 4294901760
    %4421 = vmatmul.f32.gmra.mxu0 %v4420
    %v4422 = vpop.f32.mrf.mxu0
    %v4423 = vadd.f32 %v4178, %v4422
    %v4424 = vand.u32 %v3398, 4294901760
    %v4425 = vsub.f32 %v3398, %v4424
    %v4426 = vand.u32 %v4425, 4294901760
    %4427 = vmatmul.f32.gmra.mxu0 %v4426
    %v4428 = vpop.f32.mrf.mxu0
    %v4429 = vadd.f32 %v4183, %v4428
    %v4430 = vand.u32 %v3401, 4294901760
    %v4431 = vsub.f32 %v3401, %v4430
    %v4432 = vand.u32 %v4431, 4294901760
    %4433 = vmatmul.f32.gmra.mxu0 %v4432
    %v4434 = vpop.f32.mrf.mxu0
    %v4435 = vadd.f32 %v4188, %v4434
    %v4436 = vand.u32 %v3404, 4294901760
    %v4437 = vsub.f32 %v3404, %v4436
    %v4438 = vand.u32 %v4437, 4294901760
    %4439 = vmatmul.f32.gmra.mxu0 %v4438
    %v4440 = vpop.f32.mrf.mxu0
    %v4441 = vadd.f32 %v4193, %v4440
    %v4442 = vand.u32 %v3407, 4294901760
    %v4443 = vsub.f32 %v3407, %v4442
    %v4444 = vand.u32 %v4443, 4294901760
    %4445 = vmatmul.f32.gmra.mxu0 %v4444
    %v4446 = vpop.f32.mrf.mxu0
    %v4447 = vadd.f32 %v4198, %v4446
    %4448 = vdwg.mxu0
    %v4449 = vand.u32 %v231, 4294901760
    %v4450 = vsub.f32 %v231, %v4449
    %v4451 = vand.u32 %v4450, 4294901760
    %4452 = vmatpush.xpose.msra.mxu0 %v4451
    %v4453 = vand.u32 %v228, 4294901760
    %v4454 = vsub.f32 %v228, %v4453
    %v4455 = vand.u32 %v4454, 4294901760
    %4456 = vmatpush.xpose.msra.mxu0 %v4455
    %v4457 = vand.u32 %v225, 4294901760
    %v4458 = vsub.f32 %v225, %v4457
    %v4459 = vand.u32 %v4458, 4294901760
    %4460 = vmatpush.xpose.msra.mxu0 %v4459
    %v4461 = vand.u32 %v222, 4294901760
    %v4462 = vsub.f32 %v222, %v4461
    %v4463 = vand.u32 %v4462, 4294901760
    %4464 = vmatpush.xpose.msra.mxu0 %v4463
    %v4465 = vand.u32 %v219, 4294901760
    %v4466 = vsub.f32 %v219, %v4465
    %v4467 = vand.u32 %v4466, 4294901760
    %4468 = vmatpush.xpose.msra.mxu0 %v4467
    %v4469 = vand.u32 %v216, 4294901760
    %v4470 = vsub.f32 %v216, %v4469
    %v4471 = vand.u32 %v4470, 4294901760
    %4472 = vmatpush.xpose.msra.mxu0 %v4471
    %v4473 = vand.u32 %v213, 4294901760
    %v4474 = vsub.f32 %v213, %v4473
    %v4475 = vand.u32 %v4474, 4294901760
    %4476 = vmatpush.xpose.msra.mxu0 %v4475
    %v4477 = vand.u32 %v210, 4294901760
    %v4478 = vsub.f32 %v210, %v4477
    %v4479 = vand.u32 %v4478, 4294901760
    %4480 = vmatpush.xpose.msra.mxu0 %v4479
    %v4481 = vand.u32 %v207, 4294901760
    %v4482 = vsub.f32 %v207, %v4481
    %v4483 = vand.u32 %v4482, 4294901760
    %4484 = vmatpush.xpose.msra.mxu0 %v4483
    %v4485 = vand.u32 %v204, 4294901760
    %v4486 = vsub.f32 %v204, %v4485
    %v4487 = vand.u32 %v4486, 4294901760
    %4488 = vmatpush.xpose.msra.mxu0 %v4487
    %v4489 = vand.u32 %v201, 4294901760
    %v4490 = vsub.f32 %v201, %v4489
    %v4491 = vand.u32 %v4490, 4294901760
    %4492 = vmatpush.xpose.msra.mxu0 %v4491
    %v4493 = vand.u32 %v198, 4294901760
    %v4494 = vsub.f32 %v198, %v4493
    %v4495 = vand.u32 %v4494, 4294901760
    %4496 = vmatpush.xpose.msra.mxu0 %v4495
    %v4497 = vand.u32 %v195, 4294901760
    %v4498 = vsub.f32 %v195, %v4497
    %v4499 = vand.u32 %v4498, 4294901760
    %4500 = vmatpush.xpose.msra.mxu0 %v4499
    %v4501 = vand.u32 %v192, 4294901760
    %v4502 = vsub.f32 %v192, %v4501
    %v4503 = vand.u32 %v4502, 4294901760
    %4504 = vmatpush.xpose.msra.mxu0 %v4503
    %v4505 = vand.u32 %v189, 4294901760
    %v4506 = vsub.f32 %v189, %v4505
    %v4507 = vand.u32 %v4506, 4294901760
    %4508 = vmatpush.xpose.msra.mxu0 %v4507
    %v4509 = vand.u32 %v186, 4294901760
    %v4510 = vsub.f32 %v186, %v4509
    %v4511 = vand.u32 %v4510, 4294901760
    %4512 = vmatpush.xpose.msra.mxu0 %v4511
    %v4513 = vand.u32 %v3302, 4294901760
    %4514 = vmatmul.f32.gmra.mxu0 %v4513
    %v4515 = vpop.f32.mrf.mxu0
    %v4516 = vadd.f32 %v4237, %v4515
    %v4517 = vand.u32 %v3305, 4294901760
    %4518 = vmatmul.f32.gmra.mxu0 %v4517
    %v4519 = vpop.f32.mrf.mxu0
    %v4520 = vadd.f32 %v4243, %v4519
    %v4521 = vand.u32 %v3308, 4294901760
    %4522 = vmatmul.f32.gmra.mxu0 %v4521
    %v4523 = vpop.f32.mrf.mxu0
    %v4524 = vadd.f32 %v4249, %v4523
    %v4525 = vand.u32 %v3311, 4294901760
    %4526 = vmatmul.f32.gmra.mxu0 %v4525
    %v4527 = vpop.f32.mrf.mxu0
    %v4528 = vadd.f32 %v4255, %v4527
    %v4529 = vand.u32 %v3314, 4294901760
    %4530 = vmatmul.f32.gmra.mxu0 %v4529
    %v4531 = vpop.f32.mrf.mxu0
    %v4532 = vadd.f32 %v4261, %v4531
    %v4533 = vand.u32 %v3317, 4294901760
    %4534 = vmatmul.f32.gmra.mxu0 %v4533
    %v4535 = vpop.f32.mrf.mxu0
    %v4536 = vadd.f32 %v4267, %v4535
    %v4537 = vand.u32 %v3320, 4294901760
    %4538 = vmatmul.f32.gmra.mxu0 %v4537
    %v4539 = vpop.f32.mrf.mxu0
    %v4540 = vadd.f32 %v4273, %v4539
    %v4541 = vand.u32 %v3323, 4294901760
    %4542 = vmatmul.f32.gmra.mxu0 %v4541
    %v4543 = vpop.f32.mrf.mxu0
    %v4544 = vadd.f32 %v4279, %v4543
    %v4545 = vand.u32 %v3326, 4294901760
    %4546 = vmatmul.f32.gmra.mxu0 %v4545
    %v4547 = vpop.f32.mrf.mxu0
    %v4548 = vadd.f32 %v4285, %v4547
    %v4549 = vand.u32 %v3329, 4294901760
    %4550 = vmatmul.f32.gmra.mxu0 %v4549
    %v4551 = vpop.f32.mrf.mxu0
    %v4552 = vadd.f32 %v4291, %v4551
    %v4553 = vand.u32 %v3332, 4294901760
    %4554 = vmatmul.f32.gmra.mxu0 %v4553
    %v4555 = vpop.f32.mrf.mxu0
    %v4556 = vadd.f32 %v4297, %v4555
    %v4557 = vand.u32 %v3335, 4294901760
    %4558 = vmatmul.f32.gmra.mxu0 %v4557
    %v4559 = vpop.f32.mrf.mxu0
    %v4560 = vadd.f32 %v4303, %v4559
    %v4561 = vand.u32 %v3338, 4294901760
    %4562 = vmatmul.f32.gmra.mxu0 %v4561
    %v4563 = vpop.f32.mrf.mxu0
    %v4564 = vadd.f32 %v4309, %v4563
    %v4565 = vand.u32 %v3341, 4294901760
    %4566 = vmatmul.f32.gmra.mxu0 %v4565
    %v4567 = vpop.f32.mrf.mxu0
    %v4568 = vadd.f32 %v4315, %v4567
    %v4569 = vand.u32 %v3344, 4294901760
    %4570 = vmatmul.f32.gmra.mxu0 %v4569
    %v4571 = vpop.f32.mrf.mxu0
    %v4572 = vadd.f32 %v4321, %v4571
    %v4573 = vand.u32 %v3347, 4294901760
    %4574 = vmatmul.f32.gmra.mxu0 %v4573
    %v4575 = vpop.f32.mrf.mxu0
    %v4576 = vadd.f32 %v4327, %v4575
    %v4577 = vand.u32 %v3350, 4294901760
    %4578 = vmatmul.f32.gmra.mxu0 %v4577
    %v4579 = vpop.f32.mrf.mxu0
    %v4580 = vadd.f32 %v4333, %v4579
    %v4581 = vand.u32 %v3353, 4294901760
    %4582 = vmatmul.f32.gmra.mxu0 %v4581
    %v4583 = vpop.f32.mrf.mxu0
    %v4584 = vadd.f32 %v4339, %v4583
    %v4585 = vand.u32 %v3356, 4294901760
    %4586 = vmatmul.f32.gmra.mxu0 %v4585
    %v4587 = vpop.f32.mrf.mxu0
    %v4588 = vadd.f32 %v4345, %v4587
    %v4589 = vand.u32 %v3359, 4294901760
    %4590 = vmatmul.f32.gmra.mxu0 %v4589
    %v4591 = vpop.f32.mrf.mxu0
    %v4592 = vadd.f32 %v4351, %v4591
    %v4593 = vand.u32 %v3362, 4294901760
    %4594 = vmatmul.f32.gmra.mxu0 %v4593
    %v4595 = vpop.f32.mrf.mxu0
    %v4596 = vadd.f32 %v4357, %v4595
    %v4597 = vand.u32 %v3365, 4294901760
    %4598 = vmatmul.f32.gmra.mxu0 %v4597
    %v4599 = vpop.f32.mrf.mxu0
    %v4600 = vadd.f32 %v4363, %v4599
    %v4601 = vand.u32 %v3368, 4294901760
    %4602 = vmatmul.f32.gmra.mxu0 %v4601
    %v4603 = vpop.f32.mrf.mxu0
    %v4604 = vadd.f32 %v4369, %v4603
    %v4605 = vand.u32 %v3371, 4294901760
    %4606 = vmatmul.f32.gmra.mxu0 %v4605
    %v4607 = vpop.f32.mrf.mxu0
    %v4608 = vadd.f32 %v4375, %v4607
    %v4609 = vand.u32 %v3374, 4294901760
    %4610 = vmatmul.f32.gmra.mxu0 %v4609
    %v4611 = vpop.f32.mrf.mxu0
    %v4612 = vadd.f32 %v4381, %v4611
    %v4613 = vand.u32 %v3377, 4294901760
    %4614 = vmatmul.f32.gmra.mxu0 %v4613
    %v4615 = vpop.f32.mrf.mxu0
    %v4616 = vadd.f32 %v4387, %v4615
    %v4617 = vand.u32 %v3380, 4294901760
    %4618 = vmatmul.f32.gmra.mxu0 %v4617
    %v4619 = vpop.f32.mrf.mxu0
    %v4620 = vadd.f32 %v4393, %v4619
    %v4621 = vand.u32 %v3383, 4294901760
    %4622 = vmatmul.f32.gmra.mxu0 %v4621
    %v4623 = vpop.f32.mrf.mxu0
    %v4624 = vadd.f32 %v4399, %v4623
    %v4625 = vand.u32 %v3386, 4294901760
    %4626 = vmatmul.f32.gmra.mxu0 %v4625
    %v4627 = vpop.f32.mrf.mxu0
    %v4628 = vadd.f32 %v4405, %v4627
    %v4629 = vand.u32 %v3389, 4294901760
    %4630 = vmatmul.f32.gmra.mxu0 %v4629
    %v4631 = vpop.f32.mrf.mxu0
    %v4632 = vadd.f32 %v4411, %v4631
    %v4633 = vand.u32 %v3392, 4294901760
    %4634 = vmatmul.f32.gmra.mxu0 %v4633
    %v4635 = vpop.f32.mrf.mxu0
    %v4636 = vadd.f32 %v4417, %v4635
    %v4637 = vand.u32 %v3395, 4294901760
    %4638 = vmatmul.f32.gmra.mxu0 %v4637
    %v4639 = vpop.f32.mrf.mxu0
    %v4640 = vadd.f32 %v4423, %v4639
    %v4641 = vand.u32 %v3398, 4294901760
    %4642 = vmatmul.f32.gmra.mxu0 %v4641
    %v4643 = vpop.f32.mrf.mxu0
    %v4644 = vadd.f32 %v4429, %v4643
    %v4645 = vand.u32 %v3401, 4294901760
    %4646 = vmatmul.f32.gmra.mxu0 %v4645
    %v4647 = vpop.f32.mrf.mxu0
    %v4648 = vadd.f32 %v4435, %v4647
    %v4649 = vand.u32 %v3404, 4294901760
    %4650 = vmatmul.f32.gmra.mxu0 %v4649
    %v4651 = vpop.f32.mrf.mxu0
    %v4652 = vadd.f32 %v4441, %v4651
    %v4653 = vand.u32 %v3407, 4294901760
    %4654 = vmatmul.f32.gmra.mxu0 %v4653
    %v4655 = vpop.f32.mrf.mxu0
    %v4656 = vadd.f32 %v4447, %v4655
    %4657 = vdwg.mxu0
    %v4658 = vand.u32 %v231, 4294901760
    %4659 = vmatpush.xpose.msra.mxu0 %v4658
    %v4660 = vand.u32 %v228, 4294901760
    %4661 = vmatpush.xpose.msra.mxu0 %v4660
    %v4662 = vand.u32 %v225, 4294901760
    %4663 = vmatpush.xpose.msra.mxu0 %v4662
    %v4664 = vand.u32 %v222, 4294901760
    %4665 = vmatpush.xpose.msra.mxu0 %v4664
    %v4666 = vand.u32 %v219, 4294901760
    %4667 = vmatpush.xpose.msra.mxu0 %v4666
    %v4668 = vand.u32 %v216, 4294901760
    %4669 = vmatpush.xpose.msra.mxu0 %v4668
    %v4670 = vand.u32 %v213, 4294901760
    %4671 = vmatpush.xpose.msra.mxu0 %v4670
    %v4672 = vand.u32 %v210, 4294901760
    %4673 = vmatpush.xpose.msra.mxu0 %v4672
    %v4674 = vand.u32 %v207, 4294901760
    %4675 = vmatpush.xpose.msra.mxu0 %v4674
    %v4676 = vand.u32 %v204, 4294901760
    %4677 = vmatpush.xpose.msra.mxu0 %v4676
    %v4678 = vand.u32 %v201, 4294901760
    %4679 = vmatpush.xpose.msra.mxu0 %v4678
    %v4680 = vand.u32 %v198, 4294901760
    %4681 = vmatpush.xpose.msra.mxu0 %v4680
    %v4682 = vand.u32 %v195, 4294901760
    %4683 = vmatpush.xpose.msra.mxu0 %v4682
    %v4684 = vand.u32 %v192, 4294901760
    %4685 = vmatpush.xpose.msra.mxu0 %v4684
    %v4686 = vand.u32 %v189, 4294901760
    %4687 = vmatpush.xpose.msra.mxu0 %v4686
    %v4688 = vand.u32 %v186, 4294901760
    %4689 = vmatpush.xpose.msra.mxu0 %v4688
    %v4690 = vand.u32 %v3302, 4294901760
    %4691 = vmatmul.f32.gmra.mxu0 %v4690
    %v4692 = vpop.f32.mrf.mxu0
    %v4693 = vadd.f32 %v4516, %v4692
    %v4694 = vand.u32 %v3305, 4294901760
    %4695 = vmatmul.f32.gmra.mxu0 %v4694
    %v4696 = vpop.f32.mrf.mxu0
    %v4697 = vadd.f32 %v4520, %v4696
    %v4698 = vand.u32 %v3308, 4294901760
    %4699 = vmatmul.f32.gmra.mxu0 %v4698
    %v4700 = vpop.f32.mrf.mxu0
    %v4701 = vadd.f32 %v4524, %v4700
    %v4702 = vand.u32 %v3311, 4294901760
    %4703 = vmatmul.f32.gmra.mxu0 %v4702
    %v4704 = vpop.f32.mrf.mxu0
    %v4705 = vadd.f32 %v4528, %v4704
    %v4706 = vand.u32 %v3314, 4294901760
    %4707 = vmatmul.f32.gmra.mxu0 %v4706
    %v4708 = vpop.f32.mrf.mxu0
    %v4709 = vadd.f32 %v4532, %v4708
    %v4710 = vand.u32 %v3317, 4294901760
    %4711 = vmatmul.f32.gmra.mxu0 %v4710
    %v4712 = vpop.f32.mrf.mxu0
    %v4713 = vadd.f32 %v4536, %v4712
    %v4714 = vand.u32 %v3320, 4294901760
    %4715 = vmatmul.f32.gmra.mxu0 %v4714
    %v4716 = vpop.f32.mrf.mxu0
    %v4717 = vadd.f32 %v4540, %v4716
    %v4718 = vand.u32 %v3323, 4294901760
    %4719 = vmatmul.f32.gmra.mxu0 %v4718
    %v4720 = vpop.f32.mrf.mxu0
    %v4721 = vadd.f32 %v4544, %v4720
    %v4722 = vand.u32 %v3326, 4294901760
    %4723 = vmatmul.f32.gmra.mxu0 %v4722
    %v4724 = vpop.f32.mrf.mxu0
    %v4725 = vadd.f32 %v4548, %v4724
    %v4726 = vand.u32 %v3329, 4294901760
    %4727 = vmatmul.f32.gmra.mxu0 %v4726
    %v4728 = vpop.f32.mrf.mxu0
    %v4729 = vadd.f32 %v4552, %v4728
    %v4730 = vand.u32 %v3332, 4294901760
    %4731 = vmatmul.f32.gmra.mxu0 %v4730
    %v4732 = vpop.f32.mrf.mxu0
    %v4733 = vadd.f32 %v4556, %v4732
    %v4734 = vand.u32 %v3335, 4294901760
    %4735 = vmatmul.f32.gmra.mxu0 %v4734
    %v4736 = vpop.f32.mrf.mxu0
    %v4737 = vadd.f32 %v4560, %v4736
    %v4738 = vand.u32 %v3338, 4294901760
    %4739 = vmatmul.f32.gmra.mxu0 %v4738
    %v4740 = vpop.f32.mrf.mxu0
    %v4741 = vadd.f32 %v4564, %v4740
    %v4742 = vand.u32 %v3341, 4294901760
    %4743 = vmatmul.f32.gmra.mxu0 %v4742
    %v4744 = vpop.f32.mrf.mxu0
    %v4745 = vadd.f32 %v4568, %v4744
    %v4746 = vand.u32 %v3344, 4294901760
    %4747 = vmatmul.f32.gmra.mxu0 %v4746
    %v4748 = vpop.f32.mrf.mxu0
    %v4749 = vadd.f32 %v4572, %v4748
    %v4750 = vand.u32 %v3347, 4294901760
    %4751 = vmatmul.f32.gmra.mxu0 %v4750
    %v4752 = vpop.f32.mrf.mxu0
    %v4753 = vadd.f32 %v4576, %v4752
    %v4754 = vand.u32 %v3350, 4294901760
    %4755 = vmatmul.f32.gmra.mxu0 %v4754
    %v4756 = vpop.f32.mrf.mxu0
    %v4757 = vadd.f32 %v4580, %v4756
    %v4758 = vand.u32 %v3353, 4294901760
    %4759 = vmatmul.f32.gmra.mxu0 %v4758
    %v4760 = vpop.f32.mrf.mxu0
    %v4761 = vadd.f32 %v4584, %v4760
    %v4762 = vand.u32 %v3356, 4294901760
    %4763 = vmatmul.f32.gmra.mxu0 %v4762
    %v4764 = vpop.f32.mrf.mxu0
    %v4765 = vadd.f32 %v4588, %v4764
    %v4766 = vand.u32 %v3359, 4294901760
    %4767 = vmatmul.f32.gmra.mxu0 %v4766
    %v4768 = vpop.f32.mrf.mxu0
    %v4769 = vadd.f32 %v4592, %v4768
    %v4770 = vand.u32 %v3362, 4294901760
    %4771 = vmatmul.f32.gmra.mxu0 %v4770
    %v4772 = vpop.f32.mrf.mxu0
    %v4773 = vadd.f32 %v4596, %v4772
    %v4774 = vand.u32 %v3365, 4294901760
    %4775 = vmatmul.f32.gmra.mxu0 %v4774
    %v4776 = vpop.f32.mrf.mxu0
    %v4777 = vadd.f32 %v4600, %v4776
    %v4778 = vand.u32 %v3368, 4294901760
    %4779 = vmatmul.f32.gmra.mxu0 %v4778
    %v4780 = vpop.f32.mrf.mxu0
    %v4781 = vadd.f32 %v4604, %v4780
    %v4782 = vand.u32 %v3371, 4294901760
    %4783 = vmatmul.f32.gmra.mxu0 %v4782
    %v4784 = vpop.f32.mrf.mxu0
    %v4785 = vadd.f32 %v4608, %v4784
    %v4786 = vand.u32 %v3374, 4294901760
    %4787 = vmatmul.f32.gmra.mxu0 %v4786
    %v4788 = vpop.f32.mrf.mxu0
    %v4789 = vadd.f32 %v4612, %v4788
    %v4790 = vand.u32 %v3377, 4294901760
    %4791 = vmatmul.f32.gmra.mxu0 %v4790
    %v4792 = vpop.f32.mrf.mxu0
    %v4793 = vadd.f32 %v4616, %v4792
    %v4794 = vand.u32 %v3380, 4294901760
    %4795 = vmatmul.f32.gmra.mxu0 %v4794
    %v4796 = vpop.f32.mrf.mxu0
    %v4797 = vadd.f32 %v4620, %v4796
    %v4798 = vand.u32 %v3383, 4294901760
    %4799 = vmatmul.f32.gmra.mxu0 %v4798
    %v4800 = vpop.f32.mrf.mxu0
    %v4801 = vadd.f32 %v4624, %v4800
    %v4802 = vand.u32 %v3386, 4294901760
    %4803 = vmatmul.f32.gmra.mxu0 %v4802
    %v4804 = vpop.f32.mrf.mxu0
    %v4805 = vadd.f32 %v4628, %v4804
    %v4806 = vand.u32 %v3389, 4294901760
    %4807 = vmatmul.f32.gmra.mxu0 %v4806
    %v4808 = vpop.f32.mrf.mxu0
    %v4809 = vadd.f32 %v4632, %v4808
    %v4810 = vand.u32 %v3392, 4294901760
    %4811 = vmatmul.f32.gmra.mxu0 %v4810
    %v4812 = vpop.f32.mrf.mxu0
    %v4813 = vadd.f32 %v4636, %v4812
    %v4814 = vand.u32 %v3395, 4294901760
    %4815 = vmatmul.f32.gmra.mxu0 %v4814
    %v4816 = vpop.f32.mrf.mxu0
    %v4817 = vadd.f32 %v4640, %v4816
    %v4818 = vand.u32 %v3398, 4294901760
    %4819 = vmatmul.f32.gmra.mxu0 %v4818
    %v4820 = vpop.f32.mrf.mxu0
    %v4821 = vadd.f32 %v4644, %v4820
    %v4822 = vand.u32 %v3401, 4294901760
    %4823 = vmatmul.f32.gmra.mxu0 %v4822
    %v4824 = vpop.f32.mrf.mxu0
    %v4825 = vadd.f32 %v4648, %v4824
    %v4826 = vand.u32 %v3404, 4294901760
    %4827 = vmatmul.f32.gmra.mxu0 %v4826
    %v4828 = vpop.f32.mrf.mxu0
    %v4829 = vadd.f32 %v4652, %v4828
    %v4830 = vand.u32 %v3407, 4294901760
    %4831 = vmatmul.f32.gmra.mxu0 %v4830
    %v4832 = vpop.f32.mrf.mxu0
    %v4833 = vadd.f32 %v4656, %v4832
    %4834 = vdwg.mxu0
    %v4835 = vld [vmem:[%s3] sm:$0xff]
    %v4836 = vld [vmem:[%s3 + $0x8] sm:$0xff]
    %v4837 = vld [vmem:[%s3 + $0x10] sm:$0xff]
    %v4838 = vld [vmem:[%s3 + $0x18] sm:$0xff]
    %v4839 = vld [vmem:[%s3 + $0x20] sm:$0xff]
    %v4840 = vld [vmem:[%s3 + $0x28] sm:$0xff]
    %v4841 = vld [vmem:[%s3 + $0x30] sm:$0xff]
    %v4842 = vld [vmem:[%s3 + $0x38] sm:$0xff]
    %v4843 = vld [vmem:[%s3 + $0x40] sm:$0xff]
    %v4844 = vld [vmem:[%s3 + $0x48] sm:$0xff]
    %v4845 = vld [vmem:[%s3 + $0x50] sm:$0xff]
    %v4846 = vld [vmem:[%s3 + $0x58] sm:$0xff]
    %v4847 = vld [vmem:[%s3 + $0x60] sm:$0xff]
    %v4848 = vld [vmem:[%s3 + $0x68] sm:$0xff]
    %v4849 = vld [vmem:[%s3 + $0x70] sm:$0xff]
    %v4850 = vld [vmem:[%s3 + $0x78] sm:$0xff]
    %v4851 = vld [vmem:[%s3 + $0x80] sm:$0xff]
    %v4852 = vld [vmem:[%s3 + $0x88] sm:$0xff]
    %v4853 = vld [vmem:[%s3 + $0x90] sm:$0xff]
    %v4854 = vld [vmem:[%s3 + $0x98] sm:$0xff]
    %v4855 = vld [vmem:[%s3 + $0xa0] sm:$0xff]
    %v4856 = vld [vmem:[%s3 + $0xa8] sm:$0xff]
    %v4857 = vld [vmem:[%s3 + $0xb0] sm:$0xff]
    %v4858 = vld [vmem:[%s3 + $0xb8] sm:$0xff]
    %v4859 = vld [vmem:[%s3 + $0xc0] sm:$0xff]
    %v4860 = vld [vmem:[%s3 + $0xc8] sm:$0xff]
    %v4861 = vld [vmem:[%s3 + $0xd0] sm:$0xff]
    %v4862 = vld [vmem:[%s3 + $0xd8] sm:$0xff]
    %v4863 = vld [vmem:[%s3 + $0xe0] sm:$0xff]
    %v4864 = vld [vmem:[%s3 + $0xe8] sm:$0xff]
    %v4865 = vld [vmem:[%s3 + $0xf0] sm:$0xff]
    %v4866 = vld [vmem:[%s3 + $0xf8] sm:$0xff]
    %v4867 = vld [vmem:[%s3 + $0x100] sm:$0xff]
    %v4868 = vld [vmem:[%s3 + $0x108] sm:$0xff]
    %v4869 = vld [vmem:[%s3 + $0x110] sm:$0xff]
    %v4870 = vld [vmem:[%s3 + $0x118] sm:$0xff]
    %v4872 = vsel %vm76, %v4835, 0
    %v4875 = vsel %vm76, %v4836, 0
    %v4878 = vsel %vm76, %v4837, 0
    %v4881 = vsel %vm76, %v4838, 0
    %v4884 = vsel %vm76, %v4839, 0
    %v4887 = vsel %vm76, %v4840, 0
    %v4890 = vsel %vm76, %v4841, 0
    %v4893 = vsel %vm76, %v4842, 0
    %v4896 = vsel %vm76, %v4843, 0
    %v4899 = vsel %vm76, %v4844, 0
    %v4902 = vsel %vm76, %v4845, 0
    %v4905 = vsel %vm76, %v4846, 0
    %v4908 = vsel %vm76, %v4847, 0
    %v4911 = vsel %vm76, %v4848, 0
    %v4914 = vsel %vm76, %v4849, 0
    %v4917 = vsel %vm76, %v4850, 0
    %v4920 = vsel %vm76, %v4851, 0
    %v4923 = vsel %vm76, %v4852, 0
    %v4926 = vsel %vm76, %v4853, 0
    %v4929 = vsel %vm76, %v4854, 0
    %v4932 = vsel %vm76, %v4855, 0
    %v4935 = vsel %vm76, %v4856, 0
    %v4938 = vsel %vm76, %v4857, 0
    %v4941 = vsel %vm76, %v4858, 0
    %v4944 = vsel %vm76, %v4859, 0
    %v4947 = vsel %vm76, %v4860, 0
    %v4950 = vsel %vm76, %v4861, 0
    %v4953 = vsel %vm76, %v4862, 0
    %v4956 = vsel %vm76, %v4863, 0
    %v4959 = vsel %vm76, %v4864, 0
    %v4962 = vsel %vm76, %v4865, 0
    %v4965 = vsel %vm76, %v4866, 0
    %v4968 = vsel %vm76, %v4867, 0
    %v4971 = vsel %vm76, %v4868, 0
    %v4974 = vsel %vm76, %v4869, 0
    %v4977 = vsel %vm76, %v4870, 0
    %v4979 = vand.u32 %v231, 4294901760
    %4980 = vmatpush.xpose.msra.mxu0 %v4979
    %v4981 = vand.u32 %v228, 4294901760
    %4982 = vmatpush.xpose.msra.mxu0 %v4981
    %v4983 = vand.u32 %v225, 4294901760
    %4984 = vmatpush.xpose.msra.mxu0 %v4983
    %v4985 = vand.u32 %v222, 4294901760
    %4986 = vmatpush.xpose.msra.mxu0 %v4985
    %v4987 = vand.u32 %v219, 4294901760
    %4988 = vmatpush.xpose.msra.mxu0 %v4987
    %v4989 = vand.u32 %v216, 4294901760
    %4990 = vmatpush.xpose.msra.mxu0 %v4989
    %v4991 = vand.u32 %v213, 4294901760
    %4992 = vmatpush.xpose.msra.mxu0 %v4991
    %v4993 = vand.u32 %v210, 4294901760
    %4994 = vmatpush.xpose.msra.mxu0 %v4993
    %v4995 = vand.u32 %v207, 4294901760
    %4996 = vmatpush.xpose.msra.mxu0 %v4995
    %v4997 = vand.u32 %v204, 4294901760
    %4998 = vmatpush.xpose.msra.mxu0 %v4997
    %v4999 = vand.u32 %v201, 4294901760
    %5000 = vmatpush.xpose.msra.mxu0 %v4999
    %v5001 = vand.u32 %v198, 4294901760
    %5002 = vmatpush.xpose.msra.mxu0 %v5001
    %v5003 = vand.u32 %v195, 4294901760
    %5004 = vmatpush.xpose.msra.mxu0 %v5003
    %v5005 = vand.u32 %v192, 4294901760
    %5006 = vmatpush.xpose.msra.mxu0 %v5005
    %v5007 = vand.u32 %v189, 4294901760
    %5008 = vmatpush.xpose.msra.mxu0 %v5007
    %v5009 = vand.u32 %v186, 4294901760
    %5010 = vmatpush.xpose.msra.mxu0 %v5009
    %v5011 = vand.u32 %v4872, 4294901760
    %v5012 = vsub.f32 %v4872, %v5011
    %v5013 = vand.u32 %v5012, 4294901760
    %v5014 = vsub.f32 %v5012, %v5013
    %v5015 = vand.u32 %v5014, 4294901760
    %5016 = vmatmul.f32.gmra.mxu0 %v5015
    %v5017 = vpop.f32.mrf.mxu0
    %v5018 = vadd.f32 0.0, %v5017
    %v5019 = vand.u32 %v4875, 4294901760
    %v5020 = vsub.f32 %v4875, %v5019
    %v5021 = vand.u32 %v5020, 4294901760
    %v5022 = vsub.f32 %v5020, %v5021
    %v5023 = vand.u32 %v5022, 4294901760
    %5024 = vmatmul.f32.gmra.mxu0 %v5023
    %v5025 = vpop.f32.mrf.mxu0
    %v5026 = vadd.f32 0.0, %v5025
    %v5027 = vand.u32 %v4878, 4294901760
    %v5028 = vsub.f32 %v4878, %v5027
    %v5029 = vand.u32 %v5028, 4294901760
    %v5030 = vsub.f32 %v5028, %v5029
    %v5031 = vand.u32 %v5030, 4294901760
    %5032 = vmatmul.f32.gmra.mxu0 %v5031
    %v5033 = vpop.f32.mrf.mxu0
    %v5034 = vadd.f32 0.0, %v5033
    %v5035 = vand.u32 %v4881, 4294901760
    %v5036 = vsub.f32 %v4881, %v5035
    %v5037 = vand.u32 %v5036, 4294901760
    %v5038 = vsub.f32 %v5036, %v5037
    %v5039 = vand.u32 %v5038, 4294901760
    %5040 = vmatmul.f32.gmra.mxu0 %v5039
    %v5041 = vpop.f32.mrf.mxu0
    %v5042 = vadd.f32 0.0, %v5041
    %v5043 = vand.u32 %v4884, 4294901760
    %v5044 = vsub.f32 %v4884, %v5043
    %v5045 = vand.u32 %v5044, 4294901760
    %v5046 = vsub.f32 %v5044, %v5045
    %v5047 = vand.u32 %v5046, 4294901760
    %5048 = vmatmul.f32.gmra.mxu0 %v5047
    %v5049 = vpop.f32.mrf.mxu0
    %v5050 = vadd.f32 0.0, %v5049
    %v5051 = vand.u32 %v4887, 4294901760
    %v5052 = vsub.f32 %v4887, %v5051
    %v5053 = vand.u32 %v5052, 4294901760
    %v5054 = vsub.f32 %v5052, %v5053
    %v5055 = vand.u32 %v5054, 4294901760
    %5056 = vmatmul.f32.gmra.mxu0 %v5055
    %v5057 = vpop.f32.mrf.mxu0
    %v5058 = vadd.f32 0.0, %v5057
    %v5059 = vand.u32 %v4890, 4294901760
    %v5060 = vsub.f32 %v4890, %v5059
    %v5061 = vand.u32 %v5060, 4294901760
    %v5062 = vsub.f32 %v5060, %v5061
    %v5063 = vand.u32 %v5062, 4294901760
    %5064 = vmatmul.f32.gmra.mxu0 %v5063
    %v5065 = vpop.f32.mrf.mxu0
    %v5066 = vadd.f32 0.0, %v5065
    %v5067 = vand.u32 %v4893, 4294901760
    %v5068 = vsub.f32 %v4893, %v5067
    %v5069 = vand.u32 %v5068, 4294901760
    %v5070 = vsub.f32 %v5068, %v5069
    %v5071 = vand.u32 %v5070, 4294901760
    %5072 = vmatmul.f32.gmra.mxu0 %v5071
    %v5073 = vpop.f32.mrf.mxu0
    %v5074 = vadd.f32 0.0, %v5073
    %v5075 = vand.u32 %v4896, 4294901760
    %v5076 = vsub.f32 %v4896, %v5075
    %v5077 = vand.u32 %v5076, 4294901760
    %v5078 = vsub.f32 %v5076, %v5077
    %v5079 = vand.u32 %v5078, 4294901760
    %5080 = vmatmul.f32.gmra.mxu0 %v5079
    %v5081 = vpop.f32.mrf.mxu0
    %v5082 = vadd.f32 0.0, %v5081
    %v5083 = vand.u32 %v4899, 4294901760
    %v5084 = vsub.f32 %v4899, %v5083
    %v5085 = vand.u32 %v5084, 4294901760
    %v5086 = vsub.f32 %v5084, %v5085
    %v5087 = vand.u32 %v5086, 4294901760
    %5088 = vmatmul.f32.gmra.mxu0 %v5087
    %v5089 = vpop.f32.mrf.mxu0
    %v5090 = vadd.f32 0.0, %v5089
    %v5091 = vand.u32 %v4902, 4294901760
    %v5092 = vsub.f32 %v4902, %v5091
    %v5093 = vand.u32 %v5092, 4294901760
    %v5094 = vsub.f32 %v5092, %v5093
    %v5095 = vand.u32 %v5094, 4294901760
    %5096 = vmatmul.f32.gmra.mxu0 %v5095
    %v5097 = vpop.f32.mrf.mxu0
    %v5098 = vadd.f32 0.0, %v5097
    %v5099 = vand.u32 %v4905, 4294901760
    %v5100 = vsub.f32 %v4905, %v5099
    %v5101 = vand.u32 %v5100, 4294901760
    %v5102 = vsub.f32 %v5100, %v5101
    %v5103 = vand.u32 %v5102, 4294901760
    %5104 = vmatmul.f32.gmra.mxu0 %v5103
    %v5105 = vpop.f32.mrf.mxu0
    %v5106 = vadd.f32 0.0, %v5105
    %v5107 = vand.u32 %v4908, 4294901760
    %v5108 = vsub.f32 %v4908, %v5107
    %v5109 = vand.u32 %v5108, 4294901760
    %v5110 = vsub.f32 %v5108, %v5109
    %v5111 = vand.u32 %v5110, 4294901760
    %5112 = vmatmul.f32.gmra.mxu0 %v5111
    %v5113 = vpop.f32.mrf.mxu0
    %v5114 = vadd.f32 0.0, %v5113
    %v5115 = vand.u32 %v4911, 4294901760
    %v5116 = vsub.f32 %v4911, %v5115
    %v5117 = vand.u32 %v5116, 4294901760
    %v5118 = vsub.f32 %v5116, %v5117
    %v5119 = vand.u32 %v5118, 4294901760
    %5120 = vmatmul.f32.gmra.mxu0 %v5119
    %v5121 = vpop.f32.mrf.mxu0
    %v5122 = vadd.f32 0.0, %v5121
    %v5123 = vand.u32 %v4914, 4294901760
    %v5124 = vsub.f32 %v4914, %v5123
    %v5125 = vand.u32 %v5124, 4294901760
    %v5126 = vsub.f32 %v5124, %v5125
    %v5127 = vand.u32 %v5126, 4294901760
    %5128 = vmatmul.f32.gmra.mxu0 %v5127
    %v5129 = vpop.f32.mrf.mxu0
    %v5130 = vadd.f32 0.0, %v5129
    %v5131 = vand.u32 %v4917, 4294901760
    %v5132 = vsub.f32 %v4917, %v5131
    %v5133 = vand.u32 %v5132, 4294901760
    %v5134 = vsub.f32 %v5132, %v5133
    %v5135 = vand.u32 %v5134, 4294901760
    %5136 = vmatmul.f32.gmra.mxu0 %v5135
    %v5137 = vpop.f32.mrf.mxu0
    %v5138 = vadd.f32 0.0, %v5137
    %v5139 = vand.u32 %v4920, 4294901760
    %v5140 = vsub.f32 %v4920, %v5139
    %v5141 = vand.u32 %v5140, 4294901760
    %v5142 = vsub.f32 %v5140, %v5141
    %v5143 = vand.u32 %v5142, 4294901760
    %5144 = vmatmul.f32.gmra.mxu0 %v5143
    %v5145 = vpop.f32.mrf.mxu0
    %v5146 = vadd.f32 0.0, %v5145
    %v5147 = vand.u32 %v4923, 4294901760
    %v5148 = vsub.f32 %v4923, %v5147
    %v5149 = vand.u32 %v5148, 4294901760
    %v5150 = vsub.f32 %v5148, %v5149
    %v5151 = vand.u32 %v5150, 4294901760
    %5152 = vmatmul.f32.gmra.mxu0 %v5151
    %v5153 = vpop.f32.mrf.mxu0
    %v5154 = vadd.f32 0.0, %v5153
    %v5155 = vand.u32 %v4926, 4294901760
    %v5156 = vsub.f32 %v4926, %v5155
    %v5157 = vand.u32 %v5156, 4294901760
    %v5158 = vsub.f32 %v5156, %v5157
    %v5159 = vand.u32 %v5158, 4294901760
    %5160 = vmatmul.f32.gmra.mxu0 %v5159
    %v5161 = vpop.f32.mrf.mxu0
    %v5162 = vadd.f32 0.0, %v5161
    %v5163 = vand.u32 %v4929, 4294901760
    %v5164 = vsub.f32 %v4929, %v5163
    %v5165 = vand.u32 %v5164, 4294901760
    %v5166 = vsub.f32 %v5164, %v5165
    %v5167 = vand.u32 %v5166, 4294901760
    %5168 = vmatmul.f32.gmra.mxu0 %v5167
    %v5169 = vpop.f32.mrf.mxu0
    %v5170 = vadd.f32 0.0, %v5169
    %v5171 = vand.u32 %v4932, 4294901760
    %v5172 = vsub.f32 %v4932, %v5171
    %v5173 = vand.u32 %v5172, 4294901760
    %v5174 = vsub.f32 %v5172, %v5173
    %v5175 = vand.u32 %v5174, 4294901760
    %5176 = vmatmul.f32.gmra.mxu0 %v5175
    %v5177 = vpop.f32.mrf.mxu0
    %v5178 = vadd.f32 0.0, %v5177
    %v5179 = vand.u32 %v4935, 4294901760
    %v5180 = vsub.f32 %v4935, %v5179
    %v5181 = vand.u32 %v5180, 4294901760
    %v5182 = vsub.f32 %v5180, %v5181
    %v5183 = vand.u32 %v5182, 4294901760
    %5184 = vmatmul.f32.gmra.mxu0 %v5183
    %v5185 = vpop.f32.mrf.mxu0
    %v5186 = vadd.f32 0.0, %v5185
    %v5187 = vand.u32 %v4938, 4294901760
    %v5188 = vsub.f32 %v4938, %v5187
    %v5189 = vand.u32 %v5188, 4294901760
    %v5190 = vsub.f32 %v5188, %v5189
    %v5191 = vand.u32 %v5190, 4294901760
    %5192 = vmatmul.f32.gmra.mxu0 %v5191
    %v5193 = vpop.f32.mrf.mxu0
    %v5194 = vadd.f32 0.0, %v5193
    %v5195 = vand.u32 %v4941, 4294901760
    %v5196 = vsub.f32 %v4941, %v5195
    %v5197 = vand.u32 %v5196, 4294901760
    %v5198 = vsub.f32 %v5196, %v5197
    %v5199 = vand.u32 %v5198, 4294901760
    %5200 = vmatmul.f32.gmra.mxu0 %v5199
    %v5201 = vpop.f32.mrf.mxu0
    %v5202 = vadd.f32 0.0, %v5201
    %v5203 = vand.u32 %v4944, 4294901760
    %v5204 = vsub.f32 %v4944, %v5203
    %v5205 = vand.u32 %v5204, 4294901760
    %v5206 = vsub.f32 %v5204, %v5205
    %v5207 = vand.u32 %v5206, 4294901760
    %5208 = vmatmul.f32.gmra.mxu0 %v5207
    %v5209 = vpop.f32.mrf.mxu0
    %v5210 = vadd.f32 0.0, %v5209
    %v5211 = vand.u32 %v4947, 4294901760
    %v5212 = vsub.f32 %v4947, %v5211
    %v5213 = vand.u32 %v5212, 4294901760
    %v5214 = vsub.f32 %v5212, %v5213
    %v5215 = vand.u32 %v5214, 4294901760
    %5216 = vmatmul.f32.gmra.mxu0 %v5215
    %v5217 = vpop.f32.mrf.mxu0
    %v5218 = vadd.f32 0.0, %v5217
    %v5219 = vand.u32 %v4950, 4294901760
    %v5220 = vsub.f32 %v4950, %v5219
    %v5221 = vand.u32 %v5220, 4294901760
    %v5222 = vsub.f32 %v5220, %v5221
    %v5223 = vand.u32 %v5222, 4294901760
    %5224 = vmatmul.f32.gmra.mxu0 %v5223
    %v5225 = vpop.f32.mrf.mxu0
    %v5226 = vadd.f32 0.0, %v5225
    %v5227 = vand.u32 %v4953, 4294901760
    %v5228 = vsub.f32 %v4953, %v5227
    %v5229 = vand.u32 %v5228, 4294901760
    %v5230 = vsub.f32 %v5228, %v5229
    %v5231 = vand.u32 %v5230, 4294901760
    %5232 = vmatmul.f32.gmra.mxu0 %v5231
    %v5233 = vpop.f32.mrf.mxu0
    %v5234 = vadd.f32 0.0, %v5233
    %v5235 = vand.u32 %v4956, 4294901760
    %v5236 = vsub.f32 %v4956, %v5235
    %v5237 = vand.u32 %v5236, 4294901760
    %v5238 = vsub.f32 %v5236, %v5237
    %v5239 = vand.u32 %v5238, 4294901760
    %5240 = vmatmul.f32.gmra.mxu0 %v5239
    %v5241 = vpop.f32.mrf.mxu0
    %v5242 = vadd.f32 0.0, %v5241
    %v5243 = vand.u32 %v4959, 4294901760
    %v5244 = vsub.f32 %v4959, %v5243
    %v5245 = vand.u32 %v5244, 4294901760
    %v5246 = vsub.f32 %v5244, %v5245
    %v5247 = vand.u32 %v5246, 4294901760
    %5248 = vmatmul.f32.gmra.mxu0 %v5247
    %v5249 = vpop.f32.mrf.mxu0
    %v5250 = vadd.f32 0.0, %v5249
    %v5251 = vand.u32 %v4962, 4294901760
    %v5252 = vsub.f32 %v4962, %v5251
    %v5253 = vand.u32 %v5252, 4294901760
    %v5254 = vsub.f32 %v5252, %v5253
    %v5255 = vand.u32 %v5254, 4294901760
    %5256 = vmatmul.f32.gmra.mxu0 %v5255
    %v5257 = vpop.f32.mrf.mxu0
    %v5258 = vadd.f32 0.0, %v5257
    %v5259 = vand.u32 %v4965, 4294901760
    %v5260 = vsub.f32 %v4965, %v5259
    %v5261 = vand.u32 %v5260, 4294901760
    %v5262 = vsub.f32 %v5260, %v5261
    %v5263 = vand.u32 %v5262, 4294901760
    %5264 = vmatmul.f32.gmra.mxu0 %v5263
    %v5265 = vpop.f32.mrf.mxu0
    %v5266 = vadd.f32 0.0, %v5265
    %v5267 = vand.u32 %v4968, 4294901760
    %v5268 = vsub.f32 %v4968, %v5267
    %v5269 = vand.u32 %v5268, 4294901760
    %v5270 = vsub.f32 %v5268, %v5269
    %v5271 = vand.u32 %v5270, 4294901760
    %5272 = vmatmul.f32.gmra.mxu0 %v5271
    %v5273 = vpop.f32.mrf.mxu0
    %v5274 = vadd.f32 0.0, %v5273
    %v5275 = vand.u32 %v4971, 4294901760
    %v5276 = vsub.f32 %v4971, %v5275
    %v5277 = vand.u32 %v5276, 4294901760
    %v5278 = vsub.f32 %v5276, %v5277
    %v5279 = vand.u32 %v5278, 4294901760
    %5280 = vmatmul.f32.gmra.mxu0 %v5279
    %v5281 = vpop.f32.mrf.mxu0
    %v5282 = vadd.f32 0.0, %v5281
    %v5283 = vand.u32 %v4974, 4294901760
    %v5284 = vsub.f32 %v4974, %v5283
    %v5285 = vand.u32 %v5284, 4294901760
    %v5286 = vsub.f32 %v5284, %v5285
    %v5287 = vand.u32 %v5286, 4294901760
    %5288 = vmatmul.f32.gmra.mxu0 %v5287
    %v5289 = vpop.f32.mrf.mxu0
    %v5290 = vadd.f32 0.0, %v5289
    %v5291 = vand.u32 %v4977, 4294901760
    %v5292 = vsub.f32 %v4977, %v5291
    %v5293 = vand.u32 %v5292, 4294901760
    %v5294 = vsub.f32 %v5292, %v5293
    %v5295 = vand.u32 %v5294, 4294901760
    %5296 = vmatmul.f32.gmra.mxu0 %v5295
    %v5297 = vpop.f32.mrf.mxu0
    %v5298 = vadd.f32 0.0, %v5297
    %5299 = vdwg.mxu0
    %v5300 = vand.u32 %v231, 4294901760
    %v5301 = vsub.f32 %v231, %v5300
    %v5302 = vand.u32 %v5301, 4294901760
    %v5303 = vsub.f32 %v5301, %v5302
    %v5304 = vand.u32 %v5303, 4294901760
    %5305 = vmatpush.xpose.msra.mxu0 %v5304
    %v5306 = vand.u32 %v228, 4294901760
    %v5307 = vsub.f32 %v228, %v5306
    %v5308 = vand.u32 %v5307, 4294901760
    %v5309 = vsub.f32 %v5307, %v5308
    %v5310 = vand.u32 %v5309, 4294901760
    %5311 = vmatpush.xpose.msra.mxu0 %v5310
    %v5312 = vand.u32 %v225, 4294901760
    %v5313 = vsub.f32 %v225, %v5312
    %v5314 = vand.u32 %v5313, 4294901760
    %v5315 = vsub.f32 %v5313, %v5314
    %v5316 = vand.u32 %v5315, 4294901760
    %5317 = vmatpush.xpose.msra.mxu0 %v5316
    %v5318 = vand.u32 %v222, 4294901760
    %v5319 = vsub.f32 %v222, %v5318
    %v5320 = vand.u32 %v5319, 4294901760
    %v5321 = vsub.f32 %v5319, %v5320
    %v5322 = vand.u32 %v5321, 4294901760
    %5323 = vmatpush.xpose.msra.mxu0 %v5322
    %v5324 = vand.u32 %v219, 4294901760
    %v5325 = vsub.f32 %v219, %v5324
    %v5326 = vand.u32 %v5325, 4294901760
    %v5327 = vsub.f32 %v5325, %v5326
    %v5328 = vand.u32 %v5327, 4294901760
    %5329 = vmatpush.xpose.msra.mxu0 %v5328
    %v5330 = vand.u32 %v216, 4294901760
    %v5331 = vsub.f32 %v216, %v5330
    %v5332 = vand.u32 %v5331, 4294901760
    %v5333 = vsub.f32 %v5331, %v5332
    %v5334 = vand.u32 %v5333, 4294901760
    %5335 = vmatpush.xpose.msra.mxu0 %v5334
    %v5336 = vand.u32 %v213, 4294901760
    %v5337 = vsub.f32 %v213, %v5336
    %v5338 = vand.u32 %v5337, 4294901760
    %v5339 = vsub.f32 %v5337, %v5338
    %v5340 = vand.u32 %v5339, 4294901760
    %5341 = vmatpush.xpose.msra.mxu0 %v5340
    %v5342 = vand.u32 %v210, 4294901760
    %v5343 = vsub.f32 %v210, %v5342
    %v5344 = vand.u32 %v5343, 4294901760
    %v5345 = vsub.f32 %v5343, %v5344
    %v5346 = vand.u32 %v5345, 4294901760
    %5347 = vmatpush.xpose.msra.mxu0 %v5346
    %v5348 = vand.u32 %v207, 4294901760
    %v5349 = vsub.f32 %v207, %v5348
    %v5350 = vand.u32 %v5349, 4294901760
    %v5351 = vsub.f32 %v5349, %v5350
    %v5352 = vand.u32 %v5351, 4294901760
    %5353 = vmatpush.xpose.msra.mxu0 %v5352
    %v5354 = vand.u32 %v204, 4294901760
    %v5355 = vsub.f32 %v204, %v5354
    %v5356 = vand.u32 %v5355, 4294901760
    %v5357 = vsub.f32 %v5355, %v5356
    %v5358 = vand.u32 %v5357, 4294901760
    %5359 = vmatpush.xpose.msra.mxu0 %v5358
    %v5360 = vand.u32 %v201, 4294901760
    %v5361 = vsub.f32 %v201, %v5360
    %v5362 = vand.u32 %v5361, 4294901760
    %v5363 = vsub.f32 %v5361, %v5362
    %v5364 = vand.u32 %v5363, 4294901760
    %5365 = vmatpush.xpose.msra.mxu0 %v5364
    %v5366 = vand.u32 %v198, 4294901760
    %v5367 = vsub.f32 %v198, %v5366
    %v5368 = vand.u32 %v5367, 4294901760
    %v5369 = vsub.f32 %v5367, %v5368
    %v5370 = vand.u32 %v5369, 4294901760
    %5371 = vmatpush.xpose.msra.mxu0 %v5370
    %v5372 = vand.u32 %v195, 4294901760
    %v5373 = vsub.f32 %v195, %v5372
    %v5374 = vand.u32 %v5373, 4294901760
    %v5375 = vsub.f32 %v5373, %v5374
    %v5376 = vand.u32 %v5375, 4294901760
    %5377 = vmatpush.xpose.msra.mxu0 %v5376
    %v5378 = vand.u32 %v192, 4294901760
    %v5379 = vsub.f32 %v192, %v5378
    %v5380 = vand.u32 %v5379, 4294901760
    %v5381 = vsub.f32 %v5379, %v5380
    %v5382 = vand.u32 %v5381, 4294901760
    %5383 = vmatpush.xpose.msra.mxu0 %v5382
    %v5384 = vand.u32 %v189, 4294901760
    %v5385 = vsub.f32 %v189, %v5384
    %v5386 = vand.u32 %v5385, 4294901760
    %v5387 = vsub.f32 %v5385, %v5386
    %v5388 = vand.u32 %v5387, 4294901760
    %5389 = vmatpush.xpose.msra.mxu0 %v5388
    %v5390 = vand.u32 %v186, 4294901760
    %v5391 = vsub.f32 %v186, %v5390
    %v5392 = vand.u32 %v5391, 4294901760
    %v5393 = vsub.f32 %v5391, %v5392
    %v5394 = vand.u32 %v5393, 4294901760
    %5395 = vmatpush.xpose.msra.mxu0 %v5394
    %v5396 = vand.u32 %v4872, 4294901760
    %5397 = vmatmul.f32.gmra.mxu0 %v5396
    %v5398 = vpop.f32.mrf.mxu0
    %v5399 = vadd.f32 %v5018, %v5398
    %v5400 = vand.u32 %v4875, 4294901760
    %5401 = vmatmul.f32.gmra.mxu0 %v5400
    %v5402 = vpop.f32.mrf.mxu0
    %v5403 = vadd.f32 %v5026, %v5402
    %v5404 = vand.u32 %v4878, 4294901760
    %5405 = vmatmul.f32.gmra.mxu0 %v5404
    %v5406 = vpop.f32.mrf.mxu0
    %v5407 = vadd.f32 %v5034, %v5406
    %v5408 = vand.u32 %v4881, 4294901760
    %5409 = vmatmul.f32.gmra.mxu0 %v5408
    %v5410 = vpop.f32.mrf.mxu0
    %v5411 = vadd.f32 %v5042, %v5410
    %v5412 = vand.u32 %v4884, 4294901760
    %5413 = vmatmul.f32.gmra.mxu0 %v5412
    %v5414 = vpop.f32.mrf.mxu0
    %v5415 = vadd.f32 %v5050, %v5414
    %v5416 = vand.u32 %v4887, 4294901760
    %5417 = vmatmul.f32.gmra.mxu0 %v5416
    %v5418 = vpop.f32.mrf.mxu0
    %v5419 = vadd.f32 %v5058, %v5418
    %v5420 = vand.u32 %v4890, 4294901760
    %5421 = vmatmul.f32.gmra.mxu0 %v5420
    %v5422 = vpop.f32.mrf.mxu0
    %v5423 = vadd.f32 %v5066, %v5422
    %v5424 = vand.u32 %v4893, 4294901760
    %5425 = vmatmul.f32.gmra.mxu0 %v5424
    %v5426 = vpop.f32.mrf.mxu0
    %v5427 = vadd.f32 %v5074, %v5426
    %v5428 = vand.u32 %v4896, 4294901760
    %5429 = vmatmul.f32.gmra.mxu0 %v5428
    %v5430 = vpop.f32.mrf.mxu0
    %v5431 = vadd.f32 %v5082, %v5430
    %v5432 = vand.u32 %v4899, 4294901760
    %5433 = vmatmul.f32.gmra.mxu0 %v5432
    %v5434 = vpop.f32.mrf.mxu0
    %v5435 = vadd.f32 %v5090, %v5434
    %v5436 = vand.u32 %v4902, 4294901760
    %5437 = vmatmul.f32.gmra.mxu0 %v5436
    %v5438 = vpop.f32.mrf.mxu0
    %v5439 = vadd.f32 %v5098, %v5438
    %v5440 = vand.u32 %v4905, 4294901760
    %5441 = vmatmul.f32.gmra.mxu0 %v5440
    %v5442 = vpop.f32.mrf.mxu0
    %v5443 = vadd.f32 %v5106, %v5442
    %v5444 = vand.u32 %v4908, 4294901760
    %5445 = vmatmul.f32.gmra.mxu0 %v5444
    %v5446 = vpop.f32.mrf.mxu0
    %v5447 = vadd.f32 %v5114, %v5446
    %v5448 = vand.u32 %v4911, 4294901760
    %5449 = vmatmul.f32.gmra.mxu0 %v5448
    %v5450 = vpop.f32.mrf.mxu0
    %v5451 = vadd.f32 %v5122, %v5450
    %v5452 = vand.u32 %v4914, 4294901760
    %5453 = vmatmul.f32.gmra.mxu0 %v5452
    %v5454 = vpop.f32.mrf.mxu0
    %v5455 = vadd.f32 %v5130, %v5454
    %v5456 = vand.u32 %v4917, 4294901760
    %5457 = vmatmul.f32.gmra.mxu0 %v5456
    %v5458 = vpop.f32.mrf.mxu0
    %v5459 = vadd.f32 %v5138, %v5458
    %v5460 = vand.u32 %v4920, 4294901760
    %5461 = vmatmul.f32.gmra.mxu0 %v5460
    %v5462 = vpop.f32.mrf.mxu0
    %v5463 = vadd.f32 %v5146, %v5462
    %v5464 = vand.u32 %v4923, 4294901760
    %5465 = vmatmul.f32.gmra.mxu0 %v5464
    %v5466 = vpop.f32.mrf.mxu0
    %v5467 = vadd.f32 %v5154, %v5466
    %v5468 = vand.u32 %v4926, 4294901760
    %5469 = vmatmul.f32.gmra.mxu0 %v5468
    %v5470 = vpop.f32.mrf.mxu0
    %v5471 = vadd.f32 %v5162, %v5470
    %v5472 = vand.u32 %v4929, 4294901760
    %5473 = vmatmul.f32.gmra.mxu0 %v5472
    %v5474 = vpop.f32.mrf.mxu0
    %v5475 = vadd.f32 %v5170, %v5474
    %v5476 = vand.u32 %v4932, 4294901760
    %5477 = vmatmul.f32.gmra.mxu0 %v5476
    %v5478 = vpop.f32.mrf.mxu0
    %v5479 = vadd.f32 %v5178, %v5478
    %v5480 = vand.u32 %v4935, 4294901760
    %5481 = vmatmul.f32.gmra.mxu0 %v5480
    %v5482 = vpop.f32.mrf.mxu0
    %v5483 = vadd.f32 %v5186, %v5482
    %v5484 = vand.u32 %v4938, 4294901760
    %5485 = vmatmul.f32.gmra.mxu0 %v5484
    %v5486 = vpop.f32.mrf.mxu0
    %v5487 = vadd.f32 %v5194, %v5486
    %v5488 = vand.u32 %v4941, 4294901760
    %5489 = vmatmul.f32.gmra.mxu0 %v5488
    %v5490 = vpop.f32.mrf.mxu0
    %v5491 = vadd.f32 %v5202, %v5490
    %v5492 = vand.u32 %v4944, 4294901760
    %5493 = vmatmul.f32.gmra.mxu0 %v5492
    %v5494 = vpop.f32.mrf.mxu0
    %v5495 = vadd.f32 %v5210, %v5494
    %v5496 = vand.u32 %v4947, 4294901760
    %5497 = vmatmul.f32.gmra.mxu0 %v5496
    %v5498 = vpop.f32.mrf.mxu0
    %v5499 = vadd.f32 %v5218, %v5498
    %v5500 = vand.u32 %v4950, 4294901760
    %5501 = vmatmul.f32.gmra.mxu0 %v5500
    %v5502 = vpop.f32.mrf.mxu0
    %v5503 = vadd.f32 %v5226, %v5502
    %v5504 = vand.u32 %v4953, 4294901760
    %5505 = vmatmul.f32.gmra.mxu0 %v5504
    %v5506 = vpop.f32.mrf.mxu0
    %v5507 = vadd.f32 %v5234, %v5506
    %v5508 = vand.u32 %v4956, 4294901760
    %5509 = vmatmul.f32.gmra.mxu0 %v5508
    %v5510 = vpop.f32.mrf.mxu0
    %v5511 = vadd.f32 %v5242, %v5510
    %v5512 = vand.u32 %v4959, 4294901760
    %5513 = vmatmul.f32.gmra.mxu0 %v5512
    %v5514 = vpop.f32.mrf.mxu0
    %v5515 = vadd.f32 %v5250, %v5514
    %v5516 = vand.u32 %v4962, 4294901760
    %5517 = vmatmul.f32.gmra.mxu0 %v5516
    %v5518 = vpop.f32.mrf.mxu0
    %v5519 = vadd.f32 %v5258, %v5518
    %v5520 = vand.u32 %v4965, 4294901760
    %5521 = vmatmul.f32.gmra.mxu0 %v5520
    %v5522 = vpop.f32.mrf.mxu0
    %v5523 = vadd.f32 %v5266, %v5522
    %v5524 = vand.u32 %v4968, 4294901760
    %5525 = vmatmul.f32.gmra.mxu0 %v5524
    %v5526 = vpop.f32.mrf.mxu0
    %v5527 = vadd.f32 %v5274, %v5526
    %v5528 = vand.u32 %v4971, 4294901760
    %5529 = vmatmul.f32.gmra.mxu0 %v5528
    %v5530 = vpop.f32.mrf.mxu0
    %v5531 = vadd.f32 %v5282, %v5530
    %v5532 = vand.u32 %v4974, 4294901760
    %5533 = vmatmul.f32.gmra.mxu0 %v5532
    %v5534 = vpop.f32.mrf.mxu0
    %v5535 = vadd.f32 %v5290, %v5534
    %v5536 = vand.u32 %v4977, 4294901760
    %5537 = vmatmul.f32.gmra.mxu0 %v5536
    %v5538 = vpop.f32.mrf.mxu0
    %v5539 = vadd.f32 %v5298, %v5538
    %5540 = vdwg.mxu0
    %v5541 = vand.u32 %v231, 4294901760
    %v5542 = vsub.f32 %v231, %v5541
    %5543 = vmatpush.xpose.msra.mxu0 %v5542
    %v5544 = vand.u32 %v228, 4294901760
    %v5545 = vsub.f32 %v228, %v5544
    %5546 = vmatpush.xpose.msra.mxu0 %v5545
    %v5547 = vand.u32 %v225, 4294901760
    %v5548 = vsub.f32 %v225, %v5547
    %5549 = vmatpush.xpose.msra.mxu0 %v5548
    %v5550 = vand.u32 %v222, 4294901760
    %v5551 = vsub.f32 %v222, %v5550
    %5552 = vmatpush.xpose.msra.mxu0 %v5551
    %v5553 = vand.u32 %v219, 4294901760
    %v5554 = vsub.f32 %v219, %v5553
    %5555 = vmatpush.xpose.msra.mxu0 %v5554
    %v5556 = vand.u32 %v216, 4294901760
    %v5557 = vsub.f32 %v216, %v5556
    %5558 = vmatpush.xpose.msra.mxu0 %v5557
    %v5559 = vand.u32 %v213, 4294901760
    %v5560 = vsub.f32 %v213, %v5559
    %5561 = vmatpush.xpose.msra.mxu0 %v5560
    %v5562 = vand.u32 %v210, 4294901760
    %v5563 = vsub.f32 %v210, %v5562
    %5564 = vmatpush.xpose.msra.mxu0 %v5563
    %v5565 = vand.u32 %v207, 4294901760
    %v5566 = vsub.f32 %v207, %v5565
    %5567 = vmatpush.xpose.msra.mxu0 %v5566
    %v5568 = vand.u32 %v204, 4294901760
    %v5569 = vsub.f32 %v204, %v5568
    %5570 = vmatpush.xpose.msra.mxu0 %v5569
    %v5571 = vand.u32 %v201, 4294901760
    %v5572 = vsub.f32 %v201, %v5571
    %5573 = vmatpush.xpose.msra.mxu0 %v5572
    %v5574 = vand.u32 %v198, 4294901760
    %v5575 = vsub.f32 %v198, %v5574
    %5576 = vmatpush.xpose.msra.mxu0 %v5575
    %v5577 = vand.u32 %v195, 4294901760
    %v5578 = vsub.f32 %v195, %v5577
    %5579 = vmatpush.xpose.msra.mxu0 %v5578
    %v5580 = vand.u32 %v192, 4294901760
    %v5581 = vsub.f32 %v192, %v5580
    %5582 = vmatpush.xpose.msra.mxu0 %v5581
    %v5583 = vand.u32 %v189, 4294901760
    %v5584 = vsub.f32 %v189, %v5583
    %5585 = vmatpush.xpose.msra.mxu0 %v5584
    %v5586 = vand.u32 %v186, 4294901760
    %v5587 = vsub.f32 %v186, %v5586
    %5588 = vmatpush.xpose.msra.mxu0 %v5587
    %v5589 = vand.u32 %v4872, 4294901760
    %v5590 = vsub.f32 %v4872, %v5589
    %5591 = vmatmul.f32.gmra.mxu0 %v5590
    %v5592 = vpop.f32.mrf.mxu0
    %v5593 = vadd.f32 %v5399, %v5592
    %v5594 = vand.u32 %v4875, 4294901760
    %v5595 = vsub.f32 %v4875, %v5594
    %5596 = vmatmul.f32.gmra.mxu0 %v5595
    %v5597 = vpop.f32.mrf.mxu0
    %v5598 = vadd.f32 %v5403, %v5597
    %v5599 = vand.u32 %v4878, 4294901760
    %v5600 = vsub.f32 %v4878, %v5599
    %5601 = vmatmul.f32.gmra.mxu0 %v5600
    %v5602 = vpop.f32.mrf.mxu0
    %v5603 = vadd.f32 %v5407, %v5602
    %v5604 = vand.u32 %v4881, 4294901760
    %v5605 = vsub.f32 %v4881, %v5604
    %5606 = vmatmul.f32.gmra.mxu0 %v5605
    %v5607 = vpop.f32.mrf.mxu0
    %v5608 = vadd.f32 %v5411, %v5607
    %v5609 = vand.u32 %v4884, 4294901760
    %v5610 = vsub.f32 %v4884, %v5609
    %5611 = vmatmul.f32.gmra.mxu0 %v5610
    %v5612 = vpop.f32.mrf.mxu0
    %v5613 = vadd.f32 %v5415, %v5612
    %v5614 = vand.u32 %v4887, 4294901760
    %v5615 = vsub.f32 %v4887, %v5614
    %5616 = vmatmul.f32.gmra.mxu0 %v5615
    %v5617 = vpop.f32.mrf.mxu0
    %v5618 = vadd.f32 %v5419, %v5617
    %v5619 = vand.u32 %v4890, 4294901760
    %v5620 = vsub.f32 %v4890, %v5619
    %5621 = vmatmul.f32.gmra.mxu0 %v5620
    %v5622 = vpop.f32.mrf.mxu0
    %v5623 = vadd.f32 %v5423, %v5622
    %v5624 = vand.u32 %v4893, 4294901760
    %v5625 = vsub.f32 %v4893, %v5624
    %5626 = vmatmul.f32.gmra.mxu0 %v5625
    %v5627 = vpop.f32.mrf.mxu0
    %v5628 = vadd.f32 %v5427, %v5627
    %v5629 = vand.u32 %v4896, 4294901760
    %v5630 = vsub.f32 %v4896, %v5629
    %5631 = vmatmul.f32.gmra.mxu0 %v5630
    %v5632 = vpop.f32.mrf.mxu0
    %v5633 = vadd.f32 %v5431, %v5632
    %v5634 = vand.u32 %v4899, 4294901760
    %v5635 = vsub.f32 %v4899, %v5634
    %5636 = vmatmul.f32.gmra.mxu0 %v5635
    %v5637 = vpop.f32.mrf.mxu0
    %v5638 = vadd.f32 %v5435, %v5637
    %v5639 = vand.u32 %v4902, 4294901760
    %v5640 = vsub.f32 %v4902, %v5639
    %5641 = vmatmul.f32.gmra.mxu0 %v5640
    %v5642 = vpop.f32.mrf.mxu0
    %v5643 = vadd.f32 %v5439, %v5642
    %v5644 = vand.u32 %v4905, 4294901760
    %v5645 = vsub.f32 %v4905, %v5644
    %5646 = vmatmul.f32.gmra.mxu0 %v5645
    %v5647 = vpop.f32.mrf.mxu0
    %v5648 = vadd.f32 %v5443, %v5647
    %v5649 = vand.u32 %v4908, 4294901760
    %v5650 = vsub.f32 %v4908, %v5649
    %5651 = vmatmul.f32.gmra.mxu0 %v5650
    %v5652 = vpop.f32.mrf.mxu0
    %v5653 = vadd.f32 %v5447, %v5652
    %v5654 = vand.u32 %v4911, 4294901760
    %v5655 = vsub.f32 %v4911, %v5654
    %5656 = vmatmul.f32.gmra.mxu0 %v5655
    %v5657 = vpop.f32.mrf.mxu0
    %v5658 = vadd.f32 %v5451, %v5657
    %v5659 = vand.u32 %v4914, 4294901760
    %v5660 = vsub.f32 %v4914, %v5659
    %5661 = vmatmul.f32.gmra.mxu0 %v5660
    %v5662 = vpop.f32.mrf.mxu0
    %v5663 = vadd.f32 %v5455, %v5662
    %v5664 = vand.u32 %v4917, 4294901760
    %v5665 = vsub.f32 %v4917, %v5664
    %5666 = vmatmul.f32.gmra.mxu0 %v5665
    %v5667 = vpop.f32.mrf.mxu0
    %v5668 = vadd.f32 %v5459, %v5667
    %v5669 = vand.u32 %v4920, 4294901760
    %v5670 = vsub.f32 %v4920, %v5669
    %5671 = vmatmul.f32.gmra.mxu0 %v5670
    %v5672 = vpop.f32.mrf.mxu0
    %v5673 = vadd.f32 %v5463, %v5672
    %v5674 = vand.u32 %v4923, 4294901760
    %v5675 = vsub.f32 %v4923, %v5674
    %5676 = vmatmul.f32.gmra.mxu0 %v5675
    %v5677 = vpop.f32.mrf.mxu0
    %v5678 = vadd.f32 %v5467, %v5677
    %v5679 = vand.u32 %v4926, 4294901760
    %v5680 = vsub.f32 %v4926, %v5679
    %5681 = vmatmul.f32.gmra.mxu0 %v5680
    %v5682 = vpop.f32.mrf.mxu0
    %v5683 = vadd.f32 %v5471, %v5682
    %v5684 = vand.u32 %v4929, 4294901760
    %v5685 = vsub.f32 %v4929, %v5684
    %5686 = vmatmul.f32.gmra.mxu0 %v5685
    %v5687 = vpop.f32.mrf.mxu0
    %v5688 = vadd.f32 %v5475, %v5687
    %v5689 = vand.u32 %v4932, 4294901760
    %v5690 = vsub.f32 %v4932, %v5689
    %5691 = vmatmul.f32.gmra.mxu0 %v5690
    %v5692 = vpop.f32.mrf.mxu0
    %v5693 = vadd.f32 %v5479, %v5692
    %v5694 = vand.u32 %v4935, 4294901760
    %v5695 = vsub.f32 %v4935, %v5694
    %5696 = vmatmul.f32.gmra.mxu0 %v5695
    %v5697 = vpop.f32.mrf.mxu0
    %v5698 = vadd.f32 %v5483, %v5697
    %v5699 = vand.u32 %v4938, 4294901760
    %v5700 = vsub.f32 %v4938, %v5699
    %5701 = vmatmul.f32.gmra.mxu0 %v5700
    %v5702 = vpop.f32.mrf.mxu0
    %v5703 = vadd.f32 %v5487, %v5702
    %v5704 = vand.u32 %v4941, 4294901760
    %v5705 = vsub.f32 %v4941, %v5704
    %5706 = vmatmul.f32.gmra.mxu0 %v5705
    %v5707 = vpop.f32.mrf.mxu0
    %v5708 = vadd.f32 %v5491, %v5707
    %v5709 = vand.u32 %v4944, 4294901760
    %v5710 = vsub.f32 %v4944, %v5709
    %5711 = vmatmul.f32.gmra.mxu0 %v5710
    %v5712 = vpop.f32.mrf.mxu0
    %v5713 = vadd.f32 %v5495, %v5712
    %v5714 = vand.u32 %v4947, 4294901760
    %v5715 = vsub.f32 %v4947, %v5714
    %5716 = vmatmul.f32.gmra.mxu0 %v5715
    %v5717 = vpop.f32.mrf.mxu0
    %v5718 = vadd.f32 %v5499, %v5717
    %v5719 = vand.u32 %v4950, 4294901760
    %v5720 = vsub.f32 %v4950, %v5719
    %5721 = vmatmul.f32.gmra.mxu0 %v5720
    %v5722 = vpop.f32.mrf.mxu0
    %v5723 = vadd.f32 %v5503, %v5722
    %v5724 = vand.u32 %v4953, 4294901760
    %v5725 = vsub.f32 %v4953, %v5724
    %5726 = vmatmul.f32.gmra.mxu0 %v5725
    %v5727 = vpop.f32.mrf.mxu0
    %v5728 = vadd.f32 %v5507, %v5727
    %v5729 = vand.u32 %v4956, 4294901760
    %v5730 = vsub.f32 %v4956, %v5729
    %5731 = vmatmul.f32.gmra.mxu0 %v5730
    %v5732 = vpop.f32.mrf.mxu0
    %v5733 = vadd.f32 %v5511, %v5732
    %v5734 = vand.u32 %v4959, 4294901760
    %v5735 = vsub.f32 %v4959, %v5734
    %5736 = vmatmul.f32.gmra.mxu0 %v5735
    %v5737 = vpop.f32.mrf.mxu0
    %v5738 = vadd.f32 %v5515, %v5737
    %v5739 = vand.u32 %v4962, 4294901760
    %v5740 = vsub.f32 %v4962, %v5739
    %5741 = vmatmul.f32.gmra.mxu0 %v5740
    %v5742 = vpop.f32.mrf.mxu0
    %v5743 = vadd.f32 %v5519, %v5742
    %v5744 = vand.u32 %v4965, 4294901760
    %v5745 = vsub.f32 %v4965, %v5744
    %5746 = vmatmul.f32.gmra.mxu0 %v5745
    %v5747 = vpop.f32.mrf.mxu0
    %v5748 = vadd.f32 %v5523, %v5747
    %v5749 = vand.u32 %v4968, 4294901760
    %v5750 = vsub.f32 %v4968, %v5749
    %5751 = vmatmul.f32.gmra.mxu0 %v5750
    %v5752 = vpop.f32.mrf.mxu0
    %v5753 = vadd.f32 %v5527, %v5752
    %v5754 = vand.u32 %v4971, 4294901760
    %v5755 = vsub.f32 %v4971, %v5754
    %5756 = vmatmul.f32.gmra.mxu0 %v5755
    %v5757 = vpop.f32.mrf.mxu0
    %v5758 = vadd.f32 %v5531, %v5757
    %v5759 = vand.u32 %v4974, 4294901760
    %v5760 = vsub.f32 %v4974, %v5759
    %5761 = vmatmul.f32.gmra.mxu0 %v5760
    %v5762 = vpop.f32.mrf.mxu0
    %v5763 = vadd.f32 %v5535, %v5762
    %v5764 = vand.u32 %v4977, 4294901760
    %v5765 = vsub.f32 %v4977, %v5764
    %5766 = vmatmul.f32.gmra.mxu0 %v5765
    %v5767 = vpop.f32.mrf.mxu0
    %v5768 = vadd.f32 %v5539, %v5767
    %5769 = vdwg.mxu0
    %v5770 = vand.u32 %v231, 4294901760
    %5771 = vmatpush.xpose.msra.mxu0 %v5770
    %v5772 = vand.u32 %v228, 4294901760
    %5773 = vmatpush.xpose.msra.mxu0 %v5772
    %v5774 = vand.u32 %v225, 4294901760
    %5775 = vmatpush.xpose.msra.mxu0 %v5774
    %v5776 = vand.u32 %v222, 4294901760
    %5777 = vmatpush.xpose.msra.mxu0 %v5776
    %v5778 = vand.u32 %v219, 4294901760
    %5779 = vmatpush.xpose.msra.mxu0 %v5778
    %v5780 = vand.u32 %v216, 4294901760
    %5781 = vmatpush.xpose.msra.mxu0 %v5780
    %v5782 = vand.u32 %v213, 4294901760
    %5783 = vmatpush.xpose.msra.mxu0 %v5782
    %v5784 = vand.u32 %v210, 4294901760
    %5785 = vmatpush.xpose.msra.mxu0 %v5784
    %v5786 = vand.u32 %v207, 4294901760
    %5787 = vmatpush.xpose.msra.mxu0 %v5786
    %v5788 = vand.u32 %v204, 4294901760
    %5789 = vmatpush.xpose.msra.mxu0 %v5788
    %v5790 = vand.u32 %v201, 4294901760
    %5791 = vmatpush.xpose.msra.mxu0 %v5790
    %v5792 = vand.u32 %v198, 4294901760
    %5793 = vmatpush.xpose.msra.mxu0 %v5792
    %v5794 = vand.u32 %v195, 4294901760
    %5795 = vmatpush.xpose.msra.mxu0 %v5794
    %v5796 = vand.u32 %v192, 4294901760
    %5797 = vmatpush.xpose.msra.mxu0 %v5796
    %v5798 = vand.u32 %v189, 4294901760
    %5799 = vmatpush.xpose.msra.mxu0 %v5798
    %v5800 = vand.u32 %v186, 4294901760
    %5801 = vmatpush.xpose.msra.mxu0 %v5800
    %v5802 = vand.u32 %v4872, 4294901760
    %v5803 = vsub.f32 %v4872, %v5802
    %v5804 = vand.u32 %v5803, 4294901760
    %5805 = vmatmul.f32.gmra.mxu0 %v5804
    %v5806 = vpop.f32.mrf.mxu0
    %v5807 = vadd.f32 %v5593, %v5806
    %v5808 = vand.u32 %v4875, 4294901760
    %v5809 = vsub.f32 %v4875, %v5808
    %v5810 = vand.u32 %v5809, 4294901760
    %5811 = vmatmul.f32.gmra.mxu0 %v5810
    %v5812 = vpop.f32.mrf.mxu0
    %v5813 = vadd.f32 %v5598, %v5812
    %v5814 = vand.u32 %v4878, 4294901760
    %v5815 = vsub.f32 %v4878, %v5814
    %v5816 = vand.u32 %v5815, 4294901760
    %5817 = vmatmul.f32.gmra.mxu0 %v5816
    %v5818 = vpop.f32.mrf.mxu0
    %v5819 = vadd.f32 %v5603, %v5818
    %v5820 = vand.u32 %v4881, 4294901760
    %v5821 = vsub.f32 %v4881, %v5820
    %v5822 = vand.u32 %v5821, 4294901760
    %5823 = vmatmul.f32.gmra.mxu0 %v5822
    %v5824 = vpop.f32.mrf.mxu0
    %v5825 = vadd.f32 %v5608, %v5824
    %v5826 = vand.u32 %v4884, 4294901760
    %v5827 = vsub.f32 %v4884, %v5826
    %v5828 = vand.u32 %v5827, 4294901760
    %5829 = vmatmul.f32.gmra.mxu0 %v5828
    %v5830 = vpop.f32.mrf.mxu0
    %v5831 = vadd.f32 %v5613, %v5830
    %v5832 = vand.u32 %v4887, 4294901760
    %v5833 = vsub.f32 %v4887, %v5832
    %v5834 = vand.u32 %v5833, 4294901760
    %5835 = vmatmul.f32.gmra.mxu0 %v5834
    %v5836 = vpop.f32.mrf.mxu0
    %v5837 = vadd.f32 %v5618, %v5836
    %v5838 = vand.u32 %v4890, 4294901760
    %v5839 = vsub.f32 %v4890, %v5838
    %v5840 = vand.u32 %v5839, 4294901760
    %5841 = vmatmul.f32.gmra.mxu0 %v5840
    %v5842 = vpop.f32.mrf.mxu0
    %v5843 = vadd.f32 %v5623, %v5842
    %v5844 = vand.u32 %v4893, 4294901760
    %v5845 = vsub.f32 %v4893, %v5844
    %v5846 = vand.u32 %v5845, 4294901760
    %5847 = vmatmul.f32.gmra.mxu0 %v5846
    %v5848 = vpop.f32.mrf.mxu0
    %v5849 = vadd.f32 %v5628, %v5848
    %v5850 = vand.u32 %v4896, 4294901760
    %v5851 = vsub.f32 %v4896, %v5850
    %v5852 = vand.u32 %v5851, 4294901760
    %5853 = vmatmul.f32.gmra.mxu0 %v5852
    %v5854 = vpop.f32.mrf.mxu0
    %v5855 = vadd.f32 %v5633, %v5854
    %v5856 = vand.u32 %v4899, 4294901760
    %v5857 = vsub.f32 %v4899, %v5856
    %v5858 = vand.u32 %v5857, 4294901760
    %5859 = vmatmul.f32.gmra.mxu0 %v5858
    %v5860 = vpop.f32.mrf.mxu0
    %v5861 = vadd.f32 %v5638, %v5860
    %v5862 = vand.u32 %v4902, 4294901760
    %v5863 = vsub.f32 %v4902, %v5862
    %v5864 = vand.u32 %v5863, 4294901760
    %5865 = vmatmul.f32.gmra.mxu0 %v5864
    %v5866 = vpop.f32.mrf.mxu0
    %v5867 = vadd.f32 %v5643, %v5866
    %v5868 = vand.u32 %v4905, 4294901760
    %v5869 = vsub.f32 %v4905, %v5868
    %v5870 = vand.u32 %v5869, 4294901760
    %5871 = vmatmul.f32.gmra.mxu0 %v5870
    %v5872 = vpop.f32.mrf.mxu0
    %v5873 = vadd.f32 %v5648, %v5872
    %v5874 = vand.u32 %v4908, 4294901760
    %v5875 = vsub.f32 %v4908, %v5874
    %v5876 = vand.u32 %v5875, 4294901760
    %5877 = vmatmul.f32.gmra.mxu0 %v5876
    %v5878 = vpop.f32.mrf.mxu0
    %v5879 = vadd.f32 %v5653, %v5878
    %v5880 = vand.u32 %v4911, 4294901760
    %v5881 = vsub.f32 %v4911, %v5880
    %v5882 = vand.u32 %v5881, 4294901760
    %5883 = vmatmul.f32.gmra.mxu0 %v5882
    %v5884 = vpop.f32.mrf.mxu0
    %v5885 = vadd.f32 %v5658, %v5884
    %v5886 = vand.u32 %v4914, 4294901760
    %v5887 = vsub.f32 %v4914, %v5886
    %v5888 = vand.u32 %v5887, 4294901760
    %5889 = vmatmul.f32.gmra.mxu0 %v5888
    %v5890 = vpop.f32.mrf.mxu0
    %v5891 = vadd.f32 %v5663, %v5890
    %v5892 = vand.u32 %v4917, 4294901760
    %v5893 = vsub.f32 %v4917, %v5892
    %v5894 = vand.u32 %v5893, 4294901760
    %5895 = vmatmul.f32.gmra.mxu0 %v5894
    %v5896 = vpop.f32.mrf.mxu0
    %v5897 = vadd.f32 %v5668, %v5896
    %v5898 = vand.u32 %v4920, 4294901760
    %v5899 = vsub.f32 %v4920, %v5898
    %v5900 = vand.u32 %v5899, 4294901760
    %5901 = vmatmul.f32.gmra.mxu0 %v5900
    %v5902 = vpop.f32.mrf.mxu0
    %v5903 = vadd.f32 %v5673, %v5902
    %v5904 = vand.u32 %v4923, 4294901760
    %v5905 = vsub.f32 %v4923, %v5904
    %v5906 = vand.u32 %v5905, 4294901760
    %5907 = vmatmul.f32.gmra.mxu0 %v5906
    %v5908 = vpop.f32.mrf.mxu0
    %v5909 = vadd.f32 %v5678, %v5908
    %v5910 = vand.u32 %v4926, 4294901760
    %v5911 = vsub.f32 %v4926, %v5910
    %v5912 = vand.u32 %v5911, 4294901760
    %5913 = vmatmul.f32.gmra.mxu0 %v5912
    %v5914 = vpop.f32.mrf.mxu0
    %v5915 = vadd.f32 %v5683, %v5914
    %v5916 = vand.u32 %v4929, 4294901760
    %v5917 = vsub.f32 %v4929, %v5916
    %v5918 = vand.u32 %v5917, 4294901760
    %5919 = vmatmul.f32.gmra.mxu0 %v5918
    %v5920 = vpop.f32.mrf.mxu0
    %v5921 = vadd.f32 %v5688, %v5920
    %v5922 = vand.u32 %v4932, 4294901760
    %v5923 = vsub.f32 %v4932, %v5922
    %v5924 = vand.u32 %v5923, 4294901760
    %5925 = vmatmul.f32.gmra.mxu0 %v5924
    %v5926 = vpop.f32.mrf.mxu0
    %v5927 = vadd.f32 %v5693, %v5926
    %v5928 = vand.u32 %v4935, 4294901760
    %v5929 = vsub.f32 %v4935, %v5928
    %v5930 = vand.u32 %v5929, 4294901760
    %5931 = vmatmul.f32.gmra.mxu0 %v5930
    %v5932 = vpop.f32.mrf.mxu0
    %v5933 = vadd.f32 %v5698, %v5932
    %v5934 = vand.u32 %v4938, 4294901760
    %v5935 = vsub.f32 %v4938, %v5934
    %v5936 = vand.u32 %v5935, 4294901760
    %5937 = vmatmul.f32.gmra.mxu0 %v5936
    %v5938 = vpop.f32.mrf.mxu0
    %v5939 = vadd.f32 %v5703, %v5938
    %v5940 = vand.u32 %v4941, 4294901760
    %v5941 = vsub.f32 %v4941, %v5940
    %v5942 = vand.u32 %v5941, 4294901760
    %5943 = vmatmul.f32.gmra.mxu0 %v5942
    %v5944 = vpop.f32.mrf.mxu0
    %v5945 = vadd.f32 %v5708, %v5944
    %v5946 = vand.u32 %v4944, 4294901760
    %v5947 = vsub.f32 %v4944, %v5946
    %v5948 = vand.u32 %v5947, 4294901760
    %5949 = vmatmul.f32.gmra.mxu0 %v5948
    %v5950 = vpop.f32.mrf.mxu0
    %v5951 = vadd.f32 %v5713, %v5950
    %v5952 = vand.u32 %v4947, 4294901760
    %v5953 = vsub.f32 %v4947, %v5952
    %v5954 = vand.u32 %v5953, 4294901760
    %5955 = vmatmul.f32.gmra.mxu0 %v5954
    %v5956 = vpop.f32.mrf.mxu0
    %v5957 = vadd.f32 %v5718, %v5956
    %v5958 = vand.u32 %v4950, 4294901760
    %v5959 = vsub.f32 %v4950, %v5958
    %v5960 = vand.u32 %v5959, 4294901760
    %5961 = vmatmul.f32.gmra.mxu0 %v5960
    %v5962 = vpop.f32.mrf.mxu0
    %v5963 = vadd.f32 %v5723, %v5962
    %v5964 = vand.u32 %v4953, 4294901760
    %v5965 = vsub.f32 %v4953, %v5964
    %v5966 = vand.u32 %v5965, 4294901760
    %5967 = vmatmul.f32.gmra.mxu0 %v5966
    %v5968 = vpop.f32.mrf.mxu0
    %v5969 = vadd.f32 %v5728, %v5968
    %v5970 = vand.u32 %v4956, 4294901760
    %v5971 = vsub.f32 %v4956, %v5970
    %v5972 = vand.u32 %v5971, 4294901760
    %5973 = vmatmul.f32.gmra.mxu0 %v5972
    %v5974 = vpop.f32.mrf.mxu0
    %v5975 = vadd.f32 %v5733, %v5974
    %v5976 = vand.u32 %v4959, 4294901760
    %v5977 = vsub.f32 %v4959, %v5976
    %v5978 = vand.u32 %v5977, 4294901760
    %5979 = vmatmul.f32.gmra.mxu0 %v5978
    %v5980 = vpop.f32.mrf.mxu0
    %v5981 = vadd.f32 %v5738, %v5980
    %v5982 = vand.u32 %v4962, 4294901760
    %v5983 = vsub.f32 %v4962, %v5982
    %v5984 = vand.u32 %v5983, 4294901760
    %5985 = vmatmul.f32.gmra.mxu0 %v5984
    %v5986 = vpop.f32.mrf.mxu0
    %v5987 = vadd.f32 %v5743, %v5986
    %v5988 = vand.u32 %v4965, 4294901760
    %v5989 = vsub.f32 %v4965, %v5988
    %v5990 = vand.u32 %v5989, 4294901760
    %5991 = vmatmul.f32.gmra.mxu0 %v5990
    %v5992 = vpop.f32.mrf.mxu0
    %v5993 = vadd.f32 %v5748, %v5992
    %v5994 = vand.u32 %v4968, 4294901760
    %v5995 = vsub.f32 %v4968, %v5994
    %v5996 = vand.u32 %v5995, 4294901760
    %5997 = vmatmul.f32.gmra.mxu0 %v5996
    %v5998 = vpop.f32.mrf.mxu0
    %v5999 = vadd.f32 %v5753, %v5998
    %v6000 = vand.u32 %v4971, 4294901760
    %v6001 = vsub.f32 %v4971, %v6000
    %v6002 = vand.u32 %v6001, 4294901760
    %6003 = vmatmul.f32.gmra.mxu0 %v6002
    %v6004 = vpop.f32.mrf.mxu0
    %v6005 = vadd.f32 %v5758, %v6004
    %v6006 = vand.u32 %v4974, 4294901760
    %v6007 = vsub.f32 %v4974, %v6006
    %v6008 = vand.u32 %v6007, 4294901760
    %6009 = vmatmul.f32.gmra.mxu0 %v6008
    %v6010 = vpop.f32.mrf.mxu0
    %v6011 = vadd.f32 %v5763, %v6010
    %v6012 = vand.u32 %v4977, 4294901760
    %v6013 = vsub.f32 %v4977, %v6012
    %v6014 = vand.u32 %v6013, 4294901760
    %6015 = vmatmul.f32.gmra.mxu0 %v6014
    %v6016 = vpop.f32.mrf.mxu0
    %v6017 = vadd.f32 %v5768, %v6016
    %6018 = vdwg.mxu0
    %v6019 = vand.u32 %v231, 4294901760
    %v6020 = vsub.f32 %v231, %v6019
    %v6021 = vand.u32 %v6020, 4294901760
    %6022 = vmatpush.xpose.msra.mxu0 %v6021
    %v6023 = vand.u32 %v228, 4294901760
    %v6024 = vsub.f32 %v228, %v6023
    %v6025 = vand.u32 %v6024, 4294901760
    %6026 = vmatpush.xpose.msra.mxu0 %v6025
    %v6027 = vand.u32 %v225, 4294901760
    %v6028 = vsub.f32 %v225, %v6027
    %v6029 = vand.u32 %v6028, 4294901760
    %6030 = vmatpush.xpose.msra.mxu0 %v6029
    %v6031 = vand.u32 %v222, 4294901760
    %v6032 = vsub.f32 %v222, %v6031
    %v6033 = vand.u32 %v6032, 4294901760
    %6034 = vmatpush.xpose.msra.mxu0 %v6033
    %v6035 = vand.u32 %v219, 4294901760
    %v6036 = vsub.f32 %v219, %v6035
    %v6037 = vand.u32 %v6036, 4294901760
    %6038 = vmatpush.xpose.msra.mxu0 %v6037
    %v6039 = vand.u32 %v216, 4294901760
    %v6040 = vsub.f32 %v216, %v6039
    %v6041 = vand.u32 %v6040, 4294901760
    %6042 = vmatpush.xpose.msra.mxu0 %v6041
    %v6043 = vand.u32 %v213, 4294901760
    %v6044 = vsub.f32 %v213, %v6043
    %v6045 = vand.u32 %v6044, 4294901760
    %6046 = vmatpush.xpose.msra.mxu0 %v6045
    %v6047 = vand.u32 %v210, 4294901760
    %v6048 = vsub.f32 %v210, %v6047
    %v6049 = vand.u32 %v6048, 4294901760
    %6050 = vmatpush.xpose.msra.mxu0 %v6049
    %v6051 = vand.u32 %v207, 4294901760
    %v6052 = vsub.f32 %v207, %v6051
    %v6053 = vand.u32 %v6052, 4294901760
    %6054 = vmatpush.xpose.msra.mxu0 %v6053
    %v6055 = vand.u32 %v204, 4294901760
    %v6056 = vsub.f32 %v204, %v6055
    %v6057 = vand.u32 %v6056, 4294901760
    %6058 = vmatpush.xpose.msra.mxu0 %v6057
    %v6059 = vand.u32 %v201, 4294901760
    %v6060 = vsub.f32 %v201, %v6059
    %v6061 = vand.u32 %v6060, 4294901760
    %6062 = vmatpush.xpose.msra.mxu0 %v6061
    %v6063 = vand.u32 %v198, 4294901760
    %v6064 = vsub.f32 %v198, %v6063
    %v6065 = vand.u32 %v6064, 4294901760
    %6066 = vmatpush.xpose.msra.mxu0 %v6065
    %v6067 = vand.u32 %v195, 4294901760
    %v6068 = vsub.f32 %v195, %v6067
    %v6069 = vand.u32 %v6068, 4294901760
    %6070 = vmatpush.xpose.msra.mxu0 %v6069
    %v6071 = vand.u32 %v192, 4294901760
    %v6072 = vsub.f32 %v192, %v6071
    %v6073 = vand.u32 %v6072, 4294901760
    %6074 = vmatpush.xpose.msra.mxu0 %v6073
    %v6075 = vand.u32 %v189, 4294901760
    %v6076 = vsub.f32 %v189, %v6075
    %v6077 = vand.u32 %v6076, 4294901760
    %6078 = vmatpush.xpose.msra.mxu0 %v6077
    %v6079 = vand.u32 %v186, 4294901760
    %v6080 = vsub.f32 %v186, %v6079
    %v6081 = vand.u32 %v6080, 4294901760
    %6082 = vmatpush.xpose.msra.mxu0 %v6081
    %v6083 = vand.u32 %v4872, 4294901760
    %6084 = vmatmul.f32.gmra.mxu0 %v6083
    %v6085 = vpop.f32.mrf.mxu0
    %v6086 = vadd.f32 %v5807, %v6085
    %v6087 = vand.u32 %v4875, 4294901760
    %6088 = vmatmul.f32.gmra.mxu0 %v6087
    %v6089 = vpop.f32.mrf.mxu0
    %v6090 = vadd.f32 %v5813, %v6089
    %v6091 = vand.u32 %v4878, 4294901760
    %6092 = vmatmul.f32.gmra.mxu0 %v6091
    %v6093 = vpop.f32.mrf.mxu0
    %v6094 = vadd.f32 %v5819, %v6093
    %v6095 = vand.u32 %v4881, 4294901760
    %6096 = vmatmul.f32.gmra.mxu0 %v6095
    %v6097 = vpop.f32.mrf.mxu0
    %v6098 = vadd.f32 %v5825, %v6097
    %v6099 = vand.u32 %v4884, 4294901760
    %6100 = vmatmul.f32.gmra.mxu0 %v6099
    %v6101 = vpop.f32.mrf.mxu0
    %v6102 = vadd.f32 %v5831, %v6101
    %v6103 = vand.u32 %v4887, 4294901760
    %6104 = vmatmul.f32.gmra.mxu0 %v6103
    %v6105 = vpop.f32.mrf.mxu0
    %v6106 = vadd.f32 %v5837, %v6105
    %v6107 = vand.u32 %v4890, 4294901760
    %6108 = vmatmul.f32.gmra.mxu0 %v6107
    %v6109 = vpop.f32.mrf.mxu0
    %v6110 = vadd.f32 %v5843, %v6109
    %v6111 = vand.u32 %v4893, 4294901760
    %6112 = vmatmul.f32.gmra.mxu0 %v6111
    %v6113 = vpop.f32.mrf.mxu0
    %v6114 = vadd.f32 %v5849, %v6113
    %v6115 = vand.u32 %v4896, 4294901760
    %6116 = vmatmul.f32.gmra.mxu0 %v6115
    %v6117 = vpop.f32.mrf.mxu0
    %v6118 = vadd.f32 %v5855, %v6117
    %v6119 = vand.u32 %v4899, 4294901760
    %6120 = vmatmul.f32.gmra.mxu0 %v6119
    %v6121 = vpop.f32.mrf.mxu0
    %v6122 = vadd.f32 %v5861, %v6121
    %v6123 = vand.u32 %v4902, 4294901760
    %6124 = vmatmul.f32.gmra.mxu0 %v6123
    %v6125 = vpop.f32.mrf.mxu0
    %v6126 = vadd.f32 %v5867, %v6125
    %v6127 = vand.u32 %v4905, 4294901760
    %6128 = vmatmul.f32.gmra.mxu0 %v6127
    %v6129 = vpop.f32.mrf.mxu0
    %v6130 = vadd.f32 %v5873, %v6129
    %v6131 = vand.u32 %v4908, 4294901760
    %6132 = vmatmul.f32.gmra.mxu0 %v6131
    %v6133 = vpop.f32.mrf.mxu0
    %v6134 = vadd.f32 %v5879, %v6133
    %v6135 = vand.u32 %v4911, 4294901760
    %6136 = vmatmul.f32.gmra.mxu0 %v6135
    %v6137 = vpop.f32.mrf.mxu0
    %v6138 = vadd.f32 %v5885, %v6137
    %v6139 = vand.u32 %v4914, 4294901760
    %6140 = vmatmul.f32.gmra.mxu0 %v6139
    %v6141 = vpop.f32.mrf.mxu0
    %v6142 = vadd.f32 %v5891, %v6141
    %v6143 = vand.u32 %v4917, 4294901760
    %6144 = vmatmul.f32.gmra.mxu0 %v6143
    %v6145 = vpop.f32.mrf.mxu0
    %v6146 = vadd.f32 %v5897, %v6145
    %v6147 = vand.u32 %v4920, 4294901760
    %6148 = vmatmul.f32.gmra.mxu0 %v6147
    %v6149 = vpop.f32.mrf.mxu0
    %v6150 = vadd.f32 %v5903, %v6149
    %v6151 = vand.u32 %v4923, 4294901760
    %6152 = vmatmul.f32.gmra.mxu0 %v6151
    %v6153 = vpop.f32.mrf.mxu0
    %v6154 = vadd.f32 %v5909, %v6153
    %v6155 = vand.u32 %v4926, 4294901760
    %6156 = vmatmul.f32.gmra.mxu0 %v6155
    %v6157 = vpop.f32.mrf.mxu0
    %v6158 = vadd.f32 %v5915, %v6157
    %v6159 = vand.u32 %v4929, 4294901760
    %6160 = vmatmul.f32.gmra.mxu0 %v6159
    %v6161 = vpop.f32.mrf.mxu0
    %v6162 = vadd.f32 %v5921, %v6161
    %v6163 = vand.u32 %v4932, 4294901760
    %6164 = vmatmul.f32.gmra.mxu0 %v6163
    %v6165 = vpop.f32.mrf.mxu0
    %v6166 = vadd.f32 %v5927, %v6165
    %v6167 = vand.u32 %v4935, 4294901760
    %6168 = vmatmul.f32.gmra.mxu0 %v6167
    %v6169 = vpop.f32.mrf.mxu0
    %v6170 = vadd.f32 %v5933, %v6169
    %v6171 = vand.u32 %v4938, 4294901760
    %6172 = vmatmul.f32.gmra.mxu0 %v6171
    %v6173 = vpop.f32.mrf.mxu0
    %v6174 = vadd.f32 %v5939, %v6173
    %v6175 = vand.u32 %v4941, 4294901760
    %6176 = vmatmul.f32.gmra.mxu0 %v6175
    %v6177 = vpop.f32.mrf.mxu0
    %v6178 = vadd.f32 %v5945, %v6177
    %v6179 = vand.u32 %v4944, 4294901760
    %6180 = vmatmul.f32.gmra.mxu0 %v6179
    %v6181 = vpop.f32.mrf.mxu0
    %v6182 = vadd.f32 %v5951, %v6181
    %v6183 = vand.u32 %v4947, 4294901760
    %6184 = vmatmul.f32.gmra.mxu0 %v6183
    %v6185 = vpop.f32.mrf.mxu0
    %v6186 = vadd.f32 %v5957, %v6185
    %v6187 = vand.u32 %v4950, 4294901760
    %6188 = vmatmul.f32.gmra.mxu0 %v6187
    %v6189 = vpop.f32.mrf.mxu0
    %v6190 = vadd.f32 %v5963, %v6189
    %v6191 = vand.u32 %v4953, 4294901760
    %6192 = vmatmul.f32.gmra.mxu0 %v6191
    %v6193 = vpop.f32.mrf.mxu0
    %v6194 = vadd.f32 %v5969, %v6193
    %v6195 = vand.u32 %v4956, 4294901760
    %6196 = vmatmul.f32.gmra.mxu0 %v6195
    %v6197 = vpop.f32.mrf.mxu0
    %v6198 = vadd.f32 %v5975, %v6197
    %v6199 = vand.u32 %v4959, 4294901760
    %6200 = vmatmul.f32.gmra.mxu0 %v6199
    %v6201 = vpop.f32.mrf.mxu0
    %v6202 = vadd.f32 %v5981, %v6201
    %v6203 = vand.u32 %v4962, 4294901760
    %6204 = vmatmul.f32.gmra.mxu0 %v6203
    %v6205 = vpop.f32.mrf.mxu0
    %v6206 = vadd.f32 %v5987, %v6205
    %v6207 = vand.u32 %v4965, 4294901760
    %6208 = vmatmul.f32.gmra.mxu0 %v6207
    %v6209 = vpop.f32.mrf.mxu0
    %v6210 = vadd.f32 %v5993, %v6209
    %v6211 = vand.u32 %v4968, 4294901760
    %6212 = vmatmul.f32.gmra.mxu0 %v6211
    %v6213 = vpop.f32.mrf.mxu0
    %v6214 = vadd.f32 %v5999, %v6213
    %v6215 = vand.u32 %v4971, 4294901760
    %6216 = vmatmul.f32.gmra.mxu0 %v6215
    %v6217 = vpop.f32.mrf.mxu0
    %v6218 = vadd.f32 %v6005, %v6217
    %v6219 = vand.u32 %v4974, 4294901760
    %6220 = vmatmul.f32.gmra.mxu0 %v6219
    %v6221 = vpop.f32.mrf.mxu0
    %v6222 = vadd.f32 %v6011, %v6221
    %v6223 = vand.u32 %v4977, 4294901760
    %6224 = vmatmul.f32.gmra.mxu0 %v6223
    %v6225 = vpop.f32.mrf.mxu0
    %v6226 = vadd.f32 %v6017, %v6225
    %6227 = vdwg.mxu0
    %v6228 = vand.u32 %v231, 4294901760
    %6229 = vmatpush.xpose.msra.mxu0 %v6228
    %v6230 = vand.u32 %v228, 4294901760
    %6231 = vmatpush.xpose.msra.mxu0 %v6230
    %v6232 = vand.u32 %v225, 4294901760
    %6233 = vmatpush.xpose.msra.mxu0 %v6232
    %v6234 = vand.u32 %v222, 4294901760
    %6235 = vmatpush.xpose.msra.mxu0 %v6234
    %v6236 = vand.u32 %v219, 4294901760
    %6237 = vmatpush.xpose.msra.mxu0 %v6236
    %v6238 = vand.u32 %v216, 4294901760
    %6239 = vmatpush.xpose.msra.mxu0 %v6238
    %v6240 = vand.u32 %v213, 4294901760
    %6241 = vmatpush.xpose.msra.mxu0 %v6240
    %v6242 = vand.u32 %v210, 4294901760
    %6243 = vmatpush.xpose.msra.mxu0 %v6242
    %v6244 = vand.u32 %v207, 4294901760
    %6245 = vmatpush.xpose.msra.mxu0 %v6244
    %v6246 = vand.u32 %v204, 4294901760
    %6247 = vmatpush.xpose.msra.mxu0 %v6246
    %v6248 = vand.u32 %v201, 4294901760
    %6249 = vmatpush.xpose.msra.mxu0 %v6248
    %v6250 = vand.u32 %v198, 4294901760
    %6251 = vmatpush.xpose.msra.mxu0 %v6250
    %v6252 = vand.u32 %v195, 4294901760
    %6253 = vmatpush.xpose.msra.mxu0 %v6252
    %v6254 = vand.u32 %v192, 4294901760
    %6255 = vmatpush.xpose.msra.mxu0 %v6254
    %v6256 = vand.u32 %v189, 4294901760
    %6257 = vmatpush.xpose.msra.mxu0 %v6256
    %v6258 = vand.u32 %v186, 4294901760
    %6259 = vmatpush.xpose.msra.mxu0 %v6258
    %v6260 = vand.u32 %v4872, 4294901760
    %6261 = vmatmul.f32.gmra.mxu0 %v6260
    %v6262 = vpop.f32.mrf.mxu0
    %v6263 = vadd.f32 %v6086, %v6262
    %v6264 = vand.u32 %v4875, 4294901760
    %6265 = vmatmul.f32.gmra.mxu0 %v6264
    %v6266 = vpop.f32.mrf.mxu0
    %v6267 = vadd.f32 %v6090, %v6266
    %v6268 = vand.u32 %v4878, 4294901760
    %6269 = vmatmul.f32.gmra.mxu0 %v6268
    %v6270 = vpop.f32.mrf.mxu0
    %v6271 = vadd.f32 %v6094, %v6270
    %v6272 = vand.u32 %v4881, 4294901760
    %6273 = vmatmul.f32.gmra.mxu0 %v6272
    %v6274 = vpop.f32.mrf.mxu0
    %v6275 = vadd.f32 %v6098, %v6274
    %v6276 = vand.u32 %v4884, 4294901760
    %6277 = vmatmul.f32.gmra.mxu0 %v6276
    %v6278 = vpop.f32.mrf.mxu0
    %v6279 = vadd.f32 %v6102, %v6278
    %v6280 = vand.u32 %v4887, 4294901760
    %6281 = vmatmul.f32.gmra.mxu0 %v6280
    %v6282 = vpop.f32.mrf.mxu0
    %v6283 = vadd.f32 %v6106, %v6282
    %v6284 = vand.u32 %v4890, 4294901760
    %6285 = vmatmul.f32.gmra.mxu0 %v6284
    %v6286 = vpop.f32.mrf.mxu0
    %v6287 = vadd.f32 %v6110, %v6286
    %v6288 = vand.u32 %v4893, 4294901760
    %6289 = vmatmul.f32.gmra.mxu0 %v6288
    %v6290 = vpop.f32.mrf.mxu0
    %v6291 = vadd.f32 %v6114, %v6290
    %v6292 = vand.u32 %v4896, 4294901760
    %6293 = vmatmul.f32.gmra.mxu0 %v6292
    %v6294 = vpop.f32.mrf.mxu0
    %v6295 = vadd.f32 %v6118, %v6294
    %v6296 = vand.u32 %v4899, 4294901760
    %6297 = vmatmul.f32.gmra.mxu0 %v6296
    %v6298 = vpop.f32.mrf.mxu0
    %v6299 = vadd.f32 %v6122, %v6298
    %v6300 = vand.u32 %v4902, 4294901760
    %6301 = vmatmul.f32.gmra.mxu0 %v6300
    %v6302 = vpop.f32.mrf.mxu0
    %v6303 = vadd.f32 %v6126, %v6302
    %v6304 = vand.u32 %v4905, 4294901760
    %6305 = vmatmul.f32.gmra.mxu0 %v6304
    %v6306 = vpop.f32.mrf.mxu0
    %v6307 = vadd.f32 %v6130, %v6306
    %v6308 = vand.u32 %v4908, 4294901760
    %6309 = vmatmul.f32.gmra.mxu0 %v6308
    %v6310 = vpop.f32.mrf.mxu0
    %v6311 = vadd.f32 %v6134, %v6310
    %v6312 = vand.u32 %v4911, 4294901760
    %6313 = vmatmul.f32.gmra.mxu0 %v6312
    %v6314 = vpop.f32.mrf.mxu0
    %v6315 = vadd.f32 %v6138, %v6314
    %v6316 = vand.u32 %v4914, 4294901760
    %6317 = vmatmul.f32.gmra.mxu0 %v6316
    %v6318 = vpop.f32.mrf.mxu0
    %v6319 = vadd.f32 %v6142, %v6318
    %v6320 = vand.u32 %v4917, 4294901760
    %6321 = vmatmul.f32.gmra.mxu0 %v6320
    %v6322 = vpop.f32.mrf.mxu0
    %v6323 = vadd.f32 %v6146, %v6322
    %v6324 = vand.u32 %v4920, 4294901760
    %6325 = vmatmul.f32.gmra.mxu0 %v6324
    %v6326 = vpop.f32.mrf.mxu0
    %v6327 = vadd.f32 %v6150, %v6326
    %v6328 = vand.u32 %v4923, 4294901760
    %6329 = vmatmul.f32.gmra.mxu0 %v6328
    %v6330 = vpop.f32.mrf.mxu0
    %v6331 = vadd.f32 %v6154, %v6330
    %v6332 = vand.u32 %v4926, 4294901760
    %6333 = vmatmul.f32.gmra.mxu0 %v6332
    %v6334 = vpop.f32.mrf.mxu0
    %v6335 = vadd.f32 %v6158, %v6334
    %v6336 = vand.u32 %v4929, 4294901760
    %6337 = vmatmul.f32.gmra.mxu0 %v6336
    %v6338 = vpop.f32.mrf.mxu0
    %v6339 = vadd.f32 %v6162, %v6338
    %v6340 = vand.u32 %v4932, 4294901760
    %6341 = vmatmul.f32.gmra.mxu0 %v6340
    %v6342 = vpop.f32.mrf.mxu0
    %v6343 = vadd.f32 %v6166, %v6342
    %v6344 = vand.u32 %v4935, 4294901760
    %6345 = vmatmul.f32.gmra.mxu0 %v6344
    %v6346 = vpop.f32.mrf.mxu0
    %v6347 = vadd.f32 %v6170, %v6346
    %v6348 = vand.u32 %v4938, 4294901760
    %6349 = vmatmul.f32.gmra.mxu0 %v6348
    %v6350 = vpop.f32.mrf.mxu0
    %v6351 = vadd.f32 %v6174, %v6350
    %v6352 = vand.u32 %v4941, 4294901760
    %6353 = vmatmul.f32.gmra.mxu0 %v6352
    %v6354 = vpop.f32.mrf.mxu0
    %v6355 = vadd.f32 %v6178, %v6354
    %v6356 = vand.u32 %v4944, 4294901760
    %6357 = vmatmul.f32.gmra.mxu0 %v6356
    %v6358 = vpop.f32.mrf.mxu0
    %v6359 = vadd.f32 %v6182, %v6358
    %v6360 = vand.u32 %v4947, 4294901760
    %6361 = vmatmul.f32.gmra.mxu0 %v6360
    %v6362 = vpop.f32.mrf.mxu0
    %v6363 = vadd.f32 %v6186, %v6362
    %v6364 = vand.u32 %v4950, 4294901760
    %6365 = vmatmul.f32.gmra.mxu0 %v6364
    %v6366 = vpop.f32.mrf.mxu0
    %v6367 = vadd.f32 %v6190, %v6366
    %v6368 = vand.u32 %v4953, 4294901760
    %6369 = vmatmul.f32.gmra.mxu0 %v6368
    %v6370 = vpop.f32.mrf.mxu0
    %v6371 = vadd.f32 %v6194, %v6370
    %v6372 = vand.u32 %v4956, 4294901760
    %6373 = vmatmul.f32.gmra.mxu0 %v6372
    %v6374 = vpop.f32.mrf.mxu0
    %v6375 = vadd.f32 %v6198, %v6374
    %v6376 = vand.u32 %v4959, 4294901760
    %6377 = vmatmul.f32.gmra.mxu0 %v6376
    %v6378 = vpop.f32.mrf.mxu0
    %v6379 = vadd.f32 %v6202, %v6378
    %v6380 = vand.u32 %v4962, 4294901760
    %6381 = vmatmul.f32.gmra.mxu0 %v6380
    %v6382 = vpop.f32.mrf.mxu0
    %v6383 = vadd.f32 %v6206, %v6382
    %v6384 = vand.u32 %v4965, 4294901760
    %6385 = vmatmul.f32.gmra.mxu0 %v6384
    %v6386 = vpop.f32.mrf.mxu0
    %v6387 = vadd.f32 %v6210, %v6386
    %v6388 = vand.u32 %v4968, 4294901760
    %6389 = vmatmul.f32.gmra.mxu0 %v6388
    %v6390 = vpop.f32.mrf.mxu0
    %v6391 = vadd.f32 %v6214, %v6390
    %v6392 = vand.u32 %v4971, 4294901760
    %6393 = vmatmul.f32.gmra.mxu0 %v6392
    %v6394 = vpop.f32.mrf.mxu0
    %v6395 = vadd.f32 %v6218, %v6394
    %v6396 = vand.u32 %v4974, 4294901760
    %6397 = vmatmul.f32.gmra.mxu0 %v6396
    %v6398 = vpop.f32.mrf.mxu0
    %v6399 = vadd.f32 %v6222, %v6398
    %v6400 = vand.u32 %v4977, 4294901760
    %6401 = vmatmul.f32.gmra.mxu0 %v6400
    %v6402 = vpop.f32.mrf.mxu0
    %v6403 = vadd.f32 %v6226, %v6402
    %6404 = vdwg.mxu0
    %v6405 = vmax.f32 %v4693, %v6263
    %v6406 = vmax.f32 %v4697, %v6267
    %v6407 = vmax.f32 %v4701, %v6271
    %v6408 = vmax.f32 %v4705, %v6275
    %v6409 = vmax.f32 %v4709, %v6279
    %v6410 = vmax.f32 %v4713, %v6283
    %v6411 = vmax.f32 %v4717, %v6287
    %v6412 = vmax.f32 %v4721, %v6291
    %v6413 = vmax.f32 %v4725, %v6295
    %v6414 = vmax.f32 %v4729, %v6299
    %v6415 = vmax.f32 %v4733, %v6303
    %v6416 = vmax.f32 %v4737, %v6307
    %v6417 = vmax.f32 %v4741, %v6311
    %v6418 = vmax.f32 %v4745, %v6315
    %v6419 = vmax.f32 %v4749, %v6319
    %v6420 = vmax.f32 %v4753, %v6323
    %v6421 = vmax.f32 %v4757, %v6327
    %v6422 = vmax.f32 %v4761, %v6331
    %v6423 = vmax.f32 %v4765, %v6335
    %v6424 = vmax.f32 %v4769, %v6339
    %v6425 = vmax.f32 %v4773, %v6343
    %v6426 = vmax.f32 %v4777, %v6347
    %v6427 = vmax.f32 %v4781, %v6351
    %v6428 = vmax.f32 %v4785, %v6355
    %v6429 = vmax.f32 %v4789, %v6359
    %v6430 = vmax.f32 %v4793, %v6363
    %v6431 = vmax.f32 %v4797, %v6367
    %v6432 = vmax.f32 %v4801, %v6371
    %v6433 = vmax.f32 %v4805, %v6375
    %v6434 = vmax.f32 %v4809, %v6379
    %v6435 = vmax.f32 %v4813, %v6383
    %v6436 = vmax.f32 %v4817, %v6387
    %v6437 = vmax.f32 %v4821, %v6391
    %v6438 = vmax.f32 %v4825, %v6395
    %v6439 = vmax.f32 %v4829, %v6399
    %v6440 = vmax.f32 %v4833, %v6403
    %v6441 = vmax.f32 %v3229, %v6405
    %v6442 = vmax.f32 %v3230, %v6406
    %v6443 = vmax.f32 %v3231, %v6407
    %v6444 = vmax.f32 %v3232, %v6408
    %v6445 = vmax.f32 %v3233, %v6409
    %v6446 = vmax.f32 %v3234, %v6410
    %v6447 = vmax.f32 %v3235, %v6411
    %v6448 = vmax.f32 %v3236, %v6412
    %v6449 = vmax.f32 %v3237, %v6413
    %v6450 = vmax.f32 %v3238, %v6414
    %v6451 = vmax.f32 %v3239, %v6415
    %v6452 = vmax.f32 %v3240, %v6416
    %v6453 = vmax.f32 %v3241, %v6417
    %v6454 = vmax.f32 %v3242, %v6418
    %v6455 = vmax.f32 %v3243, %v6419
    %v6456 = vmax.f32 %v3244, %v6420
    %v6457 = vmax.f32 %v3245, %v6421
    %v6458 = vmax.f32 %v3246, %v6422
    %v6459 = vmax.f32 %v3247, %v6423
    %v6460 = vmax.f32 %v3248, %v6424
    %v6461 = vmax.f32 %v3249, %v6425
    %v6462 = vmax.f32 %v3250, %v6426
    %v6463 = vmax.f32 %v3251, %v6427
    %v6464 = vmax.f32 %v3252, %v6428
    %v6465 = vmax.f32 %v3253, %v6429
    %v6466 = vmax.f32 %v3254, %v6430
    %v6467 = vmax.f32 %v3255, %v6431
    %v6468 = vmax.f32 %v3256, %v6432
    %v6469 = vmax.f32 %v3257, %v6433
    %v6470 = vmax.f32 %v3258, %v6434
    %v6471 = vmax.f32 %v3259, %v6435
    %v6472 = vmax.f32 %v3260, %v6436
    %v6473 = vmax.f32 %v3261, %v6437
    %v6474 = vmax.f32 %v3262, %v6438
    %v6475 = vmax.f32 %v3263, %v6439
    %v6476 = vmax.f32 %v3264, %v6440
    %v6477 = vld [vmem:[%s5] sm:$0x1]
    %v6479 = vperm.slane %v6477, 0
    %v6481 = vadd.f32 %v6441, %v6479
    %v6482 = vadd.f32 %v6442, %v6479
    %v6483 = vadd.f32 %v6443, %v6479
    %v6484 = vadd.f32 %v6444, %v6479
    %v6485 = vadd.f32 %v6445, %v6479
    %v6486 = vadd.f32 %v6446, %v6479
    %v6487 = vadd.f32 %v6447, %v6479
    %v6488 = vadd.f32 %v6448, %v6479
    %v6489 = vadd.f32 %v6449, %v6479
    %v6490 = vadd.f32 %v6450, %v6479
    %v6491 = vadd.f32 %v6451, %v6479
    %v6492 = vadd.f32 %v6452, %v6479
    %v6493 = vadd.f32 %v6453, %v6479
    %v6494 = vadd.f32 %v6454, %v6479
    %v6495 = vadd.f32 %v6455, %v6479
    %v6496 = vadd.f32 %v6456, %v6479
    %v6497 = vadd.f32 %v6457, %v6479
    %v6498 = vadd.f32 %v6458, %v6479
    %v6499 = vadd.f32 %v6459, %v6479
    %v6500 = vadd.f32 %v6460, %v6479
    %v6501 = vadd.f32 %v6461, %v6479
    %v6502 = vadd.f32 %v6462, %v6479
    %v6503 = vadd.f32 %v6463, %v6479
    %v6504 = vadd.f32 %v6464, %v6479
    %v6505 = vadd.f32 %v6465, %v6479
    %v6506 = vadd.f32 %v6466, %v6479
    %v6507 = vadd.f32 %v6467, %v6479
    %v6508 = vadd.f32 %v6468, %v6479
    %v6509 = vadd.f32 %v6469, %v6479
    %v6510 = vadd.f32 %v6470, %v6479
    %v6511 = vadd.f32 %v6471, %v6479
    %v6512 = vadd.f32 %v6472, %v6479
    %v6513 = vadd.f32 %v6473, %v6479
    %v6514 = vadd.f32 %v6474, %v6479
    %v6515 = vadd.f32 %v6475, %v6479
    %v6516 = vadd.f32 %v6476, %v6479
    %6517 = vst [vmem:[#allocation2] sm:$0xff] %v6481
    %6518 = vst [vmem:[#allocation2 + $0x8] sm:$0xff] %v6482
    %6519 = vst [vmem:[#allocation2 + $0x10] sm:$0xff] %v6483
    %6520 = vst [vmem:[#allocation2 + $0x18] sm:$0xff] %v6484
    %6521 = vst [vmem:[#allocation2 + $0x20] sm:$0xff] %v6485
    %6522 = vst [vmem:[#allocation2 + $0x28] sm:$0xff] %v6486
    %6523 = vst [vmem:[#allocation2 + $0x30] sm:$0xff] %v6487
    %6524 = vst [vmem:[#allocation2 + $0x38] sm:$0xff] %v6488
    %6525 = vst [vmem:[#allocation2 + $0x40] sm:$0xff] %v6489
    %6526 = vst [vmem:[#allocation2 + $0x48] sm:$0xff] %v6490
    %6527 = vst [vmem:[#allocation2 + $0x50] sm:$0xff] %v6491
    %6528 = vst [vmem:[#allocation2 + $0x58] sm:$0xff] %v6492
    %6529 = vst [vmem:[#allocation2 + $0x60] sm:$0xff] %v6493
    %6530 = vst [vmem:[#allocation2 + $0x68] sm:$0xff] %v6494
    %6531 = vst [vmem:[#allocation2 + $0x70] sm:$0xff] %v6495
    %6532 = vst [vmem:[#allocation2 + $0x78] sm:$0xff] %v6496
    %6533 = vst [vmem:[#allocation2 + $0x80] sm:$0xff] %v6497
    %6534 = vst [vmem:[#allocation2 + $0x88] sm:$0xff] %v6498
    %6535 = vst [vmem:[#allocation2 + $0x90] sm:$0xff] %v6499
    %6536 = vst [vmem:[#allocation2 + $0x98] sm:$0xff] %v6500
    %6537 = vst [vmem:[#allocation2 + $0xa0] sm:$0xff] %v6501
    %6538 = vst [vmem:[#allocation2 + $0xa8] sm:$0xff] %v6502
    %6539 = vst [vmem:[#allocation2 + $0xb0] sm:$0xff] %v6503
    %6540 = vst [vmem:[#allocation2 + $0xb8] sm:$0xff] %v6504
    %6541 = vst [vmem:[#allocation2 + $0xc0] sm:$0xff] %v6505
    %6542 = vst [vmem:[#allocation2 + $0xc8] sm:$0xff] %v6506
    %6543 = vst [vmem:[#allocation2 + $0xd0] sm:$0xff] %v6507
    %6544 = vst [vmem:[#allocation2 + $0xd8] sm:$0xff] %v6508
    %6545 = vst [vmem:[#allocation2 + $0xe0] sm:$0xff] %v6509
    %6546 = vst [vmem:[#allocation2 + $0xe8] sm:$0xff] %v6510
    %6547 = vst [vmem:[#allocation2 + $0xf0] sm:$0xff] %v6511
    %6548 = vst [vmem:[#allocation2 + $0xf8] sm:$0xff] %v6512
    %6549 = vst [vmem:[#allocation2 + $0x100] sm:$0xff] %v6513
    %6550 = vst [vmem:[#allocation2 + $0x108] sm:$0xff] %v6514
    %6551 = vst [vmem:[#allocation2 + $0x110] sm:$0xff] %v6515
    %6552 = vst [vmem:[#allocation2 + $0x118] sm:$0xff] %v6516
    // Predicated region
    $region26: #{tpu_custom_call.1} parent=1 // pred_check
      _
    $region27: #{tpu_custom_call.1} parent=1 // pred_check_branch
      %6554 = sbr.rel (0) target = $region29
    $region28: #{tpu_custom_call.1} parent=1 // pred_region
      %6556 = vsyncadd [#allocation3], 0
      %s6557 = sshll.u32 [#allocation2], 4
      %s6558 = int_to_ptr.vmem [resolvable:$true] %s6557
      %s6559 = sshll.u32 %s6, 4
      %s6560 = int_to_ptr.hbm [resolvable:$true] %s6559
      %6565 = dma.vmem_to_hbm [thread:$0]  %s6558, 4608, %s6560, [#allocation3], 128, 128, 8
    $region29: #{tpu_custom_call.1} parent=1 // pred_fallthru
      _
    // Predicated region
    $region30: #{tpu_custom_call.1} parent=1 // pred_check
      _
    $region31: #{tpu_custom_call.1} parent=1 // pred_check_branch
      %6567 = sbr.rel (0) target = $region33
    $region32: #{tpu_custom_call.1} parent=1 // pred_region
      %6569 = dma.done [#allocation3], 4608
    $region33: #{tpu_custom_call.1} parent=1 // pred_fallthru
      _
    %6570 = vsyncpa [#allocation3], 1

</llo_original>
